<compile_context>
chip_gen: v7x
topology: tpu7x:2x2x1
jax: 0.10.0
libtpu: 0.0.40
codegen_flags: <defaults>
</compile_context>

<pallas_src>
import functools
import math

import jax
import jax.numpy as jnp
import numpy as np
from jax.experimental import pallas as pl
from jax.experimental.pallas import tpu as pltpu

# ----------------------------- synthetic config -----------------------------
SEQ_LEN = 8
D_MODEL = 32
N_HEADS = 4
D_FF = 64
E_LAYERS = 2
FACTOR = 5
OUT_DIM = 5
DISTIL = True
ACTIVATION = "relu"      # EncoderLayer activation ('relu' | 'gelu')
FEAT_SELECT = "mean"     # 'last' | 'mean'
LN_EPS = 1e-5
BN_EPS = 1e-5
NEG = -1e30              # additive mask value (safe: scores are finite & small)


# --------------------------- in-kernel building blocks ----------------------
def _layernorm(z, g, b):
    mu = jnp.mean(z, axis=-1, keepdims=True)
    var = jnp.mean((z - mu) ** 2, axis=-1, keepdims=True)
    return (z - mu) * jax.lax.rsqrt(var + LN_EPS) * g + b


def _activation(x):
    if ACTIVATION == "relu":
        return jnp.maximum(x, 0.0)
    # TODO(synk): tanh-approximate GELU (PyTorch F.gelu defaults to exact erf).
    c = math.sqrt(2.0 / math.pi)
    return 0.5 * x * (1.0 + jnp.tanh(c * (x + 0.044715 * x * x * x)))


# ------------------------------- fused kernel -------------------------------
def _informer_kernel(x_ref, w_ref, o_ref, *, B, lens, H, D, dff, n_layers,
                     distil, offs, out_dim):
    dm = H * D
    x = x_ref[...]                                        # (B*lens[0], dm)

    for l in range(n_layers):
        L = lens[l]
        N = B * L
        o = offs["layers"][l]

        wqkv = w_ref[o["wqkv"]:o["wqkv"] + dm, 0:3 * dm]  # Wq pre-scaled by 1/sqrt(D)
        wo = w_ref[o["wo"]:o["wo"] + dm, 0:dm]
        w1 = w_ref[o["w1"]:o["w1"] + dm, 0:dff]
        w2 = w_ref[o["w2"]:o["w2"] + dff, 0:dm]
        vec = w_ref[o["vec"]:o["vec"] + 8, :]
        mask = w_ref[o["mask"]:o["mask"] + N, 0:N]        # block-diag additive mask

        b_qkv = vec[0:1, 0:3 * dm]
        b_o = vec[1:2, 0:dm]
        ln1_g, ln1_b = vec[2:3, 0:dm], vec[3:4, 0:dm]
        b1 = vec[4:5, 0:dff]
        b2 = vec[5:6, 0:dm]
        ln2_g, ln2_b = vec[6:7, 0:dm], vec[7:8, 0:dm]

        # ---- multi-head attention (ProbSparse short-circuited: u == L) ----
        qkv = jnp.dot(x, wqkv, preferred_element_type=jnp.float32) + b_qkv
        ctx_heads = []
        for h in range(H):
            q = qkv[:, h * D:(h + 1) * D]
            k = qkv[:, dm + h * D:dm + (h + 1) * D]
            v = qkv[:, 2 * dm + h * D:2 * dm + (h + 1) * D]
            s = jax.lax.dot_general(q, k, (((1,), (1,)), ((), ())),
                                    preferred_element_type=jnp.float32) + mask
            s = s - jnp.max(s, axis=-1, keepdims=True)
            e = jnp.exp(s)
            p = e * pl.reciprocal(jnp.sum(e, axis=-1, keepdims=True), approx=True)
            ctx_heads.append(jnp.dot(p, v, preferred_element_type=jnp.float32))
        ctx = jnp.concatenate(ctx_heads, axis=-1)          # (N, dm) lane-concat
        att = jnp.dot(ctx, wo, preferred_element_type=jnp.float32) + b_o
        x = _layernorm(x + att, ln1_g, ln1_b)              # norm1(x + attn)

        # ---- position-wise FFN (Conv1d kernel_size=1 == Linear) ----
        hid = _activation(jnp.dot(x, w1, preferred_element_type=jnp.float32) + b1)
        y = jnp.dot(hid, w2, preferred_element_type=jnp.float32) + b2
        x = _layernorm(x + y, ln2_g, ln2_b)                # norm2(x + FFN)

        # ---- conv distillation: Conv1d(k=3, circular) + BN(eval) + ELU + MaxPool ----
        if distil and l < n_layers - 1:
            c = offs["convs"][l]
            Lc = L + 2
            Lout = lens[l + 1]
            Nc, Nout = B * Lc, B * Lout

            wc = w_ref[c["wc"]:c["wc"] + dm, 0:3 * dm]
            cvec = w_ref[c["vec"]:c["vec"] + 8, :]
            bc, bn_sc, bn_sh = cvec[0:1, 0:dm], cvec[1:2, 0:dm], cvec[2:3, 0:dm]
            g0 = w_ref[c["g0"]:c["g0"] + Nc, 0:N]          # circular-gather one-hots
            g1 = w_ref[c["g1"]:c["g1"] + Nc, 0:N]
            g2 = w_ref[c["g2"]:c["g2"] + Nc, 0:N]
            ac = w_ref[c["ac"]:c["ac"] + Nout, 0:Nc]       # pool window selectors
            ap = w_ref[c["ap"]:c["ap"] + Nout, 0:Nc]
            an = w_ref[c["an"]:c["an"] + Nout, 0:Nc]

            z = jnp.dot(x, wc, preferred_element_type=jnp.float32)   # (N, 3*dm)
            y = (jnp.dot(g0, z[:, 0:dm], preferred_element_type=jnp.float32)
                 + jnp.dot(g1, z[:, dm:2 * dm], preferred_element_type=jnp.float32)
                 + jnp.dot(g2, z[:, 2 * dm:3 * dm], preferred_element_type=jnp.float32)
                 + bc)                                               # (Nc, dm)
            y = y * bn_sc + bn_sh                                    # folded eval BN
            y = jnp.where(y > 0, y, jnp.exp(jnp.minimum(y, 0.0)) - 1.0)   # ELU
            # MaxPool1d(3, stride=2, pad=1): max over {center, prev, next} windows
            x = jnp.maximum(
                jnp.maximum(jnp.dot(ac, y, preferred_element_type=jnp.float32),
                            jnp.dot(ap, y, preferred_element_type=jnp.float32)),
                jnp.dot(an, y, preferred_element_type=jnp.float32))  # (Nout, dm)

    # ---- final encoder LayerNorm + pooling + classifier ----
    f = offs["final"]
    Lf = lens[-1]
    Nf = B * Lf
    fvec = w_ref[f["vec"]:f["vec"] + 8, :]
    enc_g, enc_b = fvec[0:1, 0:dm], fvec[1:2, 0:dm]
    fc_b = fvec[2:3, 0:out_dim]
    pool = w_ref[f["pool"]:f["pool"] + B, 0:Nf]            # mean / 'last' selector
    fcw = w_ref[f["fcw"]:f["fcw"] + dm, 0:out_dim]

    x = _layernorm(x, enc_g, enc_b)
    feat = jnp.dot(pool, x, preferred_element_type=jnp.float32)       # (B, dm)
    o_ref[...] = jnp.dot(feat, fcw, preferred_element_type=jnp.float32) + fc_b


# ------------------------------ host-side packing ----------------------------
class _SlabBuilder:
    """Packs 2-D f32 blocks into one (rows, 128) slab; 8-row aligned offsets."""

    def __init__(self, width=128):
        self.width = width
        self.rows = 0
        self.blocks = []

    def add(self, arr):
        a = np.asarray(arr, np.float32)
        r, c = a.shape
        assert c <= self.width, (r, c)
        rp = ((r + 7) // 8) * 8
        blk = np.zeros((rp, self.width), np.float32)
        blk[:r, :c] = a
        off = self.rows
        self.blocks.append(blk)
        self.rows += rp
        return off

    def finalize(self):
        return np.concatenate(self.blocks, axis=0)


def _build_slab(params, B, L0):
    dm, dff, H = D_MODEL, D_FF, N_HEADS
    D = dm // H
    scale = 1.0 / math.sqrt(D)

    if FEAT_SELECT not in ("mean", "last"):
        # TODO(synk): feat_select == 'fc' (nn.Linear(seq_len, 1)) is incompatible
        # with distil's shrinking sequence length and is not implemented.
        raise NotImplementedError(FEAT_SELECT)

    # Sequence length entering each encoder layer.
    lens = [L0]
    for _ in range(E_LAYERS - 1):
        if DISTIL:
            Lc = lens[-1] + 2
            lens.append((Lc - 1) // 2 + 1)
        else:
            lens.append(lens[-1])

    # ProbSparse short-circuit validity: u = min(factor*ceil(ln L), L) == L.
    for L in lens:
        u = min(FACTOR * int(math.ceil(math.log(L))), L)
        if u < L:
            # TODO(synk): general ProbSparse path (u < L_Q: torch-RNG query
            # sampling + top-k + scatter) is not implemented in the fused kernel.
            raise NotImplementedError("ProbSparse with u < L_Q not supported")

    sb = _SlabBuilder(128)
    offs = {"layers": [], "convs": [], "final": {}}

    for l in range(E_LAYERS):
        p = params["layers"][l]
        Ll = lens[l]
        N = B * Ll

        wqkv = np.concatenate([np.asarray(p["wq"]) * scale,
                               np.asarray(p["wk"]),
                               np.asarray(p["wv"])], axis=1)          # (dm, 3dm)
        vec = np.zeros((8, 128), np.float32)
        vec[0, 0:dm] = np.asarray(p["bq"]) * scale
        vec[0, dm:2 * dm] = np.asarray(p["bk"])
        vec[0, 2 * dm:3 * dm] = np.asarray(p["bv"])
        vec[1, :dm] = np.asarray(p["bo"])
        vec[2, :dm] = np.asarray(p["ln1_g"])
        vec[3, :dm] = np.asarray(p["ln1_b"])
        vec[4, :dff] = np.asarray(p["b1"])
        vec[5, :dm] = np.asarray(p["b2"])
        vec[6, :dm] = np.asarray(p["ln2_g"])
        vec[7, :dm] = np.asarray(p["ln2_b"])

        bd = np.full((N, N), NEG, np.float32)                         # block-diag mask
        for b in range(B):
            bd[b * Ll:(b + 1) * Ll, b * Ll:(b + 1) * Ll] = 0.0

        offs["layers"].append({
            "wqkv": sb.add(wqkv),
            "wo": sb.add(np.asarray(p["wo"])),
            "w1": sb.add(np.asarray(p["w1"])),
            "w2": sb.add(np.asarray(p["w2"])),
            "vec": sb.add(vec),
            "mask": sb.add(bd),
        })

        if DISTIL and l < E_LAYERS - 1:
            c = params["convs"][l]
            Lc = Ll + 2
            Lout = lens[l + 1]
            Nc, Nout = B * Lc, B * Lout

            wc = np.asarray(c["wc"])                                  # (3, dm, dm)
            wc_all = np.concatenate([wc[0], wc[1], wc[2]], axis=1)    # (dm, 3dm)
            inv_std = 1.0 / np.sqrt(np.asarray(c["bn_rv"]) + BN_EPS)  # eval BN fold
            bn_sc = np.asarray(c["bn_g"]) * inv_std
            bn_sh = np.asarray(c["bn_b"]) - np.asarray(c["bn_rm"]) * bn_sc
            cvec = np.zeros((8, 128), np.float32)
            cvec[0, :dm] = np.asarray(c["bc"])
            cvec[1, :dm] = bn_sc
            cvec[2, :dm] = bn_sh

            # Circular-pad conv gathers: out[t] = sum_j x[(t-2+j) mod L] @ w_j
            Gs = []
            for j in range(3):
                G = np.zeros((Nc, N), np.float32)
                for b in range(B):
                    for t in range(Lc):
                        G[b * Lc + t, b * Ll + (t - 2 + j) % Ll] = 1.0
                Gs.append(G)
            # MaxPool1d(3,2,1): pooled[t] = max(y[2t-1], y[2t], y[2t+1]); edges
            # fall back to the center row (equivalent to -inf padding under max).
            Sel = np.zeros((Nout, Nc), np.float32)
            Shu = np.zeros((Nc, Nc), np.float32)
            Shd = np.zeros((Nc, Nc), np.float32)
            for b in range(B):
                for t in range(Lout):
                    Sel[b * Lout + t, b * Lc + 2 * t] = 1.0
                for s in range(Lc):
                    Shu[b * Lc + s, b * Lc + max(s - 1, 0)] = 1.0
                    Shd[b * Lc + s, b * Lc + min(s + 1, Lc - 1)] = 1.0

            offs["convs"].append({
                "wc": sb.add(wc_all), "vec": sb.add(cvec),
                "g0": sb.add(Gs[0]), "g1": sb.add(Gs[1]), "g2": sb.add(Gs[2]),
                "ac": sb.add(Sel), "ap": sb.add(Sel @ Shu), "an": sb.add(Sel @ Shd),
            })

    Lf = lens[-1]
    Nf = B * Lf
    fvec = np.zeros((8, 128), np.float32)
    fvec[0, :dm] = np.asarray(params["enc_ln_g"])
    fvec[1, :dm] = np.asarray(params["enc_ln_b"])
    fvec[2, :OUT_DIM] = np.asarray(params["fc_b"])
    pool = np.zeros((B, Nf), np.float32)
    for b in range(B):
        if FEAT_SELECT == "mean":
            pool[b, b * Lf:(b + 1) * Lf] = 1.0 / Lf
        else:  # 'last' — PyTorch does feat.permute(0,2,1)[:, :, 0] == timestep 0
            pool[b, b * Lf] = 1.0
    offs["final"] = {"vec": sb.add(fvec), "pool": sb.add(pool),
                     "fcw": sb.add(np.asarray(params["fc_w"]))}

    return jnp.asarray(sb.finalize()), offs, lens


def make_informer_fn(params, batch_size, seq_len):
    B, L0 = batch_size, seq_len
    dm, H = D_MODEL, N_HEADS
    D = dm // H
    slab, offs, lens = _build_slab(params, B, L0)

    kernel = functools.partial(
        _informer_kernel, B=B, lens=tuple(lens), H=H, D=D, dff=D_FF,
        n_layers=E_LAYERS, distil=DISTIL, offs=offs, out_dim=OUT_DIM)

    call = pl.pallas_call(
        kernel,
        out_shape=jax.ShapeDtypeStruct((B, OUT_DIM), jnp.float32),
        in_specs=[pl.BlockSpec(memory_space=pltpu.MemorySpace.VMEM),
                  pl.BlockSpec(memory_space=pltpu.MemorySpace.VMEM)],
        out_specs=pl.BlockSpec(memory_space=pltpu.MemorySpace.VMEM),
    )

    def fwd(x):
        return call(x.reshape(B * L0, dm).astype(jnp.float32), slab)

    return jax.jit(fwd)


# ------------------------------- parameters ----------------------------------
def init_params(key):
    dm, dff = D_MODEL, D_FF

    def nrm(k, shape, s=0.05):
        return jax.random.normal(k, shape, jnp.float32) * s

    keys = iter(jax.random.split(key, 64))
    params = {"layers": [], "convs": []}
    for _ in range(E_LAYERS):
        params["layers"].append({
            "wq": nrm(next(keys), (dm, dm)), "bq": jnp.zeros((dm,), jnp.float32),
            "wk": nrm(next(keys), (dm, dm)), "bk": jnp.zeros((dm,), jnp.float32),
            "wv": nrm(next(keys), (dm, dm)), "bv": jnp.zeros((dm,), jnp.float32),
            "wo": nrm(next(keys), (dm, dm)), "bo": jnp.zeros((dm,), jnp.float32),
            "ln1_g": jnp.ones((dm,), jnp.float32), "ln1_b": jnp.zeros((dm,), jnp.float32),
            "w1": nrm(next(keys), (dm, dff)), "b1": jnp.zeros((dff,), jnp.float32),
            "w2": nrm(next(keys), (dff, dm)), "b2": jnp.zeros((dm,), jnp.float32),
            "ln2_g": jnp.ones((dm,), jnp.float32), "ln2_b": jnp.zeros((dm,), jnp.float32),
        })
    for _ in range(E_LAYERS - 1 if DISTIL else 0):
        params["convs"].append({
            "wc": nrm(next(keys), (3, dm, dm)), "bc": jnp.zeros((dm,), jnp.float32),
            "bn_g": jnp.ones((dm,), jnp.float32), "bn_b": jnp.zeros((dm,), jnp.float32),
            "bn_rm": jnp.zeros((dm,), jnp.float32), "bn_rv": jnp.ones((dm,), jnp.float32),
        })
    params["enc_ln_g"] = jnp.ones((dm,), jnp.float32)
    params["enc_ln_b"] = jnp.zeros((dm,), jnp.float32)
    params["fc_w"] = nrm(next(keys), (dm, OUT_DIM))
    params["fc_b"] = jnp.zeros((OUT_DIM,), jnp.float32)
    return params


if __name__ == "__main__":
    key = jax.random.PRNGKey(0)
    pkey, xkey = jax.random.split(key)
    params = init_params(pkey)
    x = jax.random.normal(xkey, (2, SEQ_LEN, D_MODEL), jnp.float32)
    fwd = make_informer_fn(params, batch_size=2, seq_len=SEQ_LEN)
    out = jax.block_until_ready(fwd(x))
    assert out.shape == (2, OUT_DIM), out.shape
    assert bool(jnp.all(jnp.isfinite(out)))
    print("KERNEL_OK")
</pallas_src>

<mosaic_0001>
module attributes {stable_mosaic.version = 11 : i64} {
  func.func @_informer_kernel(%arg0: memref<16x32xf32, #tpu.memory_space<vmem>>, %arg1: memref<576x128xf32, #tpu.memory_space<vmem>>, %arg2: memref<2x5xf32, #tpu.memory_space<vmem>>) attributes {dimension_semantics = [], scalar_prefetch = 0 : i64, scratch_operands = 0 : i64, tpu.core_type = #tpu.core_type<tc>} {
    %c0 = arith.constant 0 : index
    %c0_0 = arith.constant 0 : index
    %0 = vector.load %arg0[%c0, %c0_0] : memref<16x32xf32, #tpu.memory_space<vmem>>, vector<16x32xf32>
    %c0_1 = arith.constant 0 : index
    %c0_2 = arith.constant 0 : index
    %1 = vector.load %arg1[%c0_1, %c0_2] : memref<576x128xf32, #tpu.memory_space<vmem>>, vector<32x96xf32>
    %c32 = arith.constant 32 : index
    %c0_3 = arith.constant 0 : index
    %2 = vector.load %arg1[%c32, %c0_3] : memref<576x128xf32, #tpu.memory_space<vmem>>, vector<32x32xf32>
    %c64 = arith.constant 64 : index
    %c0_4 = arith.constant 0 : index
    %3 = vector.load %arg1[%c64, %c0_4] : memref<576x128xf32, #tpu.memory_space<vmem>>, vector<32x64xf32>
    %c96 = arith.constant 96 : index
    %c0_5 = arith.constant 0 : index
    %4 = vector.load %arg1[%c96, %c0_5] : memref<576x128xf32, #tpu.memory_space<vmem>>, vector<64x32xf32>
    %c160 = arith.constant 160 : index
    %c0_6 = arith.constant 0 : index
    %5 = vector.load %arg1[%c160, %c0_6] : memref<576x128xf32, #tpu.memory_space<vmem>>, vector<8x128xf32>
    %c168 = arith.constant 168 : index
    %c0_7 = arith.constant 0 : index
    %6 = vector.load %arg1[%c168, %c0_7] : memref<576x128xf32, #tpu.memory_space<vmem>>, vector<16x16xf32>
    %7 = vector.extract_strided_slice %5 {offsets = [0, 0], sizes = [1, 96], strides = [1, 1]} : vector<8x128xf32> to vector<1x96xf32>
    %8 = vector.extract_strided_slice %5 {offsets = [1, 0], sizes = [1, 32], strides = [1, 1]} : vector<8x128xf32> to vector<1x32xf32>
    %9 = vector.extract_strided_slice %5 {offsets = [2, 0], sizes = [1, 32], strides = [1, 1]} : vector<8x128xf32> to vector<1x32xf32>
    %10 = vector.extract_strided_slice %5 {offsets = [3, 0], sizes = [1, 32], strides = [1, 1]} : vector<8x128xf32> to vector<1x32xf32>
    %11 = vector.extract_strided_slice %5 {offsets = [4, 0], sizes = [1, 64], strides = [1, 1]} : vector<8x128xf32> to vector<1x64xf32>
    %12 = vector.extract_strided_slice %5 {offsets = [5, 0], sizes = [1, 32], strides = [1, 1]} : vector<8x128xf32> to vector<1x32xf32>
    %13 = vector.extract_strided_slice %5 {offsets = [6, 0], sizes = [1, 32], strides = [1, 1]} : vector<8x128xf32> to vector<1x32xf32>
    %14 = vector.extract_strided_slice %5 {offsets = [7, 0], sizes = [1, 32], strides = [1, 1]} : vector<8x128xf32> to vector<1x32xf32>
    %cst = arith.constant dense<0.000000e+00> : vector<16x96xf32>
    %15 = tpu.matmul %0, %1, %cst {dimension_numbers = #tpu.dot_dimension_numbers<[1], [0], [0], [1], [0, 0, 1, 1], [], []>} : vector<16x32xf32>, vector<32x96xf32>, vector<16x96xf32> -> vector<16x96xf32>
    %16 = vector.broadcast %7 : vector<1x96xf32> to vector<16x96xf32>
    %17 = arith.addf %15, %16 : vector<16x96xf32>
    %18 = vector.extract_strided_slice %17 {offsets = [0, 0], sizes = [16, 8], strides = [1, 1]} : vector<16x96xf32> to vector<16x8xf32>
    %19 = vector.extract_strided_slice %17 {offsets = [0, 32], sizes = [16, 8], strides = [1, 1]} : vector<16x96xf32> to vector<16x8xf32>
    %20 = vector.extract_strided_slice %17 {offsets = [0, 64], sizes = [16, 8], strides = [1, 1]} : vector<16x96xf32> to vector<16x8xf32>
    %cst_8 = arith.constant dense<0.000000e+00> : vector<16x16xf32>
    %21 = tpu.matmul %18, %19, %cst_8 {dimension_numbers = #tpu.dot_dimension_numbers<[1], [1], [0], [0], [0, 0, 1, 0], [], []>} : vector<16x8xf32>, vector<16x8xf32>, vector<16x16xf32> -> vector<16x16xf32>
    %22 = arith.addf %21, %6 : vector<16x16xf32>
    %cst_9 = arith.constant dense<0xFF800000> : vector<16xf32>
    %23 = vector.multi_reduction <maximumf>, %22, %cst_9 [1] : vector<16x16xf32> to vector<16xf32>
    %24 = vector.shape_cast %23 : vector<16xf32> to vector<16x1xf32>
    %25 = vector.broadcast %24 : vector<16x1xf32> to vector<16x16xf32>
    %26 = arith.subf %22, %25 : vector<16x16xf32>
    %27 = math.exp %26 : vector<16x16xf32>
    %cst_10 = arith.constant dense<0.000000e+00> : vector<16xf32>
    %28 = vector.multi_reduction <add>, %27, %cst_10 [1] : vector<16x16xf32> to vector<16xf32>
    %29 = vector.shape_cast %28 : vector<16xf32> to vector<16x1xf32>
    %30 = tpu.reciprocal %29 {approx = true} : vector<16x1xf32> -> vector<16x1xf32>
    %31 = vector.broadcast %30 : vector<16x1xf32> to vector<16x16xf32>
    %32 = arith.mulf %27, %31 : vector<16x16xf32>
    %cst_11 = arith.constant dense<0.000000e+00> : vector<16x8xf32>
    %33 = tpu.matmul %32, %20, %cst_11 {dimension_numbers = #tpu.dot_dimension_numbers<[1], [0], [0], [1], [0, 0, 1, 1], [], []>} : vector<16x16xf32>, vector<16x8xf32>, vector<16x8xf32> -> vector<16x8xf32>
    %34 = vector.extract_strided_slice %17 {offsets = [0, 8], sizes = [16, 8], strides = [1, 1]} : vector<16x96xf32> to vector<16x8xf32>
    %35 = vector.extract_strided_slice %17 {offsets = [0, 40], sizes = [16, 8], strides = [1, 1]} : vector<16x96xf32> to vector<16x8xf32>
    %36 = vector.extract_strided_slice %17 {offsets = [0, 72], sizes = [16, 8], strides = [1, 1]} : vector<16x96xf32> to vector<16x8xf32>
    %cst_12 = arith.constant dense<0.000000e+00> : vector<16x16xf32>
    %37 = tpu.matmul %34, %35, %cst_12 {dimension_numbers = #tpu.dot_dimension_numbers<[1], [1], [0], [0], [0, 0, 1, 0], [], []>} : vector<16x8xf32>, vector<16x8xf32>, vector<16x16xf32> -> vector<16x16xf32>
    %38 = arith.addf %37, %6 : vector<16x16xf32>
    %cst_13 = arith.constant dense<0xFF800000> : vector<16xf32>
    %39 = vector.multi_reduction <maximumf>, %38, %cst_13 [1] : vector<16x16xf32> to vector<16xf32>
    %40 = vector.shape_cast %39 : vector<16xf32> to vector<16x1xf32>
    %41 = vector.broadcast %40 : vector<16x1xf32> to vector<16x16xf32>
    %42 = arith.subf %38, %41 : vector<16x16xf32>
    %43 = math.exp %42 : vector<16x16xf32>
    %cst_14 = arith.constant dense<0.000000e+00> : vector<16xf32>
    %44 = vector.multi_reduction <add>, %43, %cst_14 [1] : vector<16x16xf32> to vector<16xf32>
    %45 = vector.shape_cast %44 : vector<16xf32> to vector<16x1xf32>
    %46 = tpu.reciprocal %45 {approx = true} : vector<16x1xf32> -> vector<16x1xf32>
    %47 = vector.broadcast %46 : vector<16x1xf32> to vector<16x16xf32>
    %48 = arith.mulf %43, %47 : vector<16x16xf32>
    %cst_15 = arith.constant dense<0.000000e+00> : vector<16x8xf32>
    %49 = tpu.matmul %48, %36, %cst_15 {dimension_numbers = #tpu.dot_dimension_numbers<[1], [0], [0], [1], [0, 0, 1, 1], [], []>} : vector<16x16xf32>, vector<16x8xf32>, vector<16x8xf32> -> vector<16x8xf32>
    %50 = vector.extract_strided_slice %17 {offsets = [0, 16], sizes = [16, 8], strides = [1, 1]} : vector<16x96xf32> to vector<16x8xf32>
    %51 = vector.extract_strided_slice %17 {offsets = [0, 48], sizes = [16, 8], strides = [1, 1]} : vector<16x96xf32> to vector<16x8xf32>
    %52 = vector.extract_strided_slice %17 {offsets = [0, 80], sizes = [16, 8], strides = [1, 1]} : vector<16x96xf32> to vector<16x8xf32>
    %cst_16 = arith.constant dense<0.000000e+00> : vector<16x16xf32>
    %53 = tpu.matmul %50, %51, %cst_16 {dimension_numbers = #tpu.dot_dimension_numbers<[1], [1], [0], [0], [0, 0, 1, 0], [], []>} : vector<16x8xf32>, vector<16x8xf32>, vector<16x16xf32> -> vector<16x16xf32>
    %54 = arith.addf %53, %6 : vector<16x16xf32>
    %cst_17 = arith.constant dense<0xFF800000> : vector<16xf32>
    %55 = vector.multi_reduction <maximumf>, %54, %cst_17 [1] : vector<16x16xf32> to vector<16xf32>
    %56 = vector.shape_cast %55 : vector<16xf32> to vector<16x1xf32>
    %57 = vector.broadcast %56 : vector<16x1xf32> to vector<16x16xf32>
    %58 = arith.subf %54, %57 : vector<16x16xf32>
    %59 = math.exp %58 : vector<16x16xf32>
    %cst_18 = arith.constant dense<0.000000e+00> : vector<16xf32>
    %60 = vector.multi_reduction <add>, %59, %cst_18 [1] : vector<16x16xf32> to vector<16xf32>
    %61 = vector.shape_cast %60 : vector<16xf32> to vector<16x1xf32>
    %62 = tpu.reciprocal %61 {approx = true} : vector<16x1xf32> -> vector<16x1xf32>
    %63 = vector.broadcast %62 : vector<16x1xf32> to vector<16x16xf32>
    %64 = arith.mulf %59, %63 : vector<16x16xf32>
    %cst_19 = arith.constant dense<0.000000e+00> : vector<16x8xf32>
    %65 = tpu.matmul %64, %52, %cst_19 {dimension_numbers = #tpu.dot_dimension_numbers<[1], [0], [0], [1], [0, 0, 1, 1], [], []>} : vector<16x16xf32>, vector<16x8xf32>, vector<16x8xf32> -> vector<16x8xf32>
    %66 = vector.extract_strided_slice %17 {offsets = [0, 24], sizes = [16, 8], strides = [1, 1]} : vector<16x96xf32> to vector<16x8xf32>
    %67 = vector.extract_strided_slice %17 {offsets = [0, 56], sizes = [16, 8], strides = [1, 1]} : vector<16x96xf32> to vector<16x8xf32>
    %68 = vector.extract_strided_slice %17 {offsets = [0, 88], sizes = [16, 8], strides = [1, 1]} : vector<16x96xf32> to vector<16x8xf32>
    %cst_20 = arith.constant dense<0.000000e+00> : vector<16x16xf32>
    %69 = tpu.matmul %66, %67, %cst_20 {dimension_numbers = #tpu.dot_dimension_numbers<[1], [1], [0], [0], [0, 0, 1, 0], [], []>} : vector<16x8xf32>, vector<16x8xf32>, vector<16x16xf32> -> vector<16x16xf32>
    %70 = arith.addf %69, %6 : vector<16x16xf32>
    %cst_21 = arith.constant dense<0xFF800000> : vector<16xf32>
    %71 = vector.multi_reduction <maximumf>, %70, %cst_21 [1] : vector<16x16xf32> to vector<16xf32>
    %72 = vector.shape_cast %71 : vector<16xf32> to vector<16x1xf32>
    %73 = vector.broadcast %72 : vector<16x1xf32> to vector<16x16xf32>
    %74 = arith.subf %70, %73 : vector<16x16xf32>
    %75 = math.exp %74 : vector<16x16xf32>
    %cst_22 = arith.constant dense<0.000000e+00> : vector<16xf32>
    %76 = vector.multi_reduction <add>, %75, %cst_22 [1] : vector<16x16xf32> to vector<16xf32>
    %77 = vector.shape_cast %76 : vector<16xf32> to vector<16x1xf32>
    %78 = tpu.reciprocal %77 {approx = true} : vector<16x1xf32> -> vector<16x1xf32>
    %79 = vector.broadcast %78 : vector<16x1xf32> to vector<16x16xf32>
    %80 = arith.mulf %75, %79 : vector<16x16xf32>
    %cst_23 = arith.constant dense<0.000000e+00> : vector<16x8xf32>
    %81 = tpu.matmul %80, %68, %cst_23 {dimension_numbers = #tpu.dot_dimension_numbers<[1], [0], [0], [1], [0, 0, 1, 1], [], []>} : vector<16x16xf32>, vector<16x8xf32>, vector<16x8xf32> -> vector<16x8xf32>
    %82 = tpu.concatenate %33, %49, %65, %81 in 1 : vector<16x8xf32>, vector<16x8xf32>, vector<16x8xf32>, vector<16x8xf32> -> vector<16x32xf32>
    %cst_24 = arith.constant dense<0.000000e+00> : vector<16x32xf32>
    %83 = tpu.matmul %82, %2, %cst_24 {dimension_numbers = #tpu.dot_dimension_numbers<[1], [0], [0], [1], [0, 0, 1, 1], [], []>} : vector<16x32xf32>, vector<32x32xf32>, vector<16x32xf32> -> vector<16x32xf32>
    %84 = vector.broadcast %8 : vector<1x32xf32> to vector<16x32xf32>
    %85 = arith.addf %83, %84 : vector<16x32xf32>
    %86 = arith.addf %0, %85 : vector<16x32xf32>
    %cst_25 = arith.constant dense<0.000000e+00> : vector<16xf32>
    %87 = vector.multi_reduction <add>, %86, %cst_25 [1] : vector<16x32xf32> to vector<16xf32>
    %88 = vector.shape_cast %87 : vector<16xf32> to vector<16x1xf32>
    %cst_26 = arith.constant 3.200000e+01 : f32
    %89 = vector.broadcast %cst_26 : f32 to vector<16x1xf32>
    %90 = arith.divf %88, %89 : vector<16x1xf32>
    %91 = vector.broadcast %90 : vector<16x1xf32> to vector<16x32xf32>
    %92 = arith.subf %86, %91 : vector<16x32xf32>
    %93 = arith.mulf %92, %92 : vector<16x32xf32>
    %cst_27 = arith.constant dense<0.000000e+00> : vector<16xf32>
    %94 = vector.multi_reduction <add>, %93, %cst_27 [1] : vector<16x32xf32> to vector<16xf32>
    %95 = vector.shape_cast %94 : vector<16xf32> to vector<16x1xf32>
    %cst_28 = arith.constant 3.200000e+01 : f32
    %96 = vector.broadcast %cst_28 : f32 to vector<16x1xf32>
    %97 = arith.divf %95, %96 : vector<16x1xf32>
    %98 = vector.broadcast %90 : vector<16x1xf32> to vector<16x32xf32>
    %99 = arith.subf %86, %98 : vector<16x32xf32>
    %cst_29 = arith.constant 9.99999974E-6 : f32
    %100 = vector.broadcast %cst_29 : f32 to vector<16x1xf32>
    %101 = arith.addf %97, %100 : vector<16x1xf32>
    %102 = math.rsqrt %101 : vector<16x1xf32>
    %103 = vector.broadcast %102 : vector<16x1xf32> to vector<16x32xf32>
    %104 = arith.mulf %99, %103 : vector<16x32xf32>
    %105 = vector.broadcast %9 : vector<1x32xf32> to vector<16x32xf32>
    %106 = arith.mulf %104, %105 : vector<16x32xf32>
    %107 = vector.broadcast %10 : vector<1x32xf32> to vector<16x32xf32>
    %108 = arith.addf %106, %107 : vector<16x32xf32>
    %cst_30 = arith.constant dense<0.000000e+00> : vector<16x64xf32>
    %109 = tpu.matmul %108, %3, %cst_30 {dimension_numbers = #tpu.dot_dimension_numbers<[1], [0], [0], [1], [0, 0, 1, 1], [], []>} : vector<16x32xf32>, vector<32x64xf32>, vector<16x64xf32> -> vector<16x64xf32>
    %110 = vector.broadcast %11 : vector<1x64xf32> to vector<16x64xf32>
    %111 = arith.addf %109, %110 : vector<16x64xf32>
    %cst_31 = arith.constant 0.000000e+00 : f32
    %112 = vector.broadcast %cst_31 : f32 to vector<16x64xf32>
    %113 = arith.maximumf %111, %112 : vector<16x64xf32>
    %cst_32 = arith.constant dense<0.000000e+00> : vector<16x32xf32>
    %114 = tpu.matmul %113, %4, %cst_32 {dimension_numbers = #tpu.dot_dimension_numbers<[1], [0], [0], [1], [0, 0, 1, 1], [], []>} : vector<16x64xf32>, vector<64x32xf32>, vector<16x32xf32> -> vector<16x32xf32>
    %115 = vector.broadcast %12 : vector<1x32xf32> to vector<16x32xf32>
    %116 = arith.addf %114, %115 : vector<16x32xf32>
    %117 = arith.addf %108, %116 : vector<16x32xf32>
    %cst_33 = arith.constant dense<0.000000e+00> : vector<16xf32>
    %118 = vector.multi_reduction <add>, %117, %cst_33 [1] : vector<16x32xf32> to vector<16xf32>
    %119 = vector.shape_cast %118 : vector<16xf32> to vector<16x1xf32>
    %cst_34 = arith.constant 3.200000e+01 : f32
    %120 = vector.broadcast %cst_34 : f32 to vector<16x1xf32>
    %121 = arith.divf %119, %120 : vector<16x1xf32>
    %122 = vector.broadcast %121 : vector<16x1xf32> to vector<16x32xf32>
    %123 = arith.subf %117, %122 : vector<16x32xf32>
    %124 = arith.mulf %123, %123 : vector<16x32xf32>
    %cst_35 = arith.constant dense<0.000000e+00> : vector<16xf32>
    %125 = vector.multi_reduction <add>, %124, %cst_35 [1] : vector<16x32xf32> to vector<16xf32>
    %126 = vector.shape_cast %125 : vector<16xf32> to vector<16x1xf32>
    %cst_36 = arith.constant 3.200000e+01 : f32
    %127 = vector.broadcast %cst_36 : f32 to vector<16x1xf32>
    %128 = arith.divf %126, %127 : vector<16x1xf32>
    %129 = vector.broadcast %121 : vector<16x1xf32> to vector<16x32xf32>
    %130 = arith.subf %117, %129 : vector<16x32xf32>
    %cst_37 = arith.constant 9.99999974E-6 : f32
    %131 = vector.broadcast %cst_37 : f32 to vector<16x1xf32>
    %132 = arith.addf %128, %131 : vector<16x1xf32>
    %133 = math.rsqrt %132 : vector<16x1xf32>
    %134 = vector.broadcast %133 : vector<16x1xf32> to vector<16x32xf32>
    %135 = arith.mulf %130, %134 : vector<16x32xf32>
    %136 = vector.broadcast %13 : vector<1x32xf32> to vector<16x32xf32>
    %137 = arith.mulf %135, %136 : vector<16x32xf32>
    %138 = vector.broadcast %14 : vector<1x32xf32> to vector<16x32xf32>
    %139 = arith.addf %137, %138 : vector<16x32xf32>
    %c184 = arith.constant 184 : index
    %c0_38 = arith.constant 0 : index
    %140 = vector.load %arg1[%c184, %c0_38] : memref<576x128xf32, #tpu.memory_space<vmem>>, vector<32x96xf32>
    %c216 = arith.constant 216 : index
    %c0_39 = arith.constant 0 : index
    %141 = vector.load %arg1[%c216, %c0_39] : memref<576x128xf32, #tpu.memory_space<vmem>>, vector<8x128xf32>
    %142 = vector.extract_strided_slice %141 {offsets = [0, 0], sizes = [1, 32], strides = [1, 1]} : vector<8x128xf32> to vector<1x32xf32>
    %143 = vector.extract_strided_slice %141 {offsets = [1, 0], sizes = [1, 32], strides = [1, 1]} : vector<8x128xf32> to vector<1x32xf32>
    %144 = vector.extract_strided_slice %141 {offsets = [2, 0], sizes = [1, 32], strides = [1, 1]} : vector<8x128xf32> to vector<1x32xf32>
    %c224 = arith.constant 224 : index
    %c0_40 = arith.constant 0 : index
    %145 = vector.load %arg1[%c224, %c0_40] : memref<576x128xf32, #tpu.memory_space<vmem>>, vector<20x16xf32>
    %c248 = arith.constant 248 : index
    %c0_41 = arith.constant 0 : index
    %146 = vector.load %arg1[%c248, %c0_41] : memref<576x128xf32, #tpu.memory_space<vmem>>, vector<20x16xf32>
    %c272 = arith.constant 272 : index
    %c0_42 = arith.constant 0 : index
    %147 = vector.load %arg1[%c272, %c0_42] : memref<576x128xf32, #tpu.memory_space<vmem>>, vector<20x16xf32>
    %c296 = arith.constant 296 : index
    %c0_43 = arith.constant 0 : index
    %148 = vector.load %arg1[%c296, %c0_43] : memref<576x128xf32, #tpu.memory_space<vmem>>, vector<10x20xf32>
    %c312 = arith.constant 312 : index
    %c0_44 = arith.constant 0 : index
    %149 = vector.load %arg1[%c312, %c0_44] : memref<576x128xf32, #tpu.memory_space<vmem>>, vector<10x20xf32>
    %c328 = arith.constant 328 : index
    %c0_45 = arith.constant 0 : index
    %150 = vector.load %arg1[%c328, %c0_45] : memref<576x128xf32, #tpu.memory_space<vmem>>, vector<10x20xf32>
    %cst_46 = arith.constant dense<0.000000e+00> : vector<16x96xf32>
    %151 = tpu.matmul %139, %140, %cst_46 {dimension_numbers = #tpu.dot_dimension_numbers<[1], [0], [0], [1], [0, 0, 1, 1], [], []>} : vector<16x32xf32>, vector<32x96xf32>, vector<16x96xf32> -> vector<16x96xf32>
    %152 = vector.extract_strided_slice %151 {offsets = [0, 0], sizes = [16, 32], strides = [1, 1]} : vector<16x96xf32> to vector<16x32xf32>
    %cst_47 = arith.constant dense<0.000000e+00> : vector<20x32xf32>
    %153 = tpu.matmul %145, %152, %cst_47 {dimension_numbers = #tpu.dot_dimension_numbers<[1], [0], [0], [1], [0, 0, 1, 1], [], []>} : vector<20x16xf32>, vector<16x32xf32>, vector<20x32xf32> -> vector<20x32xf32>
    %154 = vector.extract_strided_slice %151 {offsets = [0, 32], sizes = [16, 32], strides = [1, 1]} : vector<16x96xf32> to vector<16x32xf32>
    %cst_48 = arith.constant dense<0.000000e+00> : vector<20x32xf32>
    %155 = tpu.matmul %146, %154, %cst_48 {dimension_numbers = #tpu.dot_dimension_numbers<[1], [0], [0], [1], [0, 0, 1, 1], [], []>} : vector<20x16xf32>, vector<16x32xf32>, vector<20x32xf32> -> vector<20x32xf32>
    %156 = arith.addf %153, %155 : vector<20x32xf32>
    %157 = vector.extract_strided_slice %151 {offsets = [0, 64], sizes = [16, 32], strides = [1, 1]} : vector<16x96xf32> to vector<16x32xf32>
    %cst_49 = arith.constant dense<0.000000e+00> : vector<20x32xf32>
    %158 = tpu.matmul %147, %157, %cst_49 {dimension_numbers = #tpu.dot_dimension_numbers<[1], [0], [0], [1], [0, 0, 1, 1], [], []>} : vector<20x16xf32>, vector<16x32xf32>, vector<20x32xf32> -> vector<20x32xf32>
    %159 = arith.addf %156, %158 : vector<20x32xf32>
    %160 = vector.broadcast %142 : vector<1x32xf32> to vector<20x32xf32>
    %161 = arith.addf %159, %160 : vector<20x32xf32>
    %162 = vector.broadcast %143 : vector<1x32xf32> to vector<20x32xf32>
    %163 = arith.mulf %161, %162 : vector<20x32xf32>
    %164 = vector.broadcast %144 : vector<1x32xf32> to vector<20x32xf32>
    %165 = arith.addf %163, %164 : vector<20x32xf32>
    %cst_50 = arith.constant 0.000000e+00 : f32
    %166 = vector.broadcast %cst_50 : f32 to vector<20x32xf32>
    %167 = arith.cmpf ogt, %165, %166 : vector<20x32xf32>
    %cst_51 = arith.constant 0.000000e+00 : f32
    %168 = vector.broadcast %cst_51 : f32 to vector<20x32xf32>
    %169 = arith.minimumf %165, %168 : vector<20x32xf32>
    %170 = math.exp %169 : vector<20x32xf32>
    %cst_52 = arith.constant 1.000000e+00 : f32
    %171 = vector.broadcast %cst_52 : f32 to vector<20x32xf32>
    %172 = arith.subf %170, %171 : vector<20x32xf32>
    %173 = arith.select %167, %165, %172 : vector<20x32xi1>, vector<20x32xf32>
    %cst_53 = arith.constant dense<0.000000e+00> : vector<10x32xf32>
    %174 = tpu.matmul %148, %173, %cst_53 {dimension_numbers = #tpu.dot_dimension_numbers<[1], [0], [0], [1], [0, 0, 1, 1], [], []>} : vector<10x20xf32>, vector<20x32xf32>, vector<10x32xf32> -> vector<10x32xf32>
    %cst_54 = arith.constant dense<0.000000e+00> : vector<10x32xf32>
    %175 = tpu.matmul %149, %173, %cst_54 {dimension_numbers = #tpu.dot_dimension_numbers<[1], [0], [0], [1], [0, 0, 1, 1], [], []>} : vector<10x20xf32>, vector<20x32xf32>, vector<10x32xf32> -> vector<10x32xf32>
    %176 = arith.maximumf %174, %175 : vector<10x32xf32>
    %cst_55 = arith.constant dense<0.000000e+00> : vector<10x32xf32>
    %177 = tpu.matmul %150, %173, %cst_55 {dimension_numbers = #tpu.dot_dimension_numbers<[1], [0], [0], [1], [0, 0, 1, 1], [], []>} : vector<10x20xf32>, vector<20x32xf32>, vector<10x32xf32> -> vector<10x32xf32>
    %178 = arith.maximumf %176, %177 : vector<10x32xf32>
    %c344 = arith.constant 344 : index
    %c0_56 = arith.constant 0 : index
    %179 = vector.load %arg1[%c344, %c0_56] : memref<576x128xf32, #tpu.memory_space<vmem>>, vector<32x96xf32>
    %c376 = arith.constant 376 : index
    %c0_57 = arith.constant 0 : index
    %180 = vector.load %arg1[%c376, %c0_57] : memref<576x128xf32, #tpu.memory_space<vmem>>, vector<32x32xf32>
    %c408 = arith.constant 408 : index
    %c0_58 = arith.constant 0 : index
    %181 = vector.load %arg1[%c408, %c0_58] : memref<576x128xf32, #tpu.memory_space<vmem>>, vector<32x64xf32>
    %c440 = arith.constant 440 : index
    %c0_59 = arith.constant 0 : index
    %182 = vector.load %arg1[%c440, %c0_59] : memref<576x128xf32, #tpu.memory_space<vmem>>, vector<64x32xf32>
    %c504 = arith.constant 504 : index
    %c0_60 = arith.constant 0 : index
    %183 = vector.load %arg1[%c504, %c0_60] : memref<576x128xf32, #tpu.memory_space<vmem>>, vector<8x128xf32>
    %c512 = arith.constant 512 : index
    %c0_61 = arith.constant 0 : index
    %184 = vector.load %arg1[%c512, %c0_61] : memref<576x128xf32, #tpu.memory_space<vmem>>, vector<10x10xf32>
    %185 = vector.extract_strided_slice %183 {offsets = [0, 0], sizes = [1, 96], strides = [1, 1]} : vector<8x128xf32> to vector<1x96xf32>
    %186 = vector.extract_strided_slice %183 {offsets = [1, 0], sizes = [1, 32], strides = [1, 1]} : vector<8x128xf32> to vector<1x32xf32>
    %187 = vector.extract_strided_slice %183 {offsets = [2, 0], sizes = [1, 32], strides = [1, 1]} : vector<8x128xf32> to vector<1x32xf32>
    %188 = vector.extract_strided_slice %183 {offsets = [3, 0], sizes = [1, 32], strides = [1, 1]} : vector<8x128xf32> to vector<1x32xf32>
    %189 = vector.extract_strided_slice %183 {offsets = [4, 0], sizes = [1, 64], strides = [1, 1]} : vector<8x128xf32> to vector<1x64xf32>
    %190 = vector.extract_strided_slice %183 {offsets = [5, 0], sizes = [1, 32], strides = [1, 1]} : vector<8x128xf32> to vector<1x32xf32>
    %191 = vector.extract_strided_slice %183 {offsets = [6, 0], sizes = [1, 32], strides = [1, 1]} : vector<8x128xf32> to vector<1x32xf32>
    %192 = vector.extract_strided_slice %183 {offsets = [7, 0], sizes = [1, 32], strides = [1, 1]} : vector<8x128xf32> to vector<1x32xf32>
    %cst_62 = arith.constant dense<0.000000e+00> : vector<10x96xf32>
    %193 = tpu.matmul %178, %179, %cst_62 {dimension_numbers = #tpu.dot_dimension_numbers<[1], [0], [0], [1], [0, 0, 1, 1], [], []>} : vector<10x32xf32>, vector<32x96xf32>, vector<10x96xf32> -> vector<10x96xf32>
    %194 = vector.broadcast %185 : vector<1x96xf32> to vector<10x96xf32>
    %195 = arith.addf %193, %194 : vector<10x96xf32>
    %196 = vector.extract_strided_slice %195 {offsets = [0, 0], sizes = [10, 8], strides = [1, 1]} : vector<10x96xf32> to vector<10x8xf32>
    %197 = vector.extract_strided_slice %195 {offsets = [0, 32], sizes = [10, 8], strides = [1, 1]} : vector<10x96xf32> to vector<10x8xf32>
    %198 = vector.extract_strided_slice %195 {offsets = [0, 64], sizes = [10, 8], strides = [1, 1]} : vector<10x96xf32> to vector<10x8xf32>
    %cst_63 = arith.constant dense<0.000000e+00> : vector<10x10xf32>
    %199 = tpu.matmul %196, %197, %cst_63 {dimension_numbers = #tpu.dot_dimension_numbers<[1], [1], [0], [0], [0, 0, 1, 0], [], []>} : vector<10x8xf32>, vector<10x8xf32>, vector<10x10xf32> -> vector<10x10xf32>
    %200 = arith.addf %199, %184 : vector<10x10xf32>
    %cst_64 = arith.constant dense<0xFF800000> : vector<10xf32>
    %201 = vector.multi_reduction <maximumf>, %200, %cst_64 [1] : vector<10x10xf32> to vector<10xf32>
    %202 = vector.shape_cast %201 : vector<10xf32> to vector<10x1xf32>
    %203 = vector.broadcast %202 : vector<10x1xf32> to vector<10x10xf32>
    %204 = arith.subf %200, %203 : vector<10x10xf32>
    %205 = math.exp %204 : vector<10x10xf32>
    %cst_65 = arith.constant dense<0.000000e+00> : vector<10xf32>
    %206 = vector.multi_reduction <add>, %205, %cst_65 [1] : vector<10x10xf32> to vector<10xf32>
    %207 = vector.shape_cast %206 : vector<10xf32> to vector<10x1xf32>
    %208 = tpu.reciprocal %207 {approx = true} : vector<10x1xf32> -> vector<10x1xf32>
    %209 = vector.broadcast %208 : vector<10x1xf32> to vector<10x10xf32>
    %210 = arith.mulf %205, %209 : vector<10x10xf32>
    %cst_66 = arith.constant dense<0.000000e+00> : vector<10x8xf32>
    %211 = tpu.matmul %210, %198, %cst_66 {dimension_numbers = #tpu.dot_dimension_numbers<[1], [0], [0], [1], [0, 0, 1, 1], [], []>} : vector<10x10xf32>, vector<10x8xf32>, vector<10x8xf32> -> vector<10x8xf32>
    %212 = vector.extract_strided_slice %195 {offsets = [0, 8], sizes = [10, 8], strides = [1, 1]} : vector<10x96xf32> to vector<10x8xf32>
    %213 = vector.extract_strided_slice %195 {offsets = [0, 40], sizes = [10, 8], strides = [1, 1]} : vector<10x96xf32> to vector<10x8xf32>
    %214 = vector.extract_strided_slice %195 {offsets = [0, 72], sizes = [10, 8], strides = [1, 1]} : vector<10x96xf32> to vector<10x8xf32>
    %cst_67 = arith.constant dense<0.000000e+00> : vector<10x10xf32>
    %215 = tpu.matmul %212, %213, %cst_67 {dimension_numbers = #tpu.dot_dimension_numbers<[1], [1], [0], [0], [0, 0, 1, 0], [], []>} : vector<10x8xf32>, vector<10x8xf32>, vector<10x10xf32> -> vector<10x10xf32>
    %216 = arith.addf %215, %184 : vector<10x10xf32>
    %cst_68 = arith.constant dense<0xFF800000> : vector<10xf32>
    %217 = vector.multi_reduction <maximumf>, %216, %cst_68 [1] : vector<10x10xf32> to vector<10xf32>
    %218 = vector.shape_cast %217 : vector<10xf32> to vector<10x1xf32>
    %219 = vector.broadcast %218 : vector<10x1xf32> to vector<10x10xf32>
    %220 = arith.subf %216, %219 : vector<10x10xf32>
    %221 = math.exp %220 : vector<10x10xf32>
    %cst_69 = arith.constant dense<0.000000e+00> : vector<10xf32>
    %222 = vector.multi_reduction <add>, %221, %cst_69 [1] : vector<10x10xf32> to vector<10xf32>
    %223 = vector.shape_cast %222 : vector<10xf32> to vector<10x1xf32>
    %224 = tpu.reciprocal %223 {approx = true} : vector<10x1xf32> -> vector<10x1xf32>
    %225 = vector.broadcast %224 : vector<10x1xf32> to vector<10x10xf32>
    %226 = arith.mulf %221, %225 : vector<10x10xf32>
    %cst_70 = arith.constant dense<0.000000e+00> : vector<10x8xf32>
    %227 = tpu.matmul %226, %214, %cst_70 {dimension_numbers = #tpu.dot_dimension_numbers<[1], [0], [0], [1], [0, 0, 1, 1], [], []>} : vector<10x10xf32>, vector<10x8xf32>, vector<10x8xf32> -> vector<10x8xf32>
    %228 = vector.extract_strided_slice %195 {offsets = [0, 16], sizes = [10, 8], strides = [1, 1]} : vector<10x96xf32> to vector<10x8xf32>
    %229 = vector.extract_strided_slice %195 {offsets = [0, 48], sizes = [10, 8], strides = [1, 1]} : vector<10x96xf32> to vector<10x8xf32>
    %230 = vector.extract_strided_slice %195 {offsets = [0, 80], sizes = [10, 8], strides = [1, 1]} : vector<10x96xf32> to vector<10x8xf32>
    %cst_71 = arith.constant dense<0.000000e+00> : vector<10x10xf32>
    %231 = tpu.matmul %228, %229, %cst_71 {dimension_numbers = #tpu.dot_dimension_numbers<[1], [1], [0], [0], [0, 0, 1, 0], [], []>} : vector<10x8xf32>, vector<10x8xf32>, vector<10x10xf32> -> vector<10x10xf32>
    %232 = arith.addf %231, %184 : vector<10x10xf32>
    %cst_72 = arith.constant dense<0xFF800000> : vector<10xf32>
    %233 = vector.multi_reduction <maximumf>, %232, %cst_72 [1] : vector<10x10xf32> to vector<10xf32>
    %234 = vector.shape_cast %233 : vector<10xf32> to vector<10x1xf32>
    %235 = vector.broadcast %234 : vector<10x1xf32> to vector<10x10xf32>
    %236 = arith.subf %232, %235 : vector<10x10xf32>
    %237 = math.exp %236 : vector<10x10xf32>
    %cst_73 = arith.constant dense<0.000000e+00> : vector<10xf32>
    %238 = vector.multi_reduction <add>, %237, %cst_73 [1] : vector<10x10xf32> to vector<10xf32>
    %239 = vector.shape_cast %238 : vector<10xf32> to vector<10x1xf32>
    %240 = tpu.reciprocal %239 {approx = true} : vector<10x1xf32> -> vector<10x1xf32>
    %241 = vector.broadcast %240 : vector<10x1xf32> to vector<10x10xf32>
    %242 = arith.mulf %237, %241 : vector<10x10xf32>
    %cst_74 = arith.constant dense<0.000000e+00> : vector<10x8xf32>
    %243 = tpu.matmul %242, %230, %cst_74 {dimension_numbers = #tpu.dot_dimension_numbers<[1], [0], [0], [1], [0, 0, 1, 1], [], []>} : vector<10x10xf32>, vector<10x8xf32>, vector<10x8xf32> -> vector<10x8xf32>
    %244 = vector.extract_strided_slice %195 {offsets = [0, 24], sizes = [10, 8], strides = [1, 1]} : vector<10x96xf32> to vector<10x8xf32>
    %245 = vector.extract_strided_slice %195 {offsets = [0, 56], sizes = [10, 8], strides = [1, 1]} : vector<10x96xf32> to vector<10x8xf32>
    %246 = vector.extract_strided_slice %195 {offsets = [0, 88], sizes = [10, 8], strides = [1, 1]} : vector<10x96xf32> to vector<10x8xf32>
    %cst_75 = arith.constant dense<0.000000e+00> : vector<10x10xf32>
    %247 = tpu.matmul %244, %245, %cst_75 {dimension_numbers = #tpu.dot_dimension_numbers<[1], [1], [0], [0], [0, 0, 1, 0], [], []>} : vector<10x8xf32>, vector<10x8xf32>, vector<10x10xf32> -> vector<10x10xf32>
    %248 = arith.addf %247, %184 : vector<10x10xf32>
    %cst_76 = arith.constant dense<0xFF800000> : vector<10xf32>
    %249 = vector.multi_reduction <maximumf>, %248, %cst_76 [1] : vector<10x10xf32> to vector<10xf32>
    %250 = vector.shape_cast %249 : vector<10xf32> to vector<10x1xf32>
    %251 = vector.broadcast %250 : vector<10x1xf32> to vector<10x10xf32>
    %252 = arith.subf %248, %251 : vector<10x10xf32>
    %253 = math.exp %252 : vector<10x10xf32>
    %cst_77 = arith.constant dense<0.000000e+00> : vector<10xf32>
    %254 = vector.multi_reduction <add>, %253, %cst_77 [1] : vector<10x10xf32> to vector<10xf32>
    %255 = vector.shape_cast %254 : vector<10xf32> to vector<10x1xf32>
    %256 = tpu.reciprocal %255 {approx = true} : vector<10x1xf32> -> vector<10x1xf32>
    %257 = vector.broadcast %256 : vector<10x1xf32> to vector<10x10xf32>
    %258 = arith.mulf %253, %257 : vector<10x10xf32>
    %cst_78 = arith.constant dense<0.000000e+00> : vector<10x8xf32>
    %259 = tpu.matmul %258, %246, %cst_78 {dimension_numbers = #tpu.dot_dimension_numbers<[1], [0], [0], [1], [0, 0, 1, 1], [], []>} : vector<10x10xf32>, vector<10x8xf32>, vector<10x8xf32> -> vector<10x8xf32>
    %260 = tpu.concatenate %211, %227, %243, %259 in 1 : vector<10x8xf32>, vector<10x8xf32>, vector<10x8xf32>, vector<10x8xf32> -> vector<10x32xf32>
    %cst_79 = arith.constant dense<0.000000e+00> : vector<10x32xf32>
    %261 = tpu.matmul %260, %180, %cst_79 {dimension_numbers = #tpu.dot_dimension_numbers<[1], [0], [0], [1], [0, 0, 1, 1], [], []>} : vector<10x32xf32>, vector<32x32xf32>, vector<10x32xf32> -> vector<10x32xf32>
    %262 = vector.broadcast %186 : vector<1x32xf32> to vector<10x32xf32>
    %263 = arith.addf %261, %262 : vector<10x32xf32>
    %264 = arith.addf %178, %263 : vector<10x32xf32>
    %cst_80 = arith.constant dense<0.000000e+00> : vector<10xf32>
    %265 = vector.multi_reduction <add>, %264, %cst_80 [1] : vector<10x32xf32> to vector<10xf32>
    %266 = vector.shape_cast %265 : vector<10xf32> to vector<10x1xf32>
    %cst_81 = arith.constant 3.200000e+01 : f32
    %267 = vector.broadcast %cst_81 : f32 to vector<10x1xf32>
    %268 = arith.divf %266, %267 : vector<10x1xf32>
    %269 = vector.broadcast %268 : vector<10x1xf32> to vector<10x32xf32>
    %270 = arith.subf %264, %269 : vector<10x32xf32>
    %271 = arith.mulf %270, %270 : vector<10x32xf32>
    %cst_82 = arith.constant dense<0.000000e+00> : vector<10xf32>
    %272 = vector.multi_reduction <add>, %271, %cst_82 [1] : vector<10x32xf32> to vector<10xf32>
    %273 = vector.shape_cast %272 : vector<10xf32> to vector<10x1xf32>
    %cst_83 = arith.constant 3.200000e+01 : f32
    %274 = vector.broadcast %cst_83 : f32 to vector<10x1xf32>
    %275 = arith.divf %273, %274 : vector<10x1xf32>
    %276 = vector.broadcast %268 : vector<10x1xf32> to vector<10x32xf32>
    %277 = arith.subf %264, %276 : vector<10x32xf32>
    %cst_84 = arith.constant 9.99999974E-6 : f32
    %278 = vector.broadcast %cst_84 : f32 to vector<10x1xf32>
    %279 = arith.addf %275, %278 : vector<10x1xf32>
    %280 = math.rsqrt %279 : vector<10x1xf32>
    %281 = vector.broadcast %280 : vector<10x1xf32> to vector<10x32xf32>
    %282 = arith.mulf %277, %281 : vector<10x32xf32>
    %283 = vector.broadcast %187 : vector<1x32xf32> to vector<10x32xf32>
    %284 = arith.mulf %282, %283 : vector<10x32xf32>
    %285 = vector.broadcast %188 : vector<1x32xf32> to vector<10x32xf32>
    %286 = arith.addf %284, %285 : vector<10x32xf32>
    %cst_85 = arith.constant dense<0.000000e+00> : vector<10x64xf32>
    %287 = tpu.matmul %286, %181, %cst_85 {dimension_numbers = #tpu.dot_dimension_numbers<[1], [0], [0], [1], [0, 0, 1, 1], [], []>} : vector<10x32xf32>, vector<32x64xf32>, vector<10x64xf32> -> vector<10x64xf32>
    %288 = vector.broadcast %189 : vector<1x64xf32> to vector<10x64xf32>
    %289 = arith.addf %287, %288 : vector<10x64xf32>
    %cst_86 = arith.constant 0.000000e+00 : f32
    %290 = vector.broadcast %cst_86 : f32 to vector<10x64xf32>
    %291 = arith.maximumf %289, %290 : vector<10x64xf32>
    %cst_87 = arith.constant dense<0.000000e+00> : vector<10x32xf32>
    %292 = tpu.matmul %291, %182, %cst_87 {dimension_numbers = #tpu.dot_dimension_numbers<[1], [0], [0], [1], [0, 0, 1, 1], [], []>} : vector<10x64xf32>, vector<64x32xf32>, vector<10x32xf32> -> vector<10x32xf32>
    %293 = vector.broadcast %190 : vector<1x32xf32> to vector<10x32xf32>
    %294 = arith.addf %292, %293 : vector<10x32xf32>
    %295 = arith.addf %286, %294 : vector<10x32xf32>
    %cst_88 = arith.constant dense<0.000000e+00> : vector<10xf32>
    %296 = vector.multi_reduction <add>, %295, %cst_88 [1] : vector<10x32xf32> to vector<10xf32>
    %297 = vector.shape_cast %296 : vector<10xf32> to vector<10x1xf32>
    %cst_89 = arith.constant 3.200000e+01 : f32
    %298 = vector.broadcast %cst_89 : f32 to vector<10x1xf32>
    %299 = arith.divf %297, %298 : vector<10x1xf32>
    %300 = vector.broadcast %299 : vector<10x1xf32> to vector<10x32xf32>
    %301 = arith.subf %295, %300 : vector<10x32xf32>
    %302 = arith.mulf %301, %301 : vector<10x32xf32>
    %cst_90 = arith.constant dense<0.000000e+00> : vector<10xf32>
    %303 = vector.multi_reduction <add>, %302, %cst_90 [1] : vector<10x32xf32> to vector<10xf32>
    %304 = vector.shape_cast %303 : vector<10xf32> to vector<10x1xf32>
    %cst_91 = arith.constant 3.200000e+01 : f32
    %305 = vector.broadcast %cst_91 : f32 to vector<10x1xf32>
    %306 = arith.divf %304, %305 : vector<10x1xf32>
    %307 = vector.broadcast %299 : vector<10x1xf32> to vector<10x32xf32>
    %308 = arith.subf %295, %307 : vector<10x32xf32>
    %cst_92 = arith.constant 9.99999974E-6 : f32
    %309 = vector.broadcast %cst_92 : f32 to vector<10x1xf32>
    %310 = arith.addf %306, %309 : vector<10x1xf32>
    %311 = math.rsqrt %310 : vector<10x1xf32>
    %312 = vector.broadcast %311 : vector<10x1xf32> to vector<10x32xf32>
    %313 = arith.mulf %308, %312 : vector<10x32xf32>
    %314 = vector.broadcast %191 : vector<1x32xf32> to vector<10x32xf32>
    %315 = arith.mulf %313, %314 : vector<10x32xf32>
    %316 = vector.broadcast %192 : vector<1x32xf32> to vector<10x32xf32>
    %317 = arith.addf %315, %316 : vector<10x32xf32>
    %c528 = arith.constant 528 : index
    %c0_93 = arith.constant 0 : index
    %318 = vector.load %arg1[%c528, %c0_93] : memref<576x128xf32, #tpu.memory_space<vmem>>, vector<8x128xf32>
    %319 = vector.extract_strided_slice %318 {offsets = [0, 0], sizes = [1, 32], strides = [1, 1]} : vector<8x128xf32> to vector<1x32xf32>
    %320 = vector.extract_strided_slice %318 {offsets = [1, 0], sizes = [1, 32], strides = [1, 1]} : vector<8x128xf32> to vector<1x32xf32>
    %321 = vector.extract_strided_slice %318 {offsets = [2, 0], sizes = [1, 5], strides = [1, 1]} : vector<8x128xf32> to vector<1x5xf32>
    %c536 = arith.constant 536 : index
    %c0_94 = arith.constant 0 : index
    %322 = vector.load %arg1[%c536, %c0_94] : memref<576x128xf32, #tpu.memory_space<vmem>>, vector<2x10xf32>
    %c544 = arith.constant 544 : index
    %c0_95 = arith.constant 0 : index
    %323 = vector.load %arg1[%c544, %c0_95] : memref<576x128xf32, #tpu.memory_space<vmem>>, vector<32x5xf32>
    %cst_96 = arith.constant dense<0.000000e+00> : vector<10xf32>
    %324 = vector.multi_reduction <add>, %317, %cst_96 [1] : vector<10x32xf32> to vector<10xf32>
    %325 = vector.shape_cast %324 : vector<10xf32> to vector<10x1xf32>
    %cst_97 = arith.constant 3.200000e+01 : f32
    %326 = vector.broadcast %cst_97 : f32 to vector<10x1xf32>
    %327 = arith.divf %325, %326 : vector<10x1xf32>
    %328 = vector.broadcast %327 : vector<10x1xf32> to vector<10x32xf32>
    %329 = arith.subf %317, %328 : vector<10x32xf32>
    %330 = arith.mulf %329, %329 : vector<10x32xf32>
    %cst_98 = arith.constant dense<0.000000e+00> : vector<10xf32>
    %331 = vector.multi_reduction <add>, %330, %cst_98 [1] : vector<10x32xf32> to vector<10xf32>
    %332 = vector.shape_cast %331 : vector<10xf32> to vector<10x1xf32>
    %cst_99 = arith.constant 3.200000e+01 : f32
    %333 = vector.broadcast %cst_99 : f32 to vector<10x1xf32>
    %334 = arith.divf %332, %333 : vector<10x1xf32>
    %335 = vector.broadcast %327 : vector<10x1xf32> to vector<10x32xf32>
    %336 = arith.subf %317, %335 : vector<10x32xf32>
    %cst_100 = arith.constant 9.99999974E-6 : f32
    %337 = vector.broadcast %cst_100 : f32 to vector<10x1xf32>
    %338 = arith.addf %334, %337 : vector<10x1xf32>
    %339 = math.rsqrt %338 : vector<10x1xf32>
    %340 = vector.broadcast %339 : vector<10x1xf32> to vector<10x32xf32>
    %341 = arith.mulf %336, %340 : vector<10x32xf32>
    %342 = vector.broadcast %319 : vector<1x32xf32> to vector<10x32xf32>
    %343 = arith.mulf %341, %342 : vector<10x32xf32>
    %344 = vector.broadcast %320 : vector<1x32xf32> to vector<10x32xf32>
    %345 = arith.addf %343, %344 : vector<10x32xf32>
    %cst_101 = arith.constant dense<0.000000e+00> : vector<2x32xf32>
    %346 = tpu.matmul %322, %345, %cst_101 {dimension_numbers = #tpu.dot_dimension_numbers<[1], [0], [0], [1], [0, 0, 1, 1], [], []>} : vector<2x10xf32>, vector<10x32xf32>, vector<2x32xf32> -> vector<2x32xf32>
    %cst_102 = arith.constant dense<0.000000e+00> : vector<2x5xf32>
    %347 = tpu.matmul %346, %323, %cst_102 {dimension_numbers = #tpu.dot_dimension_numbers<[1], [0], [0], [1], [0, 0, 1, 1], [], []>} : vector<2x32xf32>, vector<32x5xf32>, vector<2x5xf32> -> vector<2x5xf32>
    %348 = vector.broadcast %321 : vector<1x5xf32> to vector<2x5xf32>
    %349 = arith.addf %347, %348 : vector<2x5xf32>
    %c0_103 = arith.constant 0 : index
    %c0_104 = arith.constant 0 : index
    %350 = vector.load %arg2[%c0_103, %c0_104] : memref<2x5xf32, #tpu.memory_space<vmem>>, vector<2x5xf32>
    tpu.vector_store %arg2[%c0_103, %c0_104], %349 {strides = array<i32>} : memref<2x5xf32, #tpu.memory_space<vmem>>, vector<2x5xf32>,
    return
  }
}

</mosaic_0001>

<llo_original>
// kernel: fwd.1
$region0: #{fwd.1}
  #allocation0 [shape = 'u32[]', space=smem, size = 0x4, offset = 0x4, fixed_abs, tag = 'smem constant byte address 0x4 - core index']
  #allocation1 [shape = 'u32[144,128]{1,0:T(1,128)}', space=vmem, size = 0x12000, scoped, tag = 'internal scratch']
  %s0 = inlined_call_operand.hbm [shape: f32[16,32], index: 0, kind: input, shape index: {}]
  %s1 = inlined_call_operand.hbm [shape: f32[576,128], index: 1, kind: input, shape index: {}]
  %s2 = inlined_call_operand.hbm [shape: f32[2,5], index: 2, kind: output, shape index: {}]
  %s3 = sld [smem:[#allocation0]]
  $region26: #{fwd.1} parent=0
    _
  %s5 = ssub.s32 1, %s3
  %s6 = scalar_select 0, %s5, %s3
  $region1: #{fwd.1} parent=0
    #allocation2 [shape = 'u8[8192]{0}', space=vmem, size = 0x2000, scoped, tag = 'input window, operand 0, single buffered']
    #allocation3 [shape = 's32[1]{0}', space=sflag, size = 0x4, scoped, tag = 'scoped memory for fwd.1']
    #allocation4 [shape = 's32[1]{0}', space=sflag, size = 0x4, scoped, tag = 'scoped memory for fwd.1']
    #allocation5 [shape = 'u8[294912]{0}', space=vmem, size = 0x48000, scoped, tag = 'input window, operand 1, single buffered']
    #allocation6 [shape = 's32[1]{0}', space=sflag, size = 0x4, scoped, tag = 'scoped memory for fwd.1']
    #allocation7 [shape = 'u8[1024]{0}', space=vmem, size = 0x400, scoped, tag = 'output window, operand 0, single buffered']
    %7 = vsyncpa [#allocation3], 0
    %8 = vsyncpa [#allocation6], 0
    %9 = vsyncpa [#allocation4], 0
    // Predicated region
    $region2: #{fwd.1} parent=1 // pred_check
      _
    $region3: #{fwd.1} parent=1 // pred_check_branch
      %11 = sbr.rel (0) target = $region5
    $region4: #{fwd.1} parent=1 // pred_region
      %s13 = ssub.s32 256, 256
      %14 = vsyncadd [#allocation3], %s13
      %s15 = sshll.u32 [#allocation2], 4
      %s16 = int_to_ptr.vmem [resolvable:$true] %s15
      %21 = dma.hbm_to_vmem [thread:$0]  %s0, 256, %s16, [#allocation3], 128, 128, 8
    $region5: #{fwd.1} parent=1 // pred_fallthru
      _
    // Predicated region
    $region6: #{fwd.1} parent=1 // pred_check
      _
    $region7: #{fwd.1} parent=1 // pred_check_branch
      %23 = sbr.rel (0) target = $region9
    $region8: #{fwd.1} parent=1 // pred_region
      %s25 = ssub.s32 9216, 9216
      %26 = vsyncadd [#allocation6], %s25
      %s27 = sshll.u32 [#allocation5], 4
      %s28 = int_to_ptr.vmem [resolvable:$true] %s27
      %33 = dma.hbm_to_vmem [thread:$0]  %s1, 9216, %s28, [#allocation6], 128, 128, 8
    $region9: #{fwd.1} parent=1 // pred_fallthru
      _
    // Predicated region
    $region10: #{fwd.1} parent=1 // pred_check
      _
    $region11: #{fwd.1} parent=1 // pred_check_branch
      %35 = sbr.rel (0) target = $region13
    $region12: #{fwd.1} parent=1 // pred_region
      %36 = dma.done [#allocation3], 256
    $region13: #{fwd.1} parent=1 // pred_fallthru
      _
    // Predicated region
    $region14: #{fwd.1} parent=1 // pred_check
      _
    $region15: #{fwd.1} parent=1 // pred_check_branch
      %38 = sbr.rel (0) target = $region17
    $region16: #{fwd.1} parent=1 // pred_region
      %39 = dma.done [#allocation6], 9216
    $region17: #{fwd.1} parent=1 // pred_fallthru
      _
    %v40 = vld [vmem:[#allocation2] sm:$0xff]
    %v41 = vld [vmem:[#allocation2 + $0x8] sm:$0xff]
    %v42 = vld [vmem:[#allocation5] sm:$0xff]
    %v43 = vld [vmem:[#allocation5 + $0x8] sm:$0xff]
    %v44 = vld [vmem:[#allocation5 + $0x10] sm:$0xff]
    %v45 = vld [vmem:[#allocation5 + $0x18] sm:$0xff]
    %v46 = vld [vmem:[#allocation5 + $0x20] sm:$0xff]
    %v47 = vld [vmem:[#allocation5 + $0x28] sm:$0xff]
    %v48 = vld [vmem:[#allocation5 + $0x30] sm:$0xff]
    %v49 = vld [vmem:[#allocation5 + $0x38] sm:$0xff]
    %v50 = vld [vmem:[#allocation5 + $0x40] sm:$0xff]
    %v51 = vld [vmem:[#allocation5 + $0x48] sm:$0xff]
    %v52 = vld [vmem:[#allocation5 + $0x50] sm:$0xff]
    %v53 = vld [vmem:[#allocation5 + $0x58] sm:$0xff]
    %v54 = vld [vmem:[#allocation5 + $0x60] sm:$0xff]
    %v55 = vld [vmem:[#allocation5 + $0x68] sm:$0xff]
    %v56 = vld [vmem:[#allocation5 + $0x70] sm:$0xff]
    %v57 = vld [vmem:[#allocation5 + $0x78] sm:$0xff]
    %v58 = vld [vmem:[#allocation5 + $0x80] sm:$0xff]
    %v59 = vld [vmem:[#allocation5 + $0x88] sm:$0xff]
    %v60 = vld [vmem:[#allocation5 + $0x90] sm:$0xff]
    %v61 = vld [vmem:[#allocation5 + $0x98] sm:$0xff]
    %v62 = vld [vmem:[#allocation5 + $0xa0] sm:$0xff]
    %v63 = vld [vmem:[#allocation5 + $0xa8] sm:$0xff]
    %v64 = vld [vmem:[#allocation5 + $0xb0] sm:$0xff]
    %v65 = vlaneseq
    %v66 = vshrl.u32 %v65, 7
    %v67 = vsub.s32 0, %v66
    %v68 = vrot.slane %v62, %v67
    %vm69 = vcmask 261120
    %v71 = vsel %vm69, %v40, 0
    %v74 = vsel %vm69, %v41, 0
    %76 = vmatprep.subr.mxu0 0.0
    %77 = vmatpush1.msra.mxu0 %v42
    %78 = vmatprep.subr.mxu0 0.0
    %79 = vmatpush1.msra.mxu0 %v43
    %80 = vmatprep.subr.mxu0 0.0
    %81 = vmatpush1.msra.mxu0 %v44
    %82 = vmatprep.subr.mxu0 0.0
    %83 = vmatpush1.msra.mxu0 %v45
    %84 = vmatprep.subr.mxu0 0.0
    %85 = vmatpush1.msra.mxu0 0.0
    %86 = vmatprep.subr.mxu0 0.0
    %87 = vmatpush1.msra.mxu0 0.0
    %88 = vmatprep.subr.mxu0 0.0
    %89 = vmatpush1.msra.mxu0 0.0
    %90 = vmatprep.subr.mxu0 0.0
    %91 = vmatpush1.msra.mxu0 0.0
    %92 = vmatprep.subr.mxu0 0.0
    %93 = vmatpush1.msra.mxu0 0.0
    %94 = vmatprep.subr.mxu0 0.0
    %95 = vmatpush1.msra.mxu0 0.0
    %96 = vmatprep.subr.mxu0 0.0
    %97 = vmatpush1.msra.mxu0 0.0
    %98 = vmatprep.subr.mxu0 0.0
    %99 = vmatpush1.msra.mxu0 0.0
    %100 = vmatprep.subr.mxu0 0.0
    %101 = vmatpush1.msra.mxu0 0.0
    %102 = vmatprep.subr.mxu0 0.0
    %103 = vmatpush1.msra.mxu0 0.0
    %104 = vmatprep.subr.mxu0 0.0
    %105 = vmatpush1.msra.mxu0 0.0
    %106 = vmatprep.subr.mxu0 0.0
    %107 = vmatpush1.msra.mxu0 0.0
    %108 = vmatprep.subr.mxu0 0.0
    %109 = vmatpush1.msra.mxu0 0.0
    %110 = vmatprep.subr.mxu0 0.0
    %111 = vmatpush1.msra.mxu0 0.0
    %112 = vmatprep.subr.mxu0 0.0
    %113 = vmatpush1.msra.mxu0 0.0
    %114 = vmatprep.subr.mxu0 0.0
    %115 = vmatpush1.msra.mxu0 0.0
    %116 = vmatprep.subr.mxu0 0.0
    %117 = vmatpush1.msra.mxu0 0.0
    %118 = vmatprep.subr.mxu0 0.0
    %119 = vmatpush1.msra.mxu0 0.0
    %120 = vmatprep.subr.mxu0 0.0
    %121 = vmatpush1.msra.mxu0 0.0
    %122 = vmatprep.subr.mxu0 0.0
    %123 = vmatpush1.msra.mxu0 0.0
    %124 = vmatprep.subr.mxu0 0.0
    %125 = vmatpush1.msra.mxu0 0.0
    %126 = vmatprep.subr.mxu0 0.0
    %127 = vmatpush1.msra.mxu0 0.0
    %128 = vmatprep.subr.mxu0 0.0
    %129 = vmatpush1.msra.mxu0 0.0
    %130 = vmatprep.subr.mxu0 0.0
    %131 = vmatpush1.msra.mxu0 0.0
    %132 = vmatprep.subr.mxu0 0.0
    %133 = vmatpush1.msra.mxu0 0.0
    %134 = vmatprep.subr.mxu0 0.0
    %135 = vmatpush1.msra.mxu0 0.0
    %136 = vmatprep.subr.mxu0 0.0
    %137 = vmatpush1.msra.mxu0 0.0
    %138 = vmatprep.subr.mxu0 0.0
    %139 = vmatpush1.msra.mxu0 0.0
    %140 = vmatprep.mubr.f32.mxu0 0.0
    %141 = vmatmul.mubr.f32.gmra.mrb[0].mxu0 %v71
    %v142 = vpop.f32.mrb[0].mxu0
    %v143 = vadd.f32 %v68, %v142
    %v144 = vpop.f32.mrb[0].mxu0
    %145 = vmatprep.mubr.f32.mxu0 0.0
    %146 = vmatmul.mubr.f32.gmra.mrb[0].mxu0 %v74
    %v147 = vpop.f32.mrb[0].mxu0
    %v148 = vadd.f32 %v68, %v147
    %v149 = vpop.f32.mrb[0].mxu0
    %150 = vdwg.mxu0
    %153 = vrot.lane.b32.xlu0 %v143, 96
    %v154 = vpop.permute.xlu0 %153
    %155 = vrot.lane.b32.xlu0 %v148, 96
    %v156 = vpop.permute.xlu0 %155
    %vm157 = vcmask 64512
    %v158 = vsel %vm157, %v143, 0
    %v160 = vsel %vm157, %v148, 0
    %v162 = vsel %vm157, %v154, 0
    %v164 = vsel %vm157, %v156, 0
    %166 = vmatprep.subr.mxu0 0.0
    %167 = vmatpush1.xpose.msra.mxu0 %v162
    %168 = vmatprep.subr.mxu0 0.0
    %169 = vmatpush1.xpose.msra.mxu0 %v164
    %170 = vmatprep.subr.mxu0 0.0
    %171 = vmatpush1.xpose.msra.mxu0 0.0
    %172 = vmatprep.subr.mxu0 0.0
    %173 = vmatpush1.xpose.msra.mxu0 0.0
    %174 = vmatprep.subr.mxu0 0.0
    %175 = vmatpush1.xpose.msra.mxu0 0.0
    %176 = vmatprep.subr.mxu0 0.0
    %177 = vmatpush1.xpose.msra.mxu0 0.0
    %178 = vmatprep.subr.mxu0 0.0
    %179 = vmatpush1.xpose.msra.mxu0 0.0
    %180 = vmatprep.subr.mxu0 0.0
    %181 = vmatpush1.xpose.msra.mxu0 0.0
    %182 = vmatprep.subr.mxu0 0.0
    %183 = vmatpush1.xpose.msra.mxu0 0.0
    %184 = vmatprep.subr.mxu0 0.0
    %185 = vmatpush1.xpose.msra.mxu0 0.0
    %186 = vmatprep.subr.mxu0 0.0
    %187 = vmatpush1.xpose.msra.mxu0 0.0
    %188 = vmatprep.subr.mxu0 0.0
    %189 = vmatpush1.xpose.msra.mxu0 0.0
    %190 = vmatprep.subr.mxu0 0.0
    %191 = vmatpush1.xpose.msra.mxu0 0.0
    %192 = vmatprep.subr.mxu0 0.0
    %193 = vmatpush1.xpose.msra.mxu0 0.0
    %194 = vmatprep.subr.mxu0 0.0
    %195 = vmatpush1.xpose.msra.mxu0 0.0
    %196 = vmatprep.subr.mxu0 0.0
    %197 = vmatpush1.xpose.msra.mxu0 0.0
    %198 = vmatprep.subr.mxu0 0.0
    %199 = vmatpush1.xpose.msra.mxu0 0.0
    %200 = vmatprep.subr.mxu0 0.0
    %201 = vmatpush1.xpose.msra.mxu0 0.0
    %202 = vmatprep.subr.mxu0 0.0
    %203 = vmatpush1.xpose.msra.mxu0 0.0
    %204 = vmatprep.subr.mxu0 0.0
    %205 = vmatpush1.xpose.msra.mxu0 0.0
    %206 = vmatprep.subr.mxu0 0.0
    %207 = vmatpush1.xpose.msra.mxu0 0.0
    %208 = vmatprep.subr.mxu0 0.0
    %209 = vmatpush1.xpose.msra.mxu0 0.0
    %210 = vmatprep.subr.mxu0 0.0
    %211 = vmatpush1.xpose.msra.mxu0 0.0
    %212 = vmatprep.subr.mxu0 0.0
    %213 = vmatpush1.xpose.msra.mxu0 0.0
    %214 = vmatprep.subr.mxu0 0.0
    %215 = vmatpush1.xpose.msra.mxu0 0.0
    %216 = vmatprep.subr.mxu0 0.0
    %217 = vmatpush1.xpose.msra.mxu0 0.0
    %218 = vmatprep.subr.mxu0 0.0
    %219 = vmatpush1.xpose.msra.mxu0 0.0
    %220 = vmatprep.subr.mxu0 0.0
    %221 = vmatpush1.xpose.msra.mxu0 0.0
    %222 = vmatprep.subr.mxu0 0.0
    %223 = vmatpush1.xpose.msra.mxu0 0.0
    %224 = vmatprep.subr.mxu0 0.0
    %225 = vmatpush1.xpose.msra.mxu0 0.0
    %226 = vmatprep.subr.mxu0 0.0
    %227 = vmatpush1.xpose.msra.mxu0 0.0
    %228 = vmatprep.subr.mxu0 0.0
    %229 = vmatpush1.xpose.msra.mxu0 0.0
    %230 = vmatprep.mubr.f32.mxu0 0.0
    %231 = vmatmul.mubr.f32.gmra.mrb[0].mxu0 %v158
    %v232 = vpop.f32.mrb[0].mxu0
    %v233 = vadd.f32 %v63, %v232
    %v234 = vpop.f32.mrb[0].mxu0
    %235 = vmatprep.mubr.f32.mxu0 0.0
    %236 = vmatmul.mubr.f32.gmra.mrb[0].mxu0 %v160
    %v237 = vpop.f32.mrb[0].mxu0
    %v238 = vadd.f32 %v64, %v237
    %v239 = vpop.f32.mrb[0].mxu0
    %240 = vdwg.mxu0
    %vm241 = vcmask 130048
    %v242 = vsel %vm241, %v233, -inf
    %243 = vmax.xlane.f32.xlu0 %v242
    %v244 = vpop.xlane.xlu0 %243
    %v245 = vsel %vm241, %v238, -inf
    %246 = vmax.xlane.f32.xlu0 %v245
    %v247 = vpop.xlane.xlu0 %246
    %v248 = vsub.f32 %v233, %v244
    %v249 = vsub.f32 %v238, %v247
    %v250 = vmul.f32 %v248, 1.442695
    %v251 = vpow.pop %v250
    %v252 = vmul.f32 %v249, 1.442695
    %v253 = vpow.pop %v252
    %v254 = vsel %vm241, %v251, 0.0
    %255 = vadd.xlane.f32.xlu0 %v254
    %v256 = vpop.xlane.xlu0 %255
    %v257 = vsel %vm241, %v253, 0.0
    %258 = vadd.xlane.f32.xlu0 %v257
    %v259 = vpop.xlane.xlu0 %258
    %v260 = vrcp.pop %v256
    %v261 = vrcp.pop %v259
    %v262 = vmul.f32 %v251, %v260
    %v263 = vmul.f32 %v253, %v261
    %264 = vrot.lane.b32.xlu0 %v143, 64
    %v265 = vpop.permute.xlu0 %264
    %266 = vrot.lane.b32.xlu0 %v148, 64
    %v267 = vpop.permute.xlu0 %266
    %v271 = vsel %vm241, %v262, 0
    %v274 = vsel %vm241, %v263, 0
    %276 = vmatprep.subr.mxu0 0.0
    %277 = vmatpush1.msra.mxu0 %v265
    %278 = vmatprep.subr.mxu0 0.0
    %279 = vmatpush1.msra.mxu0 %v267
    %280 = vmatprep.subr.mxu0 0.0
    %281 = vmatpush1.msra.mxu0 0.0
    %282 = vmatprep.subr.mxu0 0.0
    %283 = vmatpush1.msra.mxu0 0.0
    %284 = vmatprep.subr.mxu0 0.0
    %285 = vmatpush1.msra.mxu0 0.0
    %286 = vmatprep.subr.mxu0 0.0
    %287 = vmatpush1.msra.mxu0 0.0
    %288 = vmatprep.subr.mxu0 0.0
    %289 = vmatpush1.msra.mxu0 0.0
    %290 = vmatprep.subr.mxu0 0.0
    %291 = vmatpush1.msra.mxu0 0.0
    %292 = vmatprep.subr.mxu0 0.0
    %293 = vmatpush1.msra.mxu0 0.0
    %294 = vmatprep.subr.mxu0 0.0
    %295 = vmatpush1.msra.mxu0 0.0
    %296 = vmatprep.subr.mxu0 0.0
    %297 = vmatpush1.msra.mxu0 0.0
    %298 = vmatprep.subr.mxu0 0.0
    %299 = vmatpush1.msra.mxu0 0.0
    %300 = vmatprep.subr.mxu0 0.0
    %301 = vmatpush1.msra.mxu0 0.0
    %302 = vmatprep.subr.mxu0 0.0
    %303 = vmatpush1.msra.mxu0 0.0
    %304 = vmatprep.subr.mxu0 0.0
    %305 = vmatpush1.msra.mxu0 0.0
    %306 = vmatprep.subr.mxu0 0.0
    %307 = vmatpush1.msra.mxu0 0.0
    %308 = vmatprep.subr.mxu0 0.0
    %309 = vmatpush1.msra.mxu0 0.0
    %310 = vmatprep.subr.mxu0 0.0
    %311 = vmatpush1.msra.mxu0 0.0
    %312 = vmatprep.subr.mxu0 0.0
    %313 = vmatpush1.msra.mxu0 0.0
    %314 = vmatprep.subr.mxu0 0.0
    %315 = vmatpush1.msra.mxu0 0.0
    %316 = vmatprep.subr.mxu0 0.0
    %317 = vmatpush1.msra.mxu0 0.0
    %318 = vmatprep.subr.mxu0 0.0
    %319 = vmatpush1.msra.mxu0 0.0
    %320 = vmatprep.subr.mxu0 0.0
    %321 = vmatpush1.msra.mxu0 0.0
    %322 = vmatprep.subr.mxu0 0.0
    %323 = vmatpush1.msra.mxu0 0.0
    %324 = vmatprep.subr.mxu0 0.0
    %325 = vmatpush1.msra.mxu0 0.0
    %326 = vmatprep.subr.mxu0 0.0
    %327 = vmatpush1.msra.mxu0 0.0
    %328 = vmatprep.subr.mxu0 0.0
    %329 = vmatpush1.msra.mxu0 0.0
    %330 = vmatprep.subr.mxu0 0.0
    %331 = vmatpush1.msra.mxu0 0.0
    %332 = vmatprep.subr.mxu0 0.0
    %333 = vmatpush1.msra.mxu0 0.0
    %334 = vmatprep.subr.mxu0 0.0
    %335 = vmatpush1.msra.mxu0 0.0
    %336 = vmatprep.subr.mxu0 0.0
    %337 = vmatpush1.msra.mxu0 0.0
    %338 = vmatprep.subr.mxu0 0.0
    %339 = vmatpush1.msra.mxu0 0.0
    %340 = vmatprep.mubr.f32.mxu0 0.0
    %341 = vmatmul.mubr.f32.gmra.mrb[0].mxu0 %v271
    %v342 = vpop.f32.mrb[0].mxu0
    %v343 = vadd.f32 0.0, %v342
    %v344 = vpop.f32.mrb[0].mxu0
    %345 = vmatprep.mubr.f32.mxu0 0.0
    %346 = vmatmul.mubr.f32.gmra.mrb[0].mxu0 %v274
    %v347 = vpop.f32.mrb[0].mxu0
    %v348 = vadd.f32 0.0, %v347
    %v349 = vpop.f32.mrb[0].mxu0
    %350 = vdwg.mxu0
    %351 = vrot.lane.b32.xlu0 %v143, 120
    %v352 = vpop.permute.xlu0 %351
    %353 = vrot.lane.b32.xlu0 %v148, 120
    %v354 = vpop.permute.xlu0 %353
    %355 = vrot.lane.b32.xlu0 %v143, 88
    %v356 = vpop.permute.xlu0 %355
    %357 = vrot.lane.b32.xlu0 %v148, 88
    %v358 = vpop.permute.xlu0 %357
    %v359 = vsel %vm157, %v352, 0
    %v361 = vsel %vm157, %v354, 0
    %v363 = vsel %vm157, %v356, 0
    %v365 = vsel %vm157, %v358, 0
    %367 = vmatprep.subr.mxu0 0.0
    %368 = vmatpush1.xpose.msra.mxu0 %v363
    %369 = vmatprep.subr.mxu0 0.0
    %370 = vmatpush1.xpose.msra.mxu0 %v365
    %371 = vmatprep.subr.mxu0 0.0
    %372 = vmatpush1.xpose.msra.mxu0 0.0
    %373 = vmatprep.subr.mxu0 0.0
    %374 = vmatpush1.xpose.msra.mxu0 0.0
    %375 = vmatprep.subr.mxu0 0.0
    %376 = vmatpush1.xpose.msra.mxu0 0.0
    %377 = vmatprep.subr.mxu0 0.0
    %378 = vmatpush1.xpose.msra.mxu0 0.0
    %379 = vmatprep.subr.mxu0 0.0
    %380 = vmatpush1.xpose.msra.mxu0 0.0
    %381 = vmatprep.subr.mxu0 0.0
    %382 = vmatpush1.xpose.msra.mxu0 0.0
    %383 = vmatprep.subr.mxu0 0.0
    %384 = vmatpush1.xpose.msra.mxu0 0.0
    %385 = vmatprep.subr.mxu0 0.0
    %386 = vmatpush1.xpose.msra.mxu0 0.0
    %387 = vmatprep.subr.mxu0 0.0
    %388 = vmatpush1.xpose.msra.mxu0 0.0
    %389 = vmatprep.subr.mxu0 0.0
    %390 = vmatpush1.xpose.msra.mxu0 0.0
    %391 = vmatprep.subr.mxu0 0.0
    %392 = vmatpush1.xpose.msra.mxu0 0.0
    %393 = vmatprep.subr.mxu0 0.0
    %394 = vmatpush1.xpose.msra.mxu0 0.0
    %395 = vmatprep.subr.mxu0 0.0
    %396 = vmatpush1.xpose.msra.mxu0 0.0
    %397 = vmatprep.subr.mxu0 0.0
    %398 = vmatpush1.xpose.msra.mxu0 0.0
    %399 = vmatprep.subr.mxu0 0.0
    %400 = vmatpush1.xpose.msra.mxu0 0.0
    %401 = vmatprep.subr.mxu0 0.0
    %402 = vmatpush1.xpose.msra.mxu0 0.0
    %403 = vmatprep.subr.mxu0 0.0
    %404 = vmatpush1.xpose.msra.mxu0 0.0
    %405 = vmatprep.subr.mxu0 0.0
    %406 = vmatpush1.xpose.msra.mxu0 0.0
    %407 = vmatprep.subr.mxu0 0.0
    %408 = vmatpush1.xpose.msra.mxu0 0.0
    %409 = vmatprep.subr.mxu0 0.0
    %410 = vmatpush1.xpose.msra.mxu0 0.0
    %411 = vmatprep.subr.mxu0 0.0
    %412 = vmatpush1.xpose.msra.mxu0 0.0
    %413 = vmatprep.subr.mxu0 0.0
    %414 = vmatpush1.xpose.msra.mxu0 0.0
    %415 = vmatprep.subr.mxu0 0.0
    %416 = vmatpush1.xpose.msra.mxu0 0.0
    %417 = vmatprep.subr.mxu0 0.0
    %418 = vmatpush1.xpose.msra.mxu0 0.0
    %419 = vmatprep.subr.mxu0 0.0
    %420 = vmatpush1.xpose.msra.mxu0 0.0
    %421 = vmatprep.subr.mxu0 0.0
    %422 = vmatpush1.xpose.msra.mxu0 0.0
    %423 = vmatprep.subr.mxu0 0.0
    %424 = vmatpush1.xpose.msra.mxu0 0.0
    %425 = vmatprep.subr.mxu0 0.0
    %426 = vmatpush1.xpose.msra.mxu0 0.0
    %427 = vmatprep.subr.mxu0 0.0
    %428 = vmatpush1.xpose.msra.mxu0 0.0
    %429 = vmatprep.subr.mxu0 0.0
    %430 = vmatpush1.xpose.msra.mxu0 0.0
    %431 = vmatprep.mubr.f32.mxu0 0.0
    %432 = vmatmul.mubr.f32.gmra.mrb[0].mxu0 %v359
    %v433 = vpop.f32.mrb[0].mxu0
    %v434 = vadd.f32 %v63, %v433
    %v435 = vpop.f32.mrb[0].mxu0
    %436 = vmatprep.mubr.f32.mxu0 0.0
    %437 = vmatmul.mubr.f32.gmra.mrb[0].mxu0 %v361
    %v438 = vpop.f32.mrb[0].mxu0
    %v439 = vadd.f32 %v64, %v438
    %v440 = vpop.f32.mrb[0].mxu0
    %441 = vdwg.mxu0
    %v442 = vsel %vm241, %v434, -inf
    %443 = vmax.xlane.f32.xlu0 %v442
    %v444 = vpop.xlane.xlu0 %443
    %v445 = vsel %vm241, %v439, -inf
    %446 = vmax.xlane.f32.xlu0 %v445
    %v447 = vpop.xlane.xlu0 %446
    %v448 = vsub.f32 %v434, %v444
    %v449 = vsub.f32 %v439, %v447
    %v450 = vmul.f32 %v448, 1.442695
    %v451 = vpow.pop %v450
    %v452 = vmul.f32 %v449, 1.442695
    %v453 = vpow.pop %v452
    %v454 = vsel %vm241, %v451, 0.0
    %455 = vadd.xlane.f32.xlu0 %v454
    %v456 = vpop.xlane.xlu0 %455
    %v457 = vsel %vm241, %v453, 0.0
    %458 = vadd.xlane.f32.xlu0 %v457
    %v459 = vpop.xlane.xlu0 %458
    %v460 = vrcp.pop %v456
    %v461 = vrcp.pop %v459
    %v462 = vmul.f32 %v451, %v460
    %v463 = vmul.f32 %v453, %v461
    %464 = vrot.lane.b32.xlu0 %v143, 56
    %v465 = vpop.permute.xlu0 %464
    %466 = vrot.lane.b32.xlu0 %v148, 56
    %v467 = vpop.permute.xlu0 %466
    %v471 = vsel %vm241, %v462, 0
    %v474 = vsel %vm241, %v463, 0
    %476 = vmatprep.subr.mxu0 0.0
    %477 = vmatpush1.msra.mxu0 %v465
    %478 = vmatprep.subr.mxu0 0.0
    %479 = vmatpush1.msra.mxu0 %v467
    %480 = vmatprep.subr.mxu0 0.0
    %481 = vmatpush1.msra.mxu0 0.0
    %482 = vmatprep.subr.mxu0 0.0
    %483 = vmatpush1.msra.mxu0 0.0
    %484 = vmatprep.subr.mxu0 0.0
    %485 = vmatpush1.msra.mxu0 0.0
    %486 = vmatprep.subr.mxu0 0.0
    %487 = vmatpush1.msra.mxu0 0.0
    %488 = vmatprep.subr.mxu0 0.0
    %489 = vmatpush1.msra.mxu0 0.0
    %490 = vmatprep.subr.mxu0 0.0
    %491 = vmatpush1.msra.mxu0 0.0
    %492 = vmatprep.subr.mxu0 0.0
    %493 = vmatpush1.msra.mxu0 0.0
    %494 = vmatprep.subr.mxu0 0.0
    %495 = vmatpush1.msra.mxu0 0.0
    %496 = vmatprep.subr.mxu0 0.0
    %497 = vmatpush1.msra.mxu0 0.0
    %498 = vmatprep.subr.mxu0 0.0
    %499 = vmatpush1.msra.mxu0 0.0
    %500 = vmatprep.subr.mxu0 0.0
    %501 = vmatpush1.msra.mxu0 0.0
    %502 = vmatprep.subr.mxu0 0.0
    %503 = vmatpush1.msra.mxu0 0.0
    %504 = vmatprep.subr.mxu0 0.0
    %505 = vmatpush1.msra.mxu0 0.0
    %506 = vmatprep.subr.mxu0 0.0
    %507 = vmatpush1.msra.mxu0 0.0
    %508 = vmatprep.subr.mxu0 0.0
    %509 = vmatpush1.msra.mxu0 0.0
    %510 = vmatprep.subr.mxu0 0.0
    %511 = vmatpush1.msra.mxu0 0.0
    %512 = vmatprep.subr.mxu0 0.0
    %513 = vmatpush1.msra.mxu0 0.0
    %514 = vmatprep.subr.mxu0 0.0
    %515 = vmatpush1.msra.mxu0 0.0
    %516 = vmatprep.subr.mxu0 0.0
    %517 = vmatpush1.msra.mxu0 0.0
    %518 = vmatprep.subr.mxu0 0.0
    %519 = vmatpush1.msra.mxu0 0.0
    %520 = vmatprep.subr.mxu0 0.0
    %521 = vmatpush1.msra.mxu0 0.0
    %522 = vmatprep.subr.mxu0 0.0
    %523 = vmatpush1.msra.mxu0 0.0
    %524 = vmatprep.subr.mxu0 0.0
    %525 = vmatpush1.msra.mxu0 0.0
    %526 = vmatprep.subr.mxu0 0.0
    %527 = vmatpush1.msra.mxu0 0.0
    %528 = vmatprep.subr.mxu0 0.0
    %529 = vmatpush1.msra.mxu0 0.0
    %530 = vmatprep.subr.mxu0 0.0
    %531 = vmatpush1.msra.mxu0 0.0
    %532 = vmatprep.subr.mxu0 0.0
    %533 = vmatpush1.msra.mxu0 0.0
    %534 = vmatprep.subr.mxu0 0.0
    %535 = vmatpush1.msra.mxu0 0.0
    %536 = vmatprep.subr.mxu0 0.0
    %537 = vmatpush1.msra.mxu0 0.0
    %538 = vmatprep.subr.mxu0 0.0
    %539 = vmatpush1.msra.mxu0 0.0
    %540 = vmatprep.mubr.f32.mxu0 0.0
    %541 = vmatmul.mubr.f32.gmra.mrb[0].mxu0 %v471
    %v542 = vpop.f32.mrb[0].mxu0
    %v543 = vadd.f32 0.0, %v542
    %v544 = vpop.f32.mrb[0].mxu0
    %545 = vmatprep.mubr.f32.mxu0 0.0
    %546 = vmatmul.mubr.f32.gmra.mrb[0].mxu0 %v474
    %v547 = vpop.f32.mrb[0].mxu0
    %v548 = vadd.f32 0.0, %v547
    %v549 = vpop.f32.mrb[0].mxu0
    %550 = vdwg.mxu0
    %551 = vrot.lane.b32.xlu0 %v143, 112
    %v552 = vpop.permute.xlu0 %551
    %553 = vrot.lane.b32.xlu0 %v148, 112
    %v554 = vpop.permute.xlu0 %553
    %555 = vrot.lane.b32.xlu0 %v143, 80
    %v556 = vpop.permute.xlu0 %555
    %557 = vrot.lane.b32.xlu0 %v148, 80
    %v558 = vpop.permute.xlu0 %557
    %v559 = vsel %vm157, %v552, 0
    %v561 = vsel %vm157, %v554, 0
    %v563 = vsel %vm157, %v556, 0
    %v565 = vsel %vm157, %v558, 0
    %567 = vmatprep.subr.mxu0 0.0
    %568 = vmatpush1.xpose.msra.mxu0 %v563
    %569 = vmatprep.subr.mxu0 0.0
    %570 = vmatpush1.xpose.msra.mxu0 %v565
    %571 = vmatprep.subr.mxu0 0.0
    %572 = vmatpush1.xpose.msra.mxu0 0.0
    %573 = vmatprep.subr.mxu0 0.0
    %574 = vmatpush1.xpose.msra.mxu0 0.0
    %575 = vmatprep.subr.mxu0 0.0
    %576 = vmatpush1.xpose.msra.mxu0 0.0
    %577 = vmatprep.subr.mxu0 0.0
    %578 = vmatpush1.xpose.msra.mxu0 0.0
    %579 = vmatprep.subr.mxu0 0.0
    %580 = vmatpush1.xpose.msra.mxu0 0.0
    %581 = vmatprep.subr.mxu0 0.0
    %582 = vmatpush1.xpose.msra.mxu0 0.0
    %583 = vmatprep.subr.mxu0 0.0
    %584 = vmatpush1.xpose.msra.mxu0 0.0
    %585 = vmatprep.subr.mxu0 0.0
    %586 = vmatpush1.xpose.msra.mxu0 0.0
    %587 = vmatprep.subr.mxu0 0.0
    %588 = vmatpush1.xpose.msra.mxu0 0.0
    %589 = vmatprep.subr.mxu0 0.0
    %590 = vmatpush1.xpose.msra.mxu0 0.0
    %591 = vmatprep.subr.mxu0 0.0
    %592 = vmatpush1.xpose.msra.mxu0 0.0
    %593 = vmatprep.subr.mxu0 0.0
    %594 = vmatpush1.xpose.msra.mxu0 0.0
    %595 = vmatprep.subr.mxu0 0.0
    %596 = vmatpush1.xpose.msra.mxu0 0.0
    %597 = vmatprep.subr.mxu0 0.0
    %598 = vmatpush1.xpose.msra.mxu0 0.0
    %599 = vmatprep.subr.mxu0 0.0
    %600 = vmatpush1.xpose.msra.mxu0 0.0
    %601 = vmatprep.subr.mxu0 0.0
    %602 = vmatpush1.xpose.msra.mxu0 0.0
    %603 = vmatprep.subr.mxu0 0.0
    %604 = vmatpush1.xpose.msra.mxu0 0.0
    %605 = vmatprep.subr.mxu0 0.0
    %606 = vmatpush1.xpose.msra.mxu0 0.0
    %607 = vmatprep.subr.mxu0 0.0
    %608 = vmatpush1.xpose.msra.mxu0 0.0
    %609 = vmatprep.subr.mxu0 0.0
    %610 = vmatpush1.xpose.msra.mxu0 0.0
    %611 = vmatprep.subr.mxu0 0.0
    %612 = vmatpush1.xpose.msra.mxu0 0.0
    %613 = vmatprep.subr.mxu0 0.0
    %614 = vmatpush1.xpose.msra.mxu0 0.0
    %615 = vmatprep.subr.mxu0 0.0
    %616 = vmatpush1.xpose.msra.mxu0 0.0
    %617 = vmatprep.subr.mxu0 0.0
    %618 = vmatpush1.xpose.msra.mxu0 0.0
    %619 = vmatprep.subr.mxu0 0.0
    %620 = vmatpush1.xpose.msra.mxu0 0.0
    %621 = vmatprep.subr.mxu0 0.0
    %622 = vmatpush1.xpose.msra.mxu0 0.0
    %623 = vmatprep.subr.mxu0 0.0
    %624 = vmatpush1.xpose.msra.mxu0 0.0
    %625 = vmatprep.subr.mxu0 0.0
    %626 = vmatpush1.xpose.msra.mxu0 0.0
    %627 = vmatprep.subr.mxu0 0.0
    %628 = vmatpush1.xpose.msra.mxu0 0.0
    %629 = vmatprep.subr.mxu0 0.0
    %630 = vmatpush1.xpose.msra.mxu0 0.0
    %631 = vmatprep.mubr.f32.mxu0 0.0
    %632 = vmatmul.mubr.f32.gmra.mrb[0].mxu0 %v559
    %v633 = vpop.f32.mrb[0].mxu0
    %v634 = vadd.f32 %v63, %v633
    %v635 = vpop.f32.mrb[0].mxu0
    %636 = vmatprep.mubr.f32.mxu0 0.0
    %637 = vmatmul.mubr.f32.gmra.mrb[0].mxu0 %v561
    %v638 = vpop.f32.mrb[0].mxu0
    %v639 = vadd.f32 %v64, %v638
    %v640 = vpop.f32.mrb[0].mxu0
    %641 = vdwg.mxu0
    %v642 = vsel %vm241, %v634, -inf
    %643 = vmax.xlane.f32.xlu0 %v642
    %v644 = vpop.xlane.xlu0 %643
    %v645 = vsel %vm241, %v639, -inf
    %646 = vmax.xlane.f32.xlu0 %v645
    %v647 = vpop.xlane.xlu0 %646
    %v648 = vsub.f32 %v634, %v644
    %v649 = vsub.f32 %v639, %v647
    %v650 = vmul.f32 %v648, 1.442695
    %v651 = vpow.pop %v650
    %v652 = vmul.f32 %v649, 1.442695
    %v653 = vpow.pop %v652
    %v654 = vsel %vm241, %v651, 0.0
    %655 = vadd.xlane.f32.xlu0 %v654
    %v656 = vpop.xlane.xlu0 %655
    %v657 = vsel %vm241, %v653, 0.0
    %658 = vadd.xlane.f32.xlu0 %v657
    %v659 = vpop.xlane.xlu0 %658
    %v660 = vrcp.pop %v656
    %v661 = vrcp.pop %v659
    %v662 = vmul.f32 %v651, %v660
    %v663 = vmul.f32 %v653, %v661
    %664 = vrot.lane.b32.xlu0 %v143, 48
    %v665 = vpop.permute.xlu0 %664
    %666 = vrot.lane.b32.xlu0 %v148, 48
    %v667 = vpop.permute.xlu0 %666
    %v671 = vsel %vm241, %v662, 0
    %v674 = vsel %vm241, %v663, 0
    %676 = vmatprep.subr.mxu0 0.0
    %677 = vmatpush1.msra.mxu0 %v665
    %678 = vmatprep.subr.mxu0 0.0
    %679 = vmatpush1.msra.mxu0 %v667
    %680 = vmatprep.subr.mxu0 0.0
    %681 = vmatpush1.msra.mxu0 0.0
    %682 = vmatprep.subr.mxu0 0.0
    %683 = vmatpush1.msra.mxu0 0.0
    %684 = vmatprep.subr.mxu0 0.0
    %685 = vmatpush1.msra.mxu0 0.0
    %686 = vmatprep.subr.mxu0 0.0
    %687 = vmatpush1.msra.mxu0 0.0
    %688 = vmatprep.subr.mxu0 0.0
    %689 = vmatpush1.msra.mxu0 0.0
    %690 = vmatprep.subr.mxu0 0.0
    %691 = vmatpush1.msra.mxu0 0.0
    %692 = vmatprep.subr.mxu0 0.0
    %693 = vmatpush1.msra.mxu0 0.0
    %694 = vmatprep.subr.mxu0 0.0
    %695 = vmatpush1.msra.mxu0 0.0
    %696 = vmatprep.subr.mxu0 0.0
    %697 = vmatpush1.msra.mxu0 0.0
    %698 = vmatprep.subr.mxu0 0.0
    %699 = vmatpush1.msra.mxu0 0.0
    %700 = vmatprep.subr.mxu0 0.0
    %701 = vmatpush1.msra.mxu0 0.0
    %702 = vmatprep.subr.mxu0 0.0
    %703 = vmatpush1.msra.mxu0 0.0
    %704 = vmatprep.subr.mxu0 0.0
    %705 = vmatpush1.msra.mxu0 0.0
    %706 = vmatprep.subr.mxu0 0.0
    %707 = vmatpush1.msra.mxu0 0.0
    %708 = vmatprep.subr.mxu0 0.0
    %709 = vmatpush1.msra.mxu0 0.0
    %710 = vmatprep.subr.mxu0 0.0
    %711 = vmatpush1.msra.mxu0 0.0
    %712 = vmatprep.subr.mxu0 0.0
    %713 = vmatpush1.msra.mxu0 0.0
    %714 = vmatprep.subr.mxu0 0.0
    %715 = vmatpush1.msra.mxu0 0.0
    %716 = vmatprep.subr.mxu0 0.0
    %717 = vmatpush1.msra.mxu0 0.0
    %718 = vmatprep.subr.mxu0 0.0
    %719 = vmatpush1.msra.mxu0 0.0
    %720 = vmatprep.subr.mxu0 0.0
    %721 = vmatpush1.msra.mxu0 0.0
    %722 = vmatprep.subr.mxu0 0.0
    %723 = vmatpush1.msra.mxu0 0.0
    %724 = vmatprep.subr.mxu0 0.0
    %725 = vmatpush1.msra.mxu0 0.0
    %726 = vmatprep.subr.mxu0 0.0
    %727 = vmatpush1.msra.mxu0 0.0
    %728 = vmatprep.subr.mxu0 0.0
    %729 = vmatpush1.msra.mxu0 0.0
    %730 = vmatprep.subr.mxu0 0.0
    %731 = vmatpush1.msra.mxu0 0.0
    %732 = vmatprep.subr.mxu0 0.0
    %733 = vmatpush1.msra.mxu0 0.0
    %734 = vmatprep.subr.mxu0 0.0
    %735 = vmatpush1.msra.mxu0 0.0
    %736 = vmatprep.subr.mxu0 0.0
    %737 = vmatpush1.msra.mxu0 0.0
    %738 = vmatprep.subr.mxu0 0.0
    %739 = vmatpush1.msra.mxu0 0.0
    %740 = vmatprep.mubr.f32.mxu0 0.0
    %741 = vmatmul.mubr.f32.gmra.mrb[0].mxu0 %v671
    %v742 = vpop.f32.mrb[0].mxu0
    %v743 = vadd.f32 0.0, %v742
    %v744 = vpop.f32.mrb[0].mxu0
    %745 = vmatprep.mubr.f32.mxu0 0.0
    %746 = vmatmul.mubr.f32.gmra.mrb[0].mxu0 %v674
    %v747 = vpop.f32.mrb[0].mxu0
    %v748 = vadd.f32 0.0, %v747
    %v749 = vpop.f32.mrb[0].mxu0
    %750 = vdwg.mxu0
    %751 = vrot.lane.b32.xlu0 %v143, 104
    %v752 = vpop.permute.xlu0 %751
    %753 = vrot.lane.b32.xlu0 %v148, 104
    %v754 = vpop.permute.xlu0 %753
    %755 = vrot.lane.b32.xlu0 %v143, 72
    %v756 = vpop.permute.xlu0 %755
    %757 = vrot.lane.b32.xlu0 %v148, 72
    %v758 = vpop.permute.xlu0 %757
    %v759 = vsel %vm157, %v752, 0
    %v761 = vsel %vm157, %v754, 0
    %v763 = vsel %vm157, %v756, 0
    %v765 = vsel %vm157, %v758, 0
    %767 = vmatprep.subr.mxu0 0.0
    %768 = vmatpush1.xpose.msra.mxu0 %v763
    %769 = vmatprep.subr.mxu0 0.0
    %770 = vmatpush1.xpose.msra.mxu0 %v765
    %771 = vmatprep.subr.mxu0 0.0
    %772 = vmatpush1.xpose.msra.mxu0 0.0
    %773 = vmatprep.subr.mxu0 0.0
    %774 = vmatpush1.xpose.msra.mxu0 0.0
    %775 = vmatprep.subr.mxu0 0.0
    %776 = vmatpush1.xpose.msra.mxu0 0.0
    %777 = vmatprep.subr.mxu0 0.0
    %778 = vmatpush1.xpose.msra.mxu0 0.0
    %779 = vmatprep.subr.mxu0 0.0
    %780 = vmatpush1.xpose.msra.mxu0 0.0
    %781 = vmatprep.subr.mxu0 0.0
    %782 = vmatpush1.xpose.msra.mxu0 0.0
    %783 = vmatprep.subr.mxu0 0.0
    %784 = vmatpush1.xpose.msra.mxu0 0.0
    %785 = vmatprep.subr.mxu0 0.0
    %786 = vmatpush1.xpose.msra.mxu0 0.0
    %787 = vmatprep.subr.mxu0 0.0
    %788 = vmatpush1.xpose.msra.mxu0 0.0
    %789 = vmatprep.subr.mxu0 0.0
    %790 = vmatpush1.xpose.msra.mxu0 0.0
    %791 = vmatprep.subr.mxu0 0.0
    %792 = vmatpush1.xpose.msra.mxu0 0.0
    %793 = vmatprep.subr.mxu0 0.0
    %794 = vmatpush1.xpose.msra.mxu0 0.0
    %795 = vmatprep.subr.mxu0 0.0
    %796 = vmatpush1.xpose.msra.mxu0 0.0
    %797 = vmatprep.subr.mxu0 0.0
    %798 = vmatpush1.xpose.msra.mxu0 0.0
    %799 = vmatprep.subr.mxu0 0.0
    %800 = vmatpush1.xpose.msra.mxu0 0.0
    %801 = vmatprep.subr.mxu0 0.0
    %802 = vmatpush1.xpose.msra.mxu0 0.0
    %803 = vmatprep.subr.mxu0 0.0
    %804 = vmatpush1.xpose.msra.mxu0 0.0
    %805 = vmatprep.subr.mxu0 0.0
    %806 = vmatpush1.xpose.msra.mxu0 0.0
    %807 = vmatprep.subr.mxu0 0.0
    %808 = vmatpush1.xpose.msra.mxu0 0.0
    %809 = vmatprep.subr.mxu0 0.0
    %810 = vmatpush1.xpose.msra.mxu0 0.0
    %811 = vmatprep.subr.mxu0 0.0
    %812 = vmatpush1.xpose.msra.mxu0 0.0
    %813 = vmatprep.subr.mxu0 0.0
    %814 = vmatpush1.xpose.msra.mxu0 0.0
    %815 = vmatprep.subr.mxu0 0.0
    %816 = vmatpush1.xpose.msra.mxu0 0.0
    %817 = vmatprep.subr.mxu0 0.0
    %818 = vmatpush1.xpose.msra.mxu0 0.0
    %819 = vmatprep.subr.mxu0 0.0
    %820 = vmatpush1.xpose.msra.mxu0 0.0
    %821 = vmatprep.subr.mxu0 0.0
    %822 = vmatpush1.xpose.msra.mxu0 0.0
    %823 = vmatprep.subr.mxu0 0.0
    %824 = vmatpush1.xpose.msra.mxu0 0.0
    %825 = vmatprep.subr.mxu0 0.0
    %826 = vmatpush1.xpose.msra.mxu0 0.0
    %827 = vmatprep.subr.mxu0 0.0
    %828 = vmatpush1.xpose.msra.mxu0 0.0
    %829 = vmatprep.subr.mxu0 0.0
    %830 = vmatpush1.xpose.msra.mxu0 0.0
    %831 = vmatprep.mubr.f32.mxu0 0.0
    %832 = vmatmul.mubr.f32.gmra.mrb[0].mxu0 %v759
    %v833 = vpop.f32.mrb[0].mxu0
    %v834 = vadd.f32 %v63, %v833
    %v835 = vpop.f32.mrb[0].mxu0
    %836 = vmatprep.mubr.f32.mxu0 0.0
    %837 = vmatmul.mubr.f32.gmra.mrb[0].mxu0 %v761
    %v838 = vpop.f32.mrb[0].mxu0
    %v839 = vadd.f32 %v64, %v838
    %v840 = vpop.f32.mrb[0].mxu0
    %841 = vdwg.mxu0
    %v842 = vsel %vm241, %v834, -inf
    %843 = vmax.xlane.f32.xlu0 %v842
    %v844 = vpop.xlane.xlu0 %843
    %v845 = vsel %vm241, %v839, -inf
    %846 = vmax.xlane.f32.xlu0 %v845
    %v847 = vpop.xlane.xlu0 %846
    %v848 = vsub.f32 %v834, %v844
    %v849 = vsub.f32 %v839, %v847
    %v850 = vmul.f32 %v848, 1.442695
    %v851 = vpow.pop %v850
    %v852 = vmul.f32 %v849, 1.442695
    %v853 = vpow.pop %v852
    %v854 = vsel %vm241, %v851, 0.0
    %855 = vadd.xlane.f32.xlu0 %v854
    %v856 = vpop.xlane.xlu0 %855
    %v857 = vsel %vm241, %v853, 0.0
    %858 = vadd.xlane.f32.xlu0 %v857
    %v859 = vpop.xlane.xlu0 %858
    %v860 = vrcp.pop %v856
    %v861 = vrcp.pop %v859
    %v862 = vmul.f32 %v851, %v860
    %v863 = vmul.f32 %v853, %v861
    %864 = vrot.lane.b32.xlu0 %v143, 40
    %v865 = vpop.permute.xlu0 %864
    %866 = vrot.lane.b32.xlu0 %v148, 40
    %v867 = vpop.permute.xlu0 %866
    %v871 = vsel %vm241, %v862, 0
    %v874 = vsel %vm241, %v863, 0
    %876 = vmatprep.subr.mxu0 0.0
    %877 = vmatpush1.msra.mxu0 %v865
    %878 = vmatprep.subr.mxu0 0.0
    %879 = vmatpush1.msra.mxu0 %v867
    %880 = vmatprep.subr.mxu0 0.0
    %881 = vmatpush1.msra.mxu0 0.0
    %882 = vmatprep.subr.mxu0 0.0
    %883 = vmatpush1.msra.mxu0 0.0
    %884 = vmatprep.subr.mxu0 0.0
    %885 = vmatpush1.msra.mxu0 0.0
    %886 = vmatprep.subr.mxu0 0.0
    %887 = vmatpush1.msra.mxu0 0.0
    %888 = vmatprep.subr.mxu0 0.0
    %889 = vmatpush1.msra.mxu0 0.0
    %890 = vmatprep.subr.mxu0 0.0
    %891 = vmatpush1.msra.mxu0 0.0
    %892 = vmatprep.subr.mxu0 0.0
    %893 = vmatpush1.msra.mxu0 0.0
    %894 = vmatprep.subr.mxu0 0.0
    %895 = vmatpush1.msra.mxu0 0.0
    %896 = vmatprep.subr.mxu0 0.0
    %897 = vmatpush1.msra.mxu0 0.0
    %898 = vmatprep.subr.mxu0 0.0
    %899 = vmatpush1.msra.mxu0 0.0
    %900 = vmatprep.subr.mxu0 0.0
    %901 = vmatpush1.msra.mxu0 0.0
    %902 = vmatprep.subr.mxu0 0.0
    %903 = vmatpush1.msra.mxu0 0.0
    %904 = vmatprep.subr.mxu0 0.0
    %905 = vmatpush1.msra.mxu0 0.0
    %906 = vmatprep.subr.mxu0 0.0
    %907 = vmatpush1.msra.mxu0 0.0
    %908 = vmatprep.subr.mxu0 0.0
    %909 = vmatpush1.msra.mxu0 0.0
    %910 = vmatprep.subr.mxu0 0.0
    %911 = vmatpush1.msra.mxu0 0.0
    %912 = vmatprep.subr.mxu0 0.0
    %913 = vmatpush1.msra.mxu0 0.0
    %914 = vmatprep.subr.mxu0 0.0
    %915 = vmatpush1.msra.mxu0 0.0
    %916 = vmatprep.subr.mxu0 0.0
    %917 = vmatpush1.msra.mxu0 0.0
    %918 = vmatprep.subr.mxu0 0.0
    %919 = vmatpush1.msra.mxu0 0.0
    %920 = vmatprep.subr.mxu0 0.0
    %921 = vmatpush1.msra.mxu0 0.0
    %922 = vmatprep.subr.mxu0 0.0
    %923 = vmatpush1.msra.mxu0 0.0
    %924 = vmatprep.subr.mxu0 0.0
    %925 = vmatpush1.msra.mxu0 0.0
    %926 = vmatprep.subr.mxu0 0.0
    %927 = vmatpush1.msra.mxu0 0.0
    %928 = vmatprep.subr.mxu0 0.0
    %929 = vmatpush1.msra.mxu0 0.0
    %930 = vmatprep.subr.mxu0 0.0
    %931 = vmatpush1.msra.mxu0 0.0
    %932 = vmatprep.subr.mxu0 0.0
    %933 = vmatpush1.msra.mxu0 0.0
    %934 = vmatprep.subr.mxu0 0.0
    %935 = vmatpush1.msra.mxu0 0.0
    %936 = vmatprep.subr.mxu0 0.0
    %937 = vmatpush1.msra.mxu0 0.0
    %938 = vmatprep.subr.mxu0 0.0
    %939 = vmatpush1.msra.mxu0 0.0
    %940 = vmatprep.mubr.f32.mxu0 0.0
    %941 = vmatmul.mubr.f32.gmra.mrb[0].mxu0 %v871
    %v942 = vpop.f32.mrb[0].mxu0
    %v943 = vadd.f32 0.0, %v942
    %v944 = vpop.f32.mrb[0].mxu0
    %945 = vmatprep.mubr.f32.mxu0 0.0
    %946 = vmatmul.mubr.f32.gmra.mrb[0].mxu0 %v874
    %v947 = vpop.f32.mrb[0].mxu0
    %v948 = vadd.f32 0.0, %v947
    %v949 = vpop.f32.mrb[0].mxu0
    %950 = vdwg.mxu0
    %953 = vrot.lane.b32.xlu0 %v543, 8
    %v954 = vpop.permute.xlu0 %953
    %955 = vrot.lane.b32.xlu0 %v548, 8
    %v956 = vpop.permute.xlu0 %955
    %961 = vrot.lane.b32.xlu0 %v743, 16
    %v962 = vpop.permute.xlu0 %961
    %963 = vrot.lane.b32.xlu0 %v748, 16
    %v964 = vpop.permute.xlu0 %963
    %969 = vrot.lane.b32.xlu0 %v943, 24
    %v970 = vpop.permute.xlu0 %969
    %971 = vrot.lane.b32.xlu0 %v948, 24
    %v972 = vpop.permute.xlu0 %971
    %v975 = vsel %vm157, %v343, %v954
    %v976 = vsel %vm157, %v348, %v956
    %v977 = vsel %vm241, %v975, %v962
    %v978 = vsel %vm241, %v976, %v964
    %vm979 = vcmask 195584
    %v980 = vsel %vm979, %v977, %v970
    %v981 = vsel %vm979, %v978, %v972
    %v982 = vlaneseq
    %v983 = vshrl.u32 %v982, 7
    %v984 = vsub.s32 1, %v983
    %v985 = vrot.slane %v62, %v984
    %v987 = vsel %vm69, %v980, 0
    %v990 = vsel %vm69, %v981, 0
    %992 = vmatprep.subr.mxu0 0.0
    %993 = vmatpush1.msra.mxu0 %v46
    %994 = vmatprep.subr.mxu0 0.0
    %995 = vmatpush1.msra.mxu0 %v47
    %996 = vmatprep.subr.mxu0 0.0
    %997 = vmatpush1.msra.mxu0 %v48
    %998 = vmatprep.subr.mxu0 0.0
    %999 = vmatpush1.msra.mxu0 %v49
    %1000 = vmatprep.subr.mxu0 0.0
    %1001 = vmatpush1.msra.mxu0 0.0
    %1002 = vmatprep.subr.mxu0 0.0
    %1003 = vmatpush1.msra.mxu0 0.0
    %1004 = vmatprep.subr.mxu0 0.0
    %1005 = vmatpush1.msra.mxu0 0.0
    %1006 = vmatprep.subr.mxu0 0.0
    %1007 = vmatpush1.msra.mxu0 0.0
    %1008 = vmatprep.subr.mxu0 0.0
    %1009 = vmatpush1.msra.mxu0 0.0
    %1010 = vmatprep.subr.mxu0 0.0
    %1011 = vmatpush1.msra.mxu0 0.0
    %1012 = vmatprep.subr.mxu0 0.0
    %1013 = vmatpush1.msra.mxu0 0.0
    %1014 = vmatprep.subr.mxu0 0.0
    %1015 = vmatpush1.msra.mxu0 0.0
    %1016 = vmatprep.subr.mxu0 0.0
    %1017 = vmatpush1.msra.mxu0 0.0
    %1018 = vmatprep.subr.mxu0 0.0
    %1019 = vmatpush1.msra.mxu0 0.0
    %1020 = vmatprep.subr.mxu0 0.0
    %1021 = vmatpush1.msra.mxu0 0.0
    %1022 = vmatprep.subr.mxu0 0.0
    %1023 = vmatpush1.msra.mxu0 0.0
    %1024 = vmatprep.subr.mxu0 0.0
    %1025 = vmatpush1.msra.mxu0 0.0
    %1026 = vmatprep.subr.mxu0 0.0
    %1027 = vmatpush1.msra.mxu0 0.0
    %1028 = vmatprep.subr.mxu0 0.0
    %1029 = vmatpush1.msra.mxu0 0.0
    %1030 = vmatprep.subr.mxu0 0.0
    %1031 = vmatpush1.msra.mxu0 0.0
    %1032 = vmatprep.subr.mxu0 0.0
    %1033 = vmatpush1.msra.mxu0 0.0
    %1034 = vmatprep.subr.mxu0 0.0
    %1035 = vmatpush1.msra.mxu0 0.0
    %1036 = vmatprep.subr.mxu0 0.0
    %1037 = vmatpush1.msra.mxu0 0.0
    %1038 = vmatprep.subr.mxu0 0.0
    %1039 = vmatpush1.msra.mxu0 0.0
    %1040 = vmatprep.subr.mxu0 0.0
    %1041 = vmatpush1.msra.mxu0 0.0
    %1042 = vmatprep.subr.mxu0 0.0
    %1043 = vmatpush1.msra.mxu0 0.0
    %1044 = vmatprep.subr.mxu0 0.0
    %1045 = vmatpush1.msra.mxu0 0.0
    %1046 = vmatprep.subr.mxu0 0.0
    %1047 = vmatpush1.msra.mxu0 0.0
    %1048 = vmatprep.subr.mxu0 0.0
    %1049 = vmatpush1.msra.mxu0 0.0
    %1050 = vmatprep.subr.mxu0 0.0
    %1051 = vmatpush1.msra.mxu0 0.0
    %1052 = vmatprep.subr.mxu0 0.0
    %1053 = vmatpush1.msra.mxu0 0.0
    %1054 = vmatprep.subr.mxu0 0.0
    %1055 = vmatpush1.msra.mxu0 0.0
    %1056 = vmatprep.mubr.f32.mxu0 0.0
    %1057 = vmatmul.mubr.f32.gmra.mrb[0].mxu0 %v987
    %v1058 = vpop.f32.mrb[0].mxu0
    %v1059 = vadd.f32 %v985, %v1058
    %v1060 = vpop.f32.mrb[0].mxu0
    %1061 = vmatprep.mubr.f32.mxu0 0.0
    %1062 = vmatmul.mubr.f32.gmra.mrb[0].mxu0 %v990
    %v1063 = vpop.f32.mrb[0].mxu0
    %v1064 = vadd.f32 %v985, %v1063
    %v1065 = vpop.f32.mrb[0].mxu0
    %1066 = vdwg.mxu0
    %v1067 = vadd.f32 %v40, %v1059
    %v1068 = vadd.f32 %v41, %v1064
    %v1069 = vsel %vm69, %v1067, 0.0
    %1070 = vadd.xlane.f32.xlu0 %v1069
    %v1071 = vpop.xlane.xlu0 %1070
    %v1072 = vsel %vm69, %v1068, 0.0
    %1073 = vadd.xlane.f32.xlu0 %v1072
    %v1074 = vpop.xlane.xlu0 %1073
    %v1075 = vrcp.pop 32.0
    %v1076 = vmul.f32 %v1071, %v1075
    %v1077 = vmul.f32 %v1074, %v1075
    %v1078 = vsub.f32 %v1067, %v1076
    %v1079 = vsub.f32 %v1068, %v1077
    %v1080 = vmul.f32 %v1078, %v1078
    %v1081 = vmul.f32 %v1079, %v1079
    %v1082 = vsel %vm69, %v1080, 0.0
    %1083 = vadd.xlane.f32.xlu0 %v1082
    %v1084 = vpop.xlane.xlu0 %1083
    %v1085 = vsel %vm69, %v1081, 0.0
    %1086 = vadd.xlane.f32.xlu0 %v1085
    %v1087 = vpop.xlane.xlu0 %1086
    %v1088 = vmul.f32 %v1084, %v1075
    %v1089 = vmul.f32 %v1087, %v1075
    %v1090 = vadd.f32 %v1088, 1e-05
    %v1091 = vadd.f32 %v1089, 1e-05
    %v1092 = vrsqrt.pop %v1090
    %v1093 = vrsqrt.pop %v1091
    %v1094 = vmul.f32 %v1078, %v1092
    %v1095 = vmul.f32 %v1079, %v1093
    %v1096 = vlaneseq
    %v1097 = vshrl.u32 %v1096, 7
    %v1098 = vsub.s32 2, %v1097
    %v1099 = vrot.slane %v62, %v1098
    %v1100 = vmul.f32 %v1094, %v1099
    %v1101 = vmul.f32 %v1095, %v1099
    %v1102 = vlaneseq
    %v1103 = vshrl.u32 %v1102, 7
    %v1104 = vsub.s32 3, %v1103
    %v1105 = vrot.slane %v62, %v1104
    %v1106 = vadd.f32 %v1100, %v1105
    %v1107 = vadd.f32 %v1101, %v1105
    %v1108 = vlaneseq
    %v1109 = vshrl.u32 %v1108, 7
    %v1110 = vsub.s32 4, %v1109
    %v1111 = vrot.slane %v62, %v1110
    %v1113 = vsel %vm69, %v1106, 0
    %v1116 = vsel %vm69, %v1107, 0
    %1118 = vmatprep.subr.mxu0 0.0
    %1119 = vmatpush1.msra.mxu0 %v50
    %1120 = vmatprep.subr.mxu0 0.0
    %1121 = vmatpush1.msra.mxu0 %v51
    %1122 = vmatprep.subr.mxu0 0.0
    %1123 = vmatpush1.msra.mxu0 %v52
    %1124 = vmatprep.subr.mxu0 0.0
    %1125 = vmatpush1.msra.mxu0 %v53
    %1126 = vmatprep.subr.mxu0 0.0
    %1127 = vmatpush1.msra.mxu0 0.0
    %1128 = vmatprep.subr.mxu0 0.0
    %1129 = vmatpush1.msra.mxu0 0.0
    %1130 = vmatprep.subr.mxu0 0.0
    %1131 = vmatpush1.msra.mxu0 0.0
    %1132 = vmatprep.subr.mxu0 0.0
    %1133 = vmatpush1.msra.mxu0 0.0
    %1134 = vmatprep.subr.mxu0 0.0
    %1135 = vmatpush1.msra.mxu0 0.0
    %1136 = vmatprep.subr.mxu0 0.0
    %1137 = vmatpush1.msra.mxu0 0.0
    %1138 = vmatprep.subr.mxu0 0.0
    %1139 = vmatpush1.msra.mxu0 0.0
    %1140 = vmatprep.subr.mxu0 0.0
    %1141 = vmatpush1.msra.mxu0 0.0
    %1142 = vmatprep.subr.mxu0 0.0
    %1143 = vmatpush1.msra.mxu0 0.0
    %1144 = vmatprep.subr.mxu0 0.0
    %1145 = vmatpush1.msra.mxu0 0.0
    %1146 = vmatprep.subr.mxu0 0.0
    %1147 = vmatpush1.msra.mxu0 0.0
    %1148 = vmatprep.subr.mxu0 0.0
    %1149 = vmatpush1.msra.mxu0 0.0
    %1150 = vmatprep.subr.mxu0 0.0
    %1151 = vmatpush1.msra.mxu0 0.0
    %1152 = vmatprep.subr.mxu0 0.0
    %1153 = vmatpush1.msra.mxu0 0.0
    %1154 = vmatprep.subr.mxu0 0.0
    %1155 = vmatpush1.msra.mxu0 0.0
    %1156 = vmatprep.subr.mxu0 0.0
    %1157 = vmatpush1.msra.mxu0 0.0
    %1158 = vmatprep.subr.mxu0 0.0
    %1159 = vmatpush1.msra.mxu0 0.0
    %1160 = vmatprep.subr.mxu0 0.0
    %1161 = vmatpush1.msra.mxu0 0.0
    %1162 = vmatprep.subr.mxu0 0.0
    %1163 = vmatpush1.msra.mxu0 0.0
    %1164 = vmatprep.subr.mxu0 0.0
    %1165 = vmatpush1.msra.mxu0 0.0
    %1166 = vmatprep.subr.mxu0 0.0
    %1167 = vmatpush1.msra.mxu0 0.0
    %1168 = vmatprep.subr.mxu0 0.0
    %1169 = vmatpush1.msra.mxu0 0.0
    %1170 = vmatprep.subr.mxu0 0.0
    %1171 = vmatpush1.msra.mxu0 0.0
    %1172 = vmatprep.subr.mxu0 0.0
    %1173 = vmatpush1.msra.mxu0 0.0
    %1174 = vmatprep.subr.mxu0 0.0
    %1175 = vmatpush1.msra.mxu0 0.0
    %1176 = vmatprep.subr.mxu0 0.0
    %1177 = vmatpush1.msra.mxu0 0.0
    %1178 = vmatprep.subr.mxu0 0.0
    %1179 = vmatpush1.msra.mxu0 0.0
    %1180 = vmatprep.subr.mxu0 0.0
    %1181 = vmatpush1.msra.mxu0 0.0
    %1182 = vmatprep.mubr.f32.mxu0 0.0
    %1183 = vmatmul.mubr.f32.gmra.mrb[0].mxu0 %v1113
    %v1184 = vpop.f32.mrb[0].mxu0
    %v1185 = vadd.f32 %v1111, %v1184
    %v1186 = vpop.f32.mrb[0].mxu0
    %1187 = vmatprep.mubr.f32.mxu0 0.0
    %1188 = vmatmul.mubr.f32.gmra.mrb[0].mxu0 %v1116
    %v1189 = vpop.f32.mrb[0].mxu0
    %v1190 = vadd.f32 %v1111, %v1189
    %v1191 = vpop.f32.mrb[0].mxu0
    %1192 = vdwg.mxu0
    %v1193 = vmax.f32 %v1185, 0.0
    %v1194 = vmax.f32 %v1190, 0.0
    %v1195 = vlaneseq
    %v1196 = vshrl.u32 %v1195, 7
    %v1197 = vsub.s32 5, %v1196
    %v1198 = vrot.slane %v62, %v1197
    %vm1199 = vcmask 523264
    %v1201 = vsel %vm1199, %v1193, 0
    %v1204 = vsel %vm1199, %v1194, 0
    %1206 = vmatprep.subr.mxu0 0.0
    %1207 = vmatpush1.msra.mxu0 %v54
    %1208 = vmatprep.subr.mxu0 0.0
    %1209 = vmatpush1.msra.mxu0 %v55
    %1210 = vmatprep.subr.mxu0 0.0
    %1211 = vmatpush1.msra.mxu0 %v56
    %1212 = vmatprep.subr.mxu0 0.0
    %1213 = vmatpush1.msra.mxu0 %v57
    %1214 = vmatprep.subr.mxu0 0.0
    %1215 = vmatpush1.msra.mxu0 %v58
    %1216 = vmatprep.subr.mxu0 0.0
    %1217 = vmatpush1.msra.mxu0 %v59
    %1218 = vmatprep.subr.mxu0 0.0
    %1219 = vmatpush1.msra.mxu0 %v60
    %1220 = vmatprep.subr.mxu0 0.0
    %1221 = vmatpush1.msra.mxu0 %v61
    %1222 = vmatprep.subr.mxu0 0.0
    %1223 = vmatpush1.msra.mxu0 0.0
    %1224 = vmatprep.subr.mxu0 0.0
    %1225 = vmatpush1.msra.mxu0 0.0
    %1226 = vmatprep.subr.mxu0 0.0
    %1227 = vmatpush1.msra.mxu0 0.0
    %1228 = vmatprep.subr.mxu0 0.0
    %1229 = vmatpush1.msra.mxu0 0.0
    %1230 = vmatprep.subr.mxu0 0.0
    %1231 = vmatpush1.msra.mxu0 0.0
    %1232 = vmatprep.subr.mxu0 0.0
    %1233 = vmatpush1.msra.mxu0 0.0
    %1234 = vmatprep.subr.mxu0 0.0
    %1235 = vmatpush1.msra.mxu0 0.0
    %1236 = vmatprep.subr.mxu0 0.0
    %1237 = vmatpush1.msra.mxu0 0.0
    %1238 = vmatprep.subr.mxu0 0.0
    %1239 = vmatpush1.msra.mxu0 0.0
    %1240 = vmatprep.subr.mxu0 0.0
    %1241 = vmatpush1.msra.mxu0 0.0
    %1242 = vmatprep.subr.mxu0 0.0
    %1243 = vmatpush1.msra.mxu0 0.0
    %1244 = vmatprep.subr.mxu0 0.0
    %1245 = vmatpush1.msra.mxu0 0.0
    %1246 = vmatprep.subr.mxu0 0.0
    %1247 = vmatpush1.msra.mxu0 0.0
    %1248 = vmatprep.subr.mxu0 0.0
    %1249 = vmatpush1.msra.mxu0 0.0
    %1250 = vmatprep.subr.mxu0 0.0
    %1251 = vmatpush1.msra.mxu0 0.0
    %1252 = vmatprep.subr.mxu0 0.0
    %1253 = vmatpush1.msra.mxu0 0.0
    %1254 = vmatprep.subr.mxu0 0.0
    %1255 = vmatpush1.msra.mxu0 0.0
    %1256 = vmatprep.subr.mxu0 0.0
    %1257 = vmatpush1.msra.mxu0 0.0
    %1258 = vmatprep.subr.mxu0 0.0
    %1259 = vmatpush1.msra.mxu0 0.0
    %1260 = vmatprep.subr.mxu0 0.0
    %1261 = vmatpush1.msra.mxu0 0.0
    %1262 = vmatprep.subr.mxu0 0.0
    %1263 = vmatpush1.msra.mxu0 0.0
    %1264 = vmatprep.subr.mxu0 0.0
    %1265 = vmatpush1.msra.mxu0 0.0
    %1266 = vmatprep.subr.mxu0 0.0
    %1267 = vmatpush1.msra.mxu0 0.0
    %1268 = vmatprep.subr.mxu0 0.0
    %1269 = vmatpush1.msra.mxu0 0.0
    %1270 = vmatprep.mubr.f32.mxu0 0.0
    %1271 = vmatmul.mubr.f32.gmra.mrb[0].mxu0 %v1201
    %v1272 = vpop.f32.mrb[0].mxu0
    %v1273 = vadd.f32 %v1198, %v1272
    %v1274 = vpop.f32.mrb[0].mxu0
    %1275 = vmatprep.mubr.f32.mxu0 0.0
    %1276 = vmatmul.mubr.f32.gmra.mrb[0].mxu0 %v1204
    %v1277 = vpop.f32.mrb[0].mxu0
    %v1278 = vadd.f32 %v1198, %v1277
    %v1279 = vpop.f32.mrb[0].mxu0
    %1280 = vdwg.mxu0
    %v1281 = vadd.f32 %v1106, %v1273
    %v1282 = vadd.f32 %v1107, %v1278
    %v1283 = vsel %vm69, %v1281, 0.0
    %1284 = vadd.xlane.f32.xlu0 %v1283
    %v1285 = vpop.xlane.xlu0 %1284
    %v1286 = vsel %vm69, %v1282, 0.0
    %1287 = vadd.xlane.f32.xlu0 %v1286
    %v1288 = vpop.xlane.xlu0 %1287
    %v1289 = vmul.f32 %v1285, %v1075
    %v1290 = vmul.f32 %v1288, %v1075
    %v1291 = vsub.f32 %v1281, %v1289
    %v1292 = vsub.f32 %v1282, %v1290
    %v1293 = vmul.f32 %v1291, %v1291
    %v1294 = vmul.f32 %v1292, %v1292
    %v1295 = vsel %vm69, %v1293, 0.0
    %1296 = vadd.xlane.f32.xlu0 %v1295
    %v1297 = vpop.xlane.xlu0 %1296
    %v1298 = vsel %vm69, %v1294, 0.0
    %1299 = vadd.xlane.f32.xlu0 %v1298
    %v1300 = vpop.xlane.xlu0 %1299
    %v1301 = vmul.f32 %v1297, %v1075
    %v1302 = vmul.f32 %v1300, %v1075
    %v1303 = vadd.f32 %v1301, 1e-05
    %v1304 = vadd.f32 %v1302, 1e-05
    %v1305 = vrsqrt.pop %v1303
    %v1306 = vrsqrt.pop %v1304
    %v1307 = vmul.f32 %v1291, %v1305
    %v1308 = vmul.f32 %v1292, %v1306
    %v1309 = vlaneseq
    %v1310 = vshrl.u32 %v1309, 7
    %v1311 = vsub.s32 6, %v1310
    %v1312 = vrot.slane %v62, %v1311
    %v1313 = vmul.f32 %v1307, %v1312
    %v1314 = vmul.f32 %v1308, %v1312
    %v1315 = vlaneseq
    %v1316 = vshrl.u32 %v1315, 7
    %v1317 = vsub.s32 7, %v1316
    %v1318 = vrot.slane %v62, %v1317
    %v1319 = vadd.f32 %v1313, %v1318
    %v1320 = vadd.f32 %v1314, %v1318
    %v1321 = vld [vmem:[#allocation5 + $0xb8] sm:$0xff]
    %v1322 = vld [vmem:[#allocation5 + $0xc0] sm:$0xff]
    %v1323 = vld [vmem:[#allocation5 + $0xc8] sm:$0xff]
    %v1324 = vld [vmem:[#allocation5 + $0xd0] sm:$0xff]
    %v1325 = vld [vmem:[#allocation5 + $0xd8] sm:$0xff]
    %v1326 = vld [vmem:[#allocation5 + $0xe0] sm:$0xff]
    %v1327 = vld [vmem:[#allocation5 + $0xe8] sm:$0xff]
    %v1328 = vld [vmem:[#allocation5 + $0xf0] sm:$0xf]
    %v1329 = vld [vmem:[#allocation5 + $0xf8] sm:$0xff]
    %v1330 = vld [vmem:[#allocation5 + $0x100] sm:$0xff]
    %v1331 = vld [vmem:[#allocation5 + $0x108] sm:$0xf]
    %v1332 = vld [vmem:[#allocation5 + $0x110] sm:$0xff]
    %v1333 = vld [vmem:[#allocation5 + $0x118] sm:$0xff]
    %v1334 = vld [vmem:[#allocation5 + $0x120] sm:$0xf]
    %v1335 = vld [vmem:[#allocation5 + $0x128] sm:$0xff]
    %v1336 = vld [vmem:[#allocation5 + $0x130] sm:$0x3]
    %v1337 = vld [vmem:[#allocation5 + $0x138] sm:$0xff]
    %v1338 = vld [vmem:[#allocation5 + $0x140] sm:$0x3]
    %v1339 = vld [vmem:[#allocation5 + $0x148] sm:$0xff]
    %v1340 = vld [vmem:[#allocation5 + $0x150] sm:$0x3]
    %v1342 = vsel %vm69, %v1319, 0
    %v1345 = vsel %vm69, %v1320, 0
    %1347 = vmatprep.subr.mxu0 0.0
    %1348 = vmatpush1.msra.mxu0 %v1321
    %1349 = vmatprep.subr.mxu0 0.0
    %1350 = vmatpush1.msra.mxu0 %v1322
    %1351 = vmatprep.subr.mxu0 0.0
    %1352 = vmatpush1.msra.mxu0 %v1323
    %1353 = vmatprep.subr.mxu0 0.0
    %1354 = vmatpush1.msra.mxu0 %v1324
    %1355 = vmatprep.subr.mxu0 0.0
    %1356 = vmatpush1.msra.mxu0 0.0
    %1357 = vmatprep.subr.mxu0 0.0
    %1358 = vmatpush1.msra.mxu0 0.0
    %1359 = vmatprep.subr.mxu0 0.0
    %1360 = vmatpush1.msra.mxu0 0.0
    %1361 = vmatprep.subr.mxu0 0.0
    %1362 = vmatpush1.msra.mxu0 0.0
    %1363 = vmatprep.subr.mxu0 0.0
    %1364 = vmatpush1.msra.mxu0 0.0
    %1365 = vmatprep.subr.mxu0 0.0
    %1366 = vmatpush1.msra.mxu0 0.0
    %1367 = vmatprep.subr.mxu0 0.0
    %1368 = vmatpush1.msra.mxu0 0.0
    %1369 = vmatprep.subr.mxu0 0.0
    %1370 = vmatpush1.msra.mxu0 0.0
    %1371 = vmatprep.subr.mxu0 0.0
    %1372 = vmatpush1.msra.mxu0 0.0
    %1373 = vmatprep.subr.mxu0 0.0
    %1374 = vmatpush1.msra.mxu0 0.0
    %1375 = vmatprep.subr.mxu0 0.0
    %1376 = vmatpush1.msra.mxu0 0.0
    %1377 = vmatprep.subr.mxu0 0.0
    %1378 = vmatpush1.msra.mxu0 0.0
    %1379 = vmatprep.subr.mxu0 0.0
    %1380 = vmatpush1.msra.mxu0 0.0
    %1381 = vmatprep.subr.mxu0 0.0
    %1382 = vmatpush1.msra.mxu0 0.0
    %1383 = vmatprep.subr.mxu0 0.0
    %1384 = vmatpush1.msra.mxu0 0.0
    %1385 = vmatprep.subr.mxu0 0.0
    %1386 = vmatpush1.msra.mxu0 0.0
    %1387 = vmatprep.subr.mxu0 0.0
    %1388 = vmatpush1.msra.mxu0 0.0
    %1389 = vmatprep.subr.mxu0 0.0
    %1390 = vmatpush1.msra.mxu0 0.0
    %1391 = vmatprep.subr.mxu0 0.0
    %1392 = vmatpush1.msra.mxu0 0.0
    %1393 = vmatprep.subr.mxu0 0.0
    %1394 = vmatpush1.msra.mxu0 0.0
    %1395 = vmatprep.subr.mxu0 0.0
    %1396 = vmatpush1.msra.mxu0 0.0
    %1397 = vmatprep.subr.mxu0 0.0
    %1398 = vmatpush1.msra.mxu0 0.0
    %1399 = vmatprep.subr.mxu0 0.0
    %1400 = vmatpush1.msra.mxu0 0.0
    %1401 = vmatprep.subr.mxu0 0.0
    %1402 = vmatpush1.msra.mxu0 0.0
    %1403 = vmatprep.subr.mxu0 0.0
    %1404 = vmatpush1.msra.mxu0 0.0
    %1405 = vmatprep.subr.mxu0 0.0
    %1406 = vmatpush1.msra.mxu0 0.0
    %1407 = vmatprep.subr.mxu0 0.0
    %1408 = vmatpush1.msra.mxu0 0.0
    %1409 = vmatprep.subr.mxu0 0.0
    %1410 = vmatpush1.msra.mxu0 0.0
    %1411 = vmatprep.mubr.f32.mxu0 0.0
    %1412 = vmatmul.mubr.f32.gmra.mrb[0].mxu0 %v1342
    %v1413 = vpop.f32.mrb[0].mxu0
    %v1414 = vadd.f32 0.0, %v1413
    %v1415 = vpop.f32.mrb[0].mxu0
    %1416 = vmatprep.mubr.f32.mxu0 0.0
    %1417 = vmatmul.mubr.f32.gmra.mrb[0].mxu0 %v1345
    %v1418 = vpop.f32.mrb[0].mxu0
    %v1419 = vadd.f32 0.0, %v1418
    %v1420 = vpop.f32.mrb[0].mxu0
    %1421 = vdwg.mxu0
    %1424 = vrot.lane.b32.xlu0 %v1414, 96
    %v1425 = vpop.permute.xlu0 %1424
    %1426 = vrot.lane.b32.xlu0 %v1419, 96
    %v1427 = vpop.permute.xlu0 %1426
    %v1431 = vsel %vm241, %v1329, 0
    %v1434 = vsel %vm241, %v1330, 0
    %v1437 = vsel %vm241, %v1331, 0
    %1439 = vmatprep.subr.mxu0 0.0
    %1440 = vmatpush1.msra.mxu0 %v1425
    %1441 = vmatprep.subr.mxu0 0.0
    %1442 = vmatpush1.msra.mxu0 %v1427
    %1443 = vmatprep.subr.mxu0 0.0
    %1444 = vmatpush1.msra.mxu0 0.0
    %1445 = vmatprep.subr.mxu0 0.0
    %1446 = vmatpush1.msra.mxu0 0.0
    %1447 = vmatprep.subr.mxu0 0.0
    %1448 = vmatpush1.msra.mxu0 0.0
    %1449 = vmatprep.subr.mxu0 0.0
    %1450 = vmatpush1.msra.mxu0 0.0
    %1451 = vmatprep.subr.mxu0 0.0
    %1452 = vmatpush1.msra.mxu0 0.0
    %1453 = vmatprep.subr.mxu0 0.0
    %1454 = vmatpush1.msra.mxu0 0.0
    %1455 = vmatprep.subr.mxu0 0.0
    %1456 = vmatpush1.msra.mxu0 0.0
    %1457 = vmatprep.subr.mxu0 0.0
    %1458 = vmatpush1.msra.mxu0 0.0
    %1459 = vmatprep.subr.mxu0 0.0
    %1460 = vmatpush1.msra.mxu0 0.0
    %1461 = vmatprep.subr.mxu0 0.0
    %1462 = vmatpush1.msra.mxu0 0.0
    %1463 = vmatprep.subr.mxu0 0.0
    %1464 = vmatpush1.msra.mxu0 0.0
    %1465 = vmatprep.subr.mxu0 0.0
    %1466 = vmatpush1.msra.mxu0 0.0
    %1467 = vmatprep.subr.mxu0 0.0
    %1468 = vmatpush1.msra.mxu0 0.0
    %1469 = vmatprep.subr.mxu0 0.0
    %1470 = vmatpush1.msra.mxu0 0.0
    %1471 = vmatprep.subr.mxu0 0.0
    %1472 = vmatpush1.msra.mxu0 0.0
    %1473 = vmatprep.subr.mxu0 0.0
    %1474 = vmatpush1.msra.mxu0 0.0
    %1475 = vmatprep.subr.mxu0 0.0
    %1476 = vmatpush1.msra.mxu0 0.0
    %1477 = vmatprep.subr.mxu0 0.0
    %1478 = vmatpush1.msra.mxu0 0.0
    %1479 = vmatprep.subr.mxu0 0.0
    %1480 = vmatpush1.msra.mxu0 0.0
    %1481 = vmatprep.subr.mxu0 0.0
    %1482 = vmatpush1.msra.mxu0 0.0
    %1483 = vmatprep.subr.mxu0 0.0
    %1484 = vmatpush1.msra.mxu0 0.0
    %1485 = vmatprep.subr.mxu0 0.0
    %1486 = vmatpush1.msra.mxu0 0.0
    %1487 = vmatprep.subr.mxu0 0.0
    %1488 = vmatpush1.msra.mxu0 0.0
    %1489 = vmatprep.subr.mxu0 0.0
    %1490 = vmatpush1.msra.mxu0 0.0
    %1491 = vmatprep.subr.mxu0 0.0
    %1492 = vmatpush1.msra.mxu0 0.0
    %1493 = vmatprep.subr.mxu0 0.0
    %1494 = vmatpush1.msra.mxu0 0.0
    %1495 = vmatprep.subr.mxu0 0.0
    %1496 = vmatpush1.msra.mxu0 0.0
    %1497 = vmatprep.subr.mxu0 0.0
    %1498 = vmatpush1.msra.mxu0 0.0
    %1499 = vmatprep.subr.mxu0 0.0
    %1500 = vmatpush1.msra.mxu0 0.0
    %1501 = vmatprep.subr.mxu0 0.0
    %1502 = vmatpush1.msra.mxu0 0.0
    %1503 = vmatprep.mubr.f32.mxu0 0.0
    %1504 = vmatmul.mubr.f32.gmra.mrb[0].mxu0 %v1431
    %v1505 = vpop.f32.mrb[0].mxu0
    %v1506 = vadd.f32 0.0, %v1505
    %v1507 = vpop.f32.mrb[0].mxu0
    %1508 = vmatprep.mubr.f32.mxu0 0.0
    %1509 = vmatmul.mubr.f32.gmra.mrb[0].mxu0 %v1434
    %v1510 = vpop.f32.mrb[0].mxu0
    %v1511 = vadd.f32 0.0, %v1510
    %v1512 = vpop.f32.mrb[0].mxu0
    %1513 = vmatprep.mubr.f32.mxu0 0.0
    %1514 = vmatmul.mubr.f32.gmra.mrb[0].mxu0 %v1437
    %v1515 = vpop.f32.mrb[0].mxu0
    %v1516 = vadd.f32 0.0, %v1515
    %v1517 = vpop.f32.mrb[0].mxu0
    %1518 = vdwg.mxu0
    %v1520 = vsel %vm241, %v1326, 0
    %v1523 = vsel %vm241, %v1327, 0
    %v1526 = vsel %vm241, %v1328, 0
    %1528 = vmatprep.subr.mxu0 0.0
    %1529 = vmatpush1.msra.mxu0 %v1414
    %1530 = vmatprep.subr.mxu0 0.0
    %1531 = vmatpush1.msra.mxu0 %v1419
    %1532 = vmatprep.subr.mxu0 0.0
    %1533 = vmatpush1.msra.mxu0 0.0
    %1534 = vmatprep.subr.mxu0 0.0
    %1535 = vmatpush1.msra.mxu0 0.0
    %1536 = vmatprep.subr.mxu0 0.0
    %1537 = vmatpush1.msra.mxu0 0.0
    %1538 = vmatprep.subr.mxu0 0.0
    %1539 = vmatpush1.msra.mxu0 0.0
    %1540 = vmatprep.subr.mxu0 0.0
    %1541 = vmatpush1.msra.mxu0 0.0
    %1542 = vmatprep.subr.mxu0 0.0
    %1543 = vmatpush1.msra.mxu0 0.0
    %1544 = vmatprep.subr.mxu0 0.0
    %1545 = vmatpush1.msra.mxu0 0.0
    %1546 = vmatprep.subr.mxu0 0.0
    %1547 = vmatpush1.msra.mxu0 0.0
    %1548 = vmatprep.subr.mxu0 0.0
    %1549 = vmatpush1.msra.mxu0 0.0
    %1550 = vmatprep.subr.mxu0 0.0
    %1551 = vmatpush1.msra.mxu0 0.0
    %1552 = vmatprep.subr.mxu0 0.0
    %1553 = vmatpush1.msra.mxu0 0.0
    %1554 = vmatprep.subr.mxu0 0.0
    %1555 = vmatpush1.msra.mxu0 0.0
    %1556 = vmatprep.subr.mxu0 0.0
    %1557 = vmatpush1.msra.mxu0 0.0
    %1558 = vmatprep.subr.mxu0 0.0
    %1559 = vmatpush1.msra.mxu0 0.0
    %1560 = vmatprep.subr.mxu0 0.0
    %1561 = vmatpush1.msra.mxu0 0.0
    %1562 = vmatprep.subr.mxu0 0.0
    %1563 = vmatpush1.msra.mxu0 0.0
    %1564 = vmatprep.subr.mxu0 0.0
    %1565 = vmatpush1.msra.mxu0 0.0
    %1566 = vmatprep.subr.mxu0 0.0
    %1567 = vmatpush1.msra.mxu0 0.0
    %1568 = vmatprep.subr.mxu0 0.0
    %1569 = vmatpush1.msra.mxu0 0.0
    %1570 = vmatprep.subr.mxu0 0.0
    %1571 = vmatpush1.msra.mxu0 0.0
    %1572 = vmatprep.subr.mxu0 0.0
    %1573 = vmatpush1.msra.mxu0 0.0
    %1574 = vmatprep.subr.mxu0 0.0
    %1575 = vmatpush1.msra.mxu0 0.0
    %1576 = vmatprep.subr.mxu0 0.0
    %1577 = vmatpush1.msra.mxu0 0.0
    %1578 = vmatprep.subr.mxu0 0.0
    %1579 = vmatpush1.msra.mxu0 0.0
    %1580 = vmatprep.subr.mxu0 0.0
    %1581 = vmatpush1.msra.mxu0 0.0
    %1582 = vmatprep.subr.mxu0 0.0
    %1583 = vmatpush1.msra.mxu0 0.0
    %1584 = vmatprep.subr.mxu0 0.0
    %1585 = vmatpush1.msra.mxu0 0.0
    %1586 = vmatprep.subr.mxu0 0.0
    %1587 = vmatpush1.msra.mxu0 0.0
    %1588 = vmatprep.subr.mxu0 0.0
    %1589 = vmatpush1.msra.mxu0 0.0
    %1590 = vmatprep.subr.mxu0 0.0
    %1591 = vmatpush1.msra.mxu0 0.0
    %1592 = vmatprep.mubr.f32.mxu0 0.0
    %1593 = vmatmul.mubr.f32.gmra.mrb[0].mxu0 %v1520
    %v1594 = vpop.f32.mrb[0].mxu0
    %v1595 = vadd.f32 %v1506, %v1594
    %v1596 = vpop.f32.mrb[0].mxu0
    %1597 = vmatprep.mubr.f32.mxu0 0.0
    %1598 = vmatmul.mubr.f32.gmra.mrb[0].mxu0 %v1523
    %v1599 = vpop.f32.mrb[0].mxu0
    %v1600 = vadd.f32 %v1511, %v1599
    %v1601 = vpop.f32.mrb[0].mxu0
    %1602 = vmatprep.mubr.f32.mxu0 0.0
    %1603 = vmatmul.mubr.f32.gmra.mrb[0].mxu0 %v1526
    %v1604 = vpop.f32.mrb[0].mxu0
    %v1605 = vadd.f32 %v1516, %v1604
    %v1606 = vpop.f32.mrb[0].mxu0
    %1607 = vdwg.mxu0
    %1608 = vrot.lane.b32.xlu0 %v1414, 64
    %v1609 = vpop.permute.xlu0 %1608
    %1610 = vrot.lane.b32.xlu0 %v1419, 64
    %v1611 = vpop.permute.xlu0 %1610
    %v1615 = vsel %vm241, %v1332, 0
    %v1618 = vsel %vm241, %v1333, 0
    %v1621 = vsel %vm241, %v1334, 0
    %1623 = vmatprep.subr.mxu0 0.0
    %1624 = vmatpush1.msra.mxu0 %v1609
    %1625 = vmatprep.subr.mxu0 0.0
    %1626 = vmatpush1.msra.mxu0 %v1611
    %1627 = vmatprep.subr.mxu0 0.0
    %1628 = vmatpush1.msra.mxu0 0.0
    %1629 = vmatprep.subr.mxu0 0.0
    %1630 = vmatpush1.msra.mxu0 0.0
    %1631 = vmatprep.subr.mxu0 0.0
    %1632 = vmatpush1.msra.mxu0 0.0
    %1633 = vmatprep.subr.mxu0 0.0
    %1634 = vmatpush1.msra.mxu0 0.0
    %1635 = vmatprep.subr.mxu0 0.0
    %1636 = vmatpush1.msra.mxu0 0.0
    %1637 = vmatprep.subr.mxu0 0.0
    %1638 = vmatpush1.msra.mxu0 0.0
    %1639 = vmatprep.subr.mxu0 0.0
    %1640 = vmatpush1.msra.mxu0 0.0
    %1641 = vmatprep.subr.mxu0 0.0
    %1642 = vmatpush1.msra.mxu0 0.0
    %1643 = vmatprep.subr.mxu0 0.0
    %1644 = vmatpush1.msra.mxu0 0.0
    %1645 = vmatprep.subr.mxu0 0.0
    %1646 = vmatpush1.msra.mxu0 0.0
    %1647 = vmatprep.subr.mxu0 0.0
    %1648 = vmatpush1.msra.mxu0 0.0
    %1649 = vmatprep.subr.mxu0 0.0
    %1650 = vmatpush1.msra.mxu0 0.0
    %1651 = vmatprep.subr.mxu0 0.0
    %1652 = vmatpush1.msra.mxu0 0.0
    %1653 = vmatprep.subr.mxu0 0.0
    %1654 = vmatpush1.msra.mxu0 0.0
    %1655 = vmatprep.subr.mxu0 0.0
    %1656 = vmatpush1.msra.mxu0 0.0
    %1657 = vmatprep.subr.mxu0 0.0
    %1658 = vmatpush1.msra.mxu0 0.0
    %1659 = vmatprep.subr.mxu0 0.0
    %1660 = vmatpush1.msra.mxu0 0.0
    %1661 = vmatprep.subr.mxu0 0.0
    %1662 = vmatpush1.msra.mxu0 0.0
    %1663 = vmatprep.subr.mxu0 0.0
    %1664 = vmatpush1.msra.mxu0 0.0
    %1665 = vmatprep.subr.mxu0 0.0
    %1666 = vmatpush1.msra.mxu0 0.0
    %1667 = vmatprep.subr.mxu0 0.0
    %1668 = vmatpush1.msra.mxu0 0.0
    %1669 = vmatprep.subr.mxu0 0.0
    %1670 = vmatpush1.msra.mxu0 0.0
    %1671 = vmatprep.subr.mxu0 0.0
    %1672 = vmatpush1.msra.mxu0 0.0
    %1673 = vmatprep.subr.mxu0 0.0
    %1674 = vmatpush1.msra.mxu0 0.0
    %1675 = vmatprep.subr.mxu0 0.0
    %1676 = vmatpush1.msra.mxu0 0.0
    %1677 = vmatprep.subr.mxu0 0.0
    %1678 = vmatpush1.msra.mxu0 0.0
    %1679 = vmatprep.subr.mxu0 0.0
    %1680 = vmatpush1.msra.mxu0 0.0
    %1681 = vmatprep.subr.mxu0 0.0
    %1682 = vmatpush1.msra.mxu0 0.0
    %1683 = vmatprep.subr.mxu0 0.0
    %1684 = vmatpush1.msra.mxu0 0.0
    %1685 = vmatprep.subr.mxu0 0.0
    %1686 = vmatpush1.msra.mxu0 0.0
    %1687 = vmatprep.mubr.f32.mxu0 0.0
    %1688 = vmatmul.mubr.f32.gmra.mrb[0].mxu0 %v1615
    %v1689 = vpop.f32.mrb[0].mxu0
    %v1690 = vadd.f32 0.0, %v1689
    %v1691 = vpop.f32.mrb[0].mxu0
    %1692 = vmatprep.mubr.f32.mxu0 0.0
    %1693 = vmatmul.mubr.f32.gmra.mrb[0].mxu0 %v1618
    %v1694 = vpop.f32.mrb[0].mxu0
    %v1695 = vadd.f32 0.0, %v1694
    %v1696 = vpop.f32.mrb[0].mxu0
    %1697 = vmatprep.mubr.f32.mxu0 0.0
    %1698 = vmatmul.mubr.f32.gmra.mrb[0].mxu0 %v1621
    %v1699 = vpop.f32.mrb[0].mxu0
    %v1700 = vadd.f32 0.0, %v1699
    %v1701 = vpop.f32.mrb[0].mxu0
    %1702 = vdwg.mxu0
    %v1703 = vadd.f32 %v1595, %v1690
    %v1704 = vadd.f32 %v1600, %v1695
    %v1705 = vadd.f32 %v1605, %v1700
    %v1706 = vlaneseq
    %v1707 = vshrl.u32 %v1706, 7
    %v1708 = vsub.s32 0, %v1707
    %v1709 = vrot.slane %v1325, %v1708
    %v1710 = vadd.f32 %v1703, %v1709
    %v1711 = vadd.f32 %v1704, %v1709
    %v1712 = vadd.f32 %v1705, %v1709
    %v1713 = vlaneseq
    %v1714 = vshrl.u32 %v1713, 7
    %v1715 = vsub.s32 1, %v1714
    %v1716 = vrot.slane %v1325, %v1715
    %v1717 = vmul.f32 %v1710, %v1716
    %v1718 = vmul.f32 %v1711, %v1716
    %v1719 = vmul.f32 %v1712, %v1716
    %v1720 = vlaneseq
    %v1721 = vshrl.u32 %v1720, 7
    %v1722 = vsub.s32 2, %v1721
    %v1723 = vrot.slane %v1325, %v1722
    %v1724 = vadd.f32 %v1717, %v1723
    %v1725 = vadd.f32 %v1718, %v1723
    %v1726 = vadd.f32 %v1719, %v1723
    %vm1727 = vcmp.gt.f32.partialorder %v1724, 0.0
    %vm1728 = vcmp.gt.f32.partialorder %v1725, 0.0
    %vm1729 = vcmp.gt.f32.partialorder %v1726, 0.0
    %v1730 = vmin.f32 %v1724, 0.0
    %v1731 = vmin.f32 %v1725, 0.0
    %v1732 = vmin.f32 %v1726, 0.0
    %v1733 = vmul.f32 %v1730, 1.442695
    %v1734 = vpow.pop %v1733
    %v1735 = vmul.f32 %v1731, 1.442695
    %v1736 = vpow.pop %v1735
    %v1737 = vmul.f32 %v1732, 1.442695
    %v1738 = vpow.pop %v1737
    %v1739 = vsub.f32 %v1734, 1.0
    %v1740 = vsub.f32 %v1736, 1.0
    %v1741 = vsub.f32 %v1738, 1.0
    %v1742 = vsel %vm1727, %v1724, %v1739
    %v1743 = vsel %vm1728, %v1725, %v1740
    %v1744 = vsel %vm1729, %v1726, %v1741
    %vm1745 = vcmask 162816
    %v1747 = vsel %vm1745, %v1335, 0
    %v1750 = vsel %vm1745, %v1336, 0
    %vm1752 = vcmask 1043456
    %v1754 = vsel %vm1752, %v1744, 0
    %1756 = vmatprep.subr.mxu0 0.0
    %1757 = vmatpush1.msra.mxu0 %v1742
    %1758 = vmatprep.subr.mxu0 0.0
    %1759 = vmatpush1.msra.mxu0 %v1743
    %1760 = vmatprep.subr.mxu0 0.0
    %1761 = vmatpush1.msra.mxu0 %v1754
    %1762 = vmatprep.subr.mxu0 0.0
    %1763 = vmatpush1.msra.mxu0 0.0
    %1764 = vmatprep.subr.mxu0 0.0
    %1765 = vmatpush1.msra.mxu0 0.0
    %1766 = vmatprep.subr.mxu0 0.0
    %1767 = vmatpush1.msra.mxu0 0.0
    %1768 = vmatprep.subr.mxu0 0.0
    %1769 = vmatpush1.msra.mxu0 0.0
    %1770 = vmatprep.subr.mxu0 0.0
    %1771 = vmatpush1.msra.mxu0 0.0
    %1772 = vmatprep.subr.mxu0 0.0
    %1773 = vmatpush1.msra.mxu0 0.0
    %1774 = vmatprep.subr.mxu0 0.0
    %1775 = vmatpush1.msra.mxu0 0.0
    %1776 = vmatprep.subr.mxu0 0.0
    %1777 = vmatpush1.msra.mxu0 0.0
    %1778 = vmatprep.subr.mxu0 0.0
    %1779 = vmatpush1.msra.mxu0 0.0
    %1780 = vmatprep.subr.mxu0 0.0
    %1781 = vmatpush1.msra.mxu0 0.0
    %1782 = vmatprep.subr.mxu0 0.0
    %1783 = vmatpush1.msra.mxu0 0.0
    %1784 = vmatprep.subr.mxu0 0.0
    %1785 = vmatpush1.msra.mxu0 0.0
    %1786 = vmatprep.subr.mxu0 0.0
    %1787 = vmatpush1.msra.mxu0 0.0
    %1788 = vmatprep.subr.mxu0 0.0
    %1789 = vmatpush1.msra.mxu0 0.0
    %1790 = vmatprep.subr.mxu0 0.0
    %1791 = vmatpush1.msra.mxu0 0.0
    %1792 = vmatprep.subr.mxu0 0.0
    %1793 = vmatpush1.msra.mxu0 0.0
    %1794 = vmatprep.subr.mxu0 0.0
    %1795 = vmatpush1.msra.mxu0 0.0
    %1796 = vmatprep.subr.mxu0 0.0
    %1797 = vmatpush1.msra.mxu0 0.0
    %1798 = vmatprep.subr.mxu0 0.0
    %1799 = vmatpush1.msra.mxu0 0.0
    %1800 = vmatprep.subr.mxu0 0.0
    %1801 = vmatpush1.msra.mxu0 0.0
    %1802 = vmatprep.subr.mxu0 0.0
    %1803 = vmatpush1.msra.mxu0 0.0
    %1804 = vmatprep.subr.mxu0 0.0
    %1805 = vmatpush1.msra.mxu0 0.0
    %1806 = vmatprep.subr.mxu0 0.0
    %1807 = vmatpush1.msra.mxu0 0.0
    %1808 = vmatprep.subr.mxu0 0.0
    %1809 = vmatpush1.msra.mxu0 0.0
    %1810 = vmatprep.subr.mxu0 0.0
    %1811 = vmatpush1.msra.mxu0 0.0
    %1812 = vmatprep.subr.mxu0 0.0
    %1813 = vmatpush1.msra.mxu0 0.0
    %1814 = vmatprep.subr.mxu0 0.0
    %1815 = vmatpush1.msra.mxu0 0.0
    %1816 = vmatprep.subr.mxu0 0.0
    %1817 = vmatpush1.msra.mxu0 0.0
    %1818 = vmatprep.subr.mxu0 0.0
    %1819 = vmatpush1.msra.mxu0 0.0
    %1820 = vmatprep.mubr.f32.mxu0 0.0
    %1821 = vmatmul.mubr.f32.gmra.mrb[0].mxu0 %v1747
    %v1822 = vpop.f32.mrb[0].mxu0
    %v1823 = vadd.f32 0.0, %v1822
    %v1824 = vpop.f32.mrb[0].mxu0
    %1825 = vmatprep.mubr.f32.mxu0 0.0
    %1826 = vmatmul.mubr.f32.gmra.mrb[0].mxu0 %v1750
    %v1827 = vpop.f32.mrb[0].mxu0
    %v1828 = vadd.f32 0.0, %v1827
    %v1829 = vpop.f32.mrb[0].mxu0
    %1830 = vdwg.mxu0
    %v1832 = vsel %vm1745, %v1337, 0
    %v1835 = vsel %vm1745, %v1338, 0
    %1837 = vmatprep.subr.mxu0 0.0
    %1838 = vmatpush1.msra.mxu0 %v1742
    %1839 = vmatprep.subr.mxu0 0.0
    %1840 = vmatpush1.msra.mxu0 %v1743
    %1841 = vmatprep.subr.mxu0 0.0
    %1842 = vmatpush1.msra.mxu0 %v1754
    %1843 = vmatprep.subr.mxu0 0.0
    %1844 = vmatpush1.msra.mxu0 0.0
    %1845 = vmatprep.subr.mxu0 0.0
    %1846 = vmatpush1.msra.mxu0 0.0
    %1847 = vmatprep.subr.mxu0 0.0
    %1848 = vmatpush1.msra.mxu0 0.0
    %1849 = vmatprep.subr.mxu0 0.0
    %1850 = vmatpush1.msra.mxu0 0.0
    %1851 = vmatprep.subr.mxu0 0.0
    %1852 = vmatpush1.msra.mxu0 0.0
    %1853 = vmatprep.subr.mxu0 0.0
    %1854 = vmatpush1.msra.mxu0 0.0
    %1855 = vmatprep.subr.mxu0 0.0
    %1856 = vmatpush1.msra.mxu0 0.0
    %1857 = vmatprep.subr.mxu0 0.0
    %1858 = vmatpush1.msra.mxu0 0.0
    %1859 = vmatprep.subr.mxu0 0.0
    %1860 = vmatpush1.msra.mxu0 0.0
    %1861 = vmatprep.subr.mxu0 0.0
    %1862 = vmatpush1.msra.mxu0 0.0
    %1863 = vmatprep.subr.mxu0 0.0
    %1864 = vmatpush1.msra.mxu0 0.0
    %1865 = vmatprep.subr.mxu0 0.0
    %1866 = vmatpush1.msra.mxu0 0.0
    %1867 = vmatprep.subr.mxu0 0.0
    %1868 = vmatpush1.msra.mxu0 0.0
    %1869 = vmatprep.subr.mxu0 0.0
    %1870 = vmatpush1.msra.mxu0 0.0
    %1871 = vmatprep.subr.mxu0 0.0
    %1872 = vmatpush1.msra.mxu0 0.0
    %1873 = vmatprep.subr.mxu0 0.0
    %1874 = vmatpush1.msra.mxu0 0.0
    %1875 = vmatprep.subr.mxu0 0.0
    %1876 = vmatpush1.msra.mxu0 0.0
    %1877 = vmatprep.subr.mxu0 0.0
    %1878 = vmatpush1.msra.mxu0 0.0
    %1879 = vmatprep.subr.mxu0 0.0
    %1880 = vmatpush1.msra.mxu0 0.0
    %1881 = vmatprep.subr.mxu0 0.0
    %1882 = vmatpush1.msra.mxu0 0.0
    %1883 = vmatprep.subr.mxu0 0.0
    %1884 = vmatpush1.msra.mxu0 0.0
    %1885 = vmatprep.subr.mxu0 0.0
    %1886 = vmatpush1.msra.mxu0 0.0
    %1887 = vmatprep.subr.mxu0 0.0
    %1888 = vmatpush1.msra.mxu0 0.0
    %1889 = vmatprep.subr.mxu0 0.0
    %1890 = vmatpush1.msra.mxu0 0.0
    %1891 = vmatprep.subr.mxu0 0.0
    %1892 = vmatpush1.msra.mxu0 0.0
    %1893 = vmatprep.subr.mxu0 0.0
    %1894 = vmatpush1.msra.mxu0 0.0
    %1895 = vmatprep.subr.mxu0 0.0
    %1896 = vmatpush1.msra.mxu0 0.0
    %1897 = vmatprep.subr.mxu0 0.0
    %1898 = vmatpush1.msra.mxu0 0.0
    %1899 = vmatprep.subr.mxu0 0.0
    %1900 = vmatpush1.msra.mxu0 0.0
    %1901 = vmatprep.mubr.f32.mxu0 0.0
    %1902 = vmatmul.mubr.f32.gmra.mrb[0].mxu0 %v1832
    %v1903 = vpop.f32.mrb[0].mxu0
    %v1904 = vadd.f32 0.0, %v1903
    %v1905 = vpop.f32.mrb[0].mxu0
    %1906 = vmatprep.mubr.f32.mxu0 0.0
    %1907 = vmatmul.mubr.f32.gmra.mrb[0].mxu0 %v1835
    %v1908 = vpop.f32.mrb[0].mxu0
    %v1909 = vadd.f32 0.0, %v1908
    %v1910 = vpop.f32.mrb[0].mxu0
    %1911 = vdwg.mxu0
    %v1912 = vmax.f32 %v1823, %v1904
    %v1913 = vmax.f32 %v1828, %v1909
    %v1915 = vsel %vm1745, %v1339, 0
    %v1918 = vsel %vm1745, %v1340, 0
    %1920 = vmatprep.subr.mxu0 0.0
    %1921 = vmatpush1.msra.mxu0 %v1742
    %1922 = vmatprep.subr.mxu0 0.0
    %1923 = vmatpush1.msra.mxu0 %v1743
    %1924 = vmatprep.subr.mxu0 0.0
    %1925 = vmatpush1.msra.mxu0 %v1754
    %1926 = vmatprep.subr.mxu0 0.0
    %1927 = vmatpush1.msra.mxu0 0.0
    %1928 = vmatprep.subr.mxu0 0.0
    %1929 = vmatpush1.msra.mxu0 0.0
    %1930 = vmatprep.subr.mxu0 0.0
    %1931 = vmatpush1.msra.mxu0 0.0
    %1932 = vmatprep.subr.mxu0 0.0
    %1933 = vmatpush1.msra.mxu0 0.0
    %1934 = vmatprep.subr.mxu0 0.0
    %1935 = vmatpush1.msra.mxu0 0.0
    %1936 = vmatprep.subr.mxu0 0.0
    %1937 = vmatpush1.msra.mxu0 0.0
    %1938 = vmatprep.subr.mxu0 0.0
    %1939 = vmatpush1.msra.mxu0 0.0
    %1940 = vmatprep.subr.mxu0 0.0
    %1941 = vmatpush1.msra.mxu0 0.0
    %1942 = vmatprep.subr.mxu0 0.0
    %1943 = vmatpush1.msra.mxu0 0.0
    %1944 = vmatprep.subr.mxu0 0.0
    %1945 = vmatpush1.msra.mxu0 0.0
    %1946 = vmatprep.subr.mxu0 0.0
    %1947 = vmatpush1.msra.mxu0 0.0
    %1948 = vmatprep.subr.mxu0 0.0
    %1949 = vmatpush1.msra.mxu0 0.0
    %1950 = vmatprep.subr.mxu0 0.0
    %1951 = vmatpush1.msra.mxu0 0.0
    %1952 = vmatprep.subr.mxu0 0.0
    %1953 = vmatpush1.msra.mxu0 0.0
    %1954 = vmatprep.subr.mxu0 0.0
    %1955 = vmatpush1.msra.mxu0 0.0
    %1956 = vmatprep.subr.mxu0 0.0
    %1957 = vmatpush1.msra.mxu0 0.0
    %1958 = vmatprep.subr.mxu0 0.0
    %1959 = vmatpush1.msra.mxu0 0.0
    %1960 = vmatprep.subr.mxu0 0.0
    %1961 = vmatpush1.msra.mxu0 0.0
    %1962 = vmatprep.subr.mxu0 0.0
    %1963 = vmatpush1.msra.mxu0 0.0
    %1964 = vmatprep.subr.mxu0 0.0
    %1965 = vmatpush1.msra.mxu0 0.0
    %1966 = vmatprep.subr.mxu0 0.0
    %1967 = vmatpush1.msra.mxu0 0.0
    %1968 = vmatprep.subr.mxu0 0.0
    %1969 = vmatpush1.msra.mxu0 0.0
    %1970 = vmatprep.subr.mxu0 0.0
    %1971 = vmatpush1.msra.mxu0 0.0
    %1972 = vmatprep.subr.mxu0 0.0
    %1973 = vmatpush1.msra.mxu0 0.0
    %1974 = vmatprep.subr.mxu0 0.0
    %1975 = vmatpush1.msra.mxu0 0.0
    %1976 = vmatprep.subr.mxu0 0.0
    %1977 = vmatpush1.msra.mxu0 0.0
    %1978 = vmatprep.subr.mxu0 0.0
    %1979 = vmatpush1.msra.mxu0 0.0
    %1980 = vmatprep.subr.mxu0 0.0
    %1981 = vmatpush1.msra.mxu0 0.0
    %1982 = vmatprep.subr.mxu0 0.0
    %1983 = vmatpush1.msra.mxu0 0.0
    %1984 = vmatprep.mubr.f32.mxu0 0.0
    %1985 = vmatmul.mubr.f32.gmra.mrb[0].mxu0 %v1915
    %v1986 = vpop.f32.mrb[0].mxu0
    %v1987 = vadd.f32 0.0, %v1986
    %v1988 = vpop.f32.mrb[0].mxu0
    %1989 = vmatprep.mubr.f32.mxu0 0.0
    %1990 = vmatmul.mubr.f32.gmra.mrb[0].mxu0 %v1918
    %v1991 = vpop.f32.mrb[0].mxu0
    %v1992 = vadd.f32 0.0, %v1991
    %v1993 = vpop.f32.mrb[0].mxu0
    %1994 = vdwg.mxu0
    %v1995 = vmax.f32 %v1912, %v1987
    %v1996 = vmax.f32 %v1913, %v1992
    %v1997 = vld [vmem:[#allocation5 + $0x158] sm:$0xff]
    %v1998 = vld [vmem:[#allocation5 + $0x160] sm:$0xff]
    %v1999 = vld [vmem:[#allocation5 + $0x168] sm:$0xff]
    %v2000 = vld [vmem:[#allocation5 + $0x170] sm:$0xff]
    %v2001 = vld [vmem:[#allocation5 + $0x178] sm:$0xff]
    %v2002 = vld [vmem:[#allocation5 + $0x180] sm:$0xff]
    %v2003 = vld [vmem:[#allocation5 + $0x188] sm:$0xff]
    %v2004 = vld [vmem:[#allocation5 + $0x190] sm:$0xff]
    %v2005 = vld [vmem:[#allocation5 + $0x198] sm:$0xff]
    %v2006 = vld [vmem:[#allocation5 + $0x1a0] sm:$0xff]
    %v2007 = vld [vmem:[#allocation5 + $0x1a8] sm:$0xff]
    %v2008 = vld [vmem:[#allocation5 + $0x1b0] sm:$0xff]
    %v2009 = vld [vmem:[#allocation5 + $0x1b8] sm:$0xff]
    %v2010 = vld [vmem:[#allocation5 + $0x1c0] sm:$0xff]
    %v2011 = vld [vmem:[#allocation5 + $0x1c8] sm:$0xff]
    %v2012 = vld [vmem:[#allocation5 + $0x1d0] sm:$0xff]
    %v2013 = vld [vmem:[#allocation5 + $0x1d8] sm:$0xff]
    %v2014 = vld [vmem:[#allocation5 + $0x1e0] sm:$0xff]
    %v2015 = vld [vmem:[#allocation5 + $0x1e8] sm:$0xff]
    %v2016 = vld [vmem:[#allocation5 + $0x1f0] sm:$0xff]
    %v2017 = vld [vmem:[#allocation5 + $0x1f8] sm:$0xff]
    %v2018 = vld [vmem:[#allocation5 + $0x200] sm:$0xff]
    %v2019 = vld [vmem:[#allocation5 + $0x208] sm:$0x3]
    %v2020 = vlaneseq
    %v2021 = vshrl.u32 %v2020, 7
    %v2022 = vsub.s32 0, %v2021
    %v2023 = vrot.slane %v2017, %v2022
    %v2025 = vsel %vm69, %v1995, 0
    %v2028 = vsel %vm69, %v1996, 0
    %2030 = vmatprep.subr.mxu0 0.0
    %2031 = vmatpush1.msra.mxu0 %v1997
    %2032 = vmatprep.subr.mxu0 0.0
    %2033 = vmatpush1.msra.mxu0 %v1998
    %2034 = vmatprep.subr.mxu0 0.0
    %2035 = vmatpush1.msra.mxu0 %v1999
    %2036 = vmatprep.subr.mxu0 0.0
    %2037 = vmatpush1.msra.mxu0 %v2000
    %2038 = vmatprep.subr.mxu0 0.0
    %2039 = vmatpush1.msra.mxu0 0.0
    %2040 = vmatprep.subr.mxu0 0.0
    %2041 = vmatpush1.msra.mxu0 0.0
    %2042 = vmatprep.subr.mxu0 0.0
    %2043 = vmatpush1.msra.mxu0 0.0
    %2044 = vmatprep.subr.mxu0 0.0
    %2045 = vmatpush1.msra.mxu0 0.0
    %2046 = vmatprep.subr.mxu0 0.0
    %2047 = vmatpush1.msra.mxu0 0.0
    %2048 = vmatprep.subr.mxu0 0.0
    %2049 = vmatpush1.msra.mxu0 0.0
    %2050 = vmatprep.subr.mxu0 0.0
    %2051 = vmatpush1.msra.mxu0 0.0
    %2052 = vmatprep.subr.mxu0 0.0
    %2053 = vmatpush1.msra.mxu0 0.0
    %2054 = vmatprep.subr.mxu0 0.0
    %2055 = vmatpush1.msra.mxu0 0.0
    %2056 = vmatprep.subr.mxu0 0.0
    %2057 = vmatpush1.msra.mxu0 0.0
    %2058 = vmatprep.subr.mxu0 0.0
    %2059 = vmatpush1.msra.mxu0 0.0
    %2060 = vmatprep.subr.mxu0 0.0
    %2061 = vmatpush1.msra.mxu0 0.0
    %2062 = vmatprep.subr.mxu0 0.0
    %2063 = vmatpush1.msra.mxu0 0.0
    %2064 = vmatprep.subr.mxu0 0.0
    %2065 = vmatpush1.msra.mxu0 0.0
    %2066 = vmatprep.subr.mxu0 0.0
    %2067 = vmatpush1.msra.mxu0 0.0
    %2068 = vmatprep.subr.mxu0 0.0
    %2069 = vmatpush1.msra.mxu0 0.0
    %2070 = vmatprep.subr.mxu0 0.0
    %2071 = vmatpush1.msra.mxu0 0.0
    %2072 = vmatprep.subr.mxu0 0.0
    %2073 = vmatpush1.msra.mxu0 0.0
    %2074 = vmatprep.subr.mxu0 0.0
    %2075 = vmatpush1.msra.mxu0 0.0
    %2076 = vmatprep.subr.mxu0 0.0
    %2077 = vmatpush1.msra.mxu0 0.0
    %2078 = vmatprep.subr.mxu0 0.0
    %2079 = vmatpush1.msra.mxu0 0.0
    %2080 = vmatprep.subr.mxu0 0.0
    %2081 = vmatpush1.msra.mxu0 0.0
    %2082 = vmatprep.subr.mxu0 0.0
    %2083 = vmatpush1.msra.mxu0 0.0
    %2084 = vmatprep.subr.mxu0 0.0
    %2085 = vmatpush1.msra.mxu0 0.0
    %2086 = vmatprep.subr.mxu0 0.0
    %2087 = vmatpush1.msra.mxu0 0.0
    %2088 = vmatprep.subr.mxu0 0.0
    %2089 = vmatpush1.msra.mxu0 0.0
    %2090 = vmatprep.subr.mxu0 0.0
    %2091 = vmatpush1.msra.mxu0 0.0
    %2092 = vmatprep.subr.mxu0 0.0
    %2093 = vmatpush1.msra.mxu0 0.0
    %2094 = vmatprep.mubr.f32.mxu0 0.0
    %2095 = vmatmul.mubr.f32.gmra.mrb[0].mxu0 %v2025
    %v2096 = vpop.f32.mrb[0].mxu0
    %v2097 = vadd.f32 %v2023, %v2096
    %v2098 = vpop.f32.mrb[0].mxu0
    %2099 = vmatprep.mubr.f32.mxu0 0.0
    %2100 = vmatmul.mubr.f32.gmra.mrb[0].mxu0 %v2028
    %v2101 = vpop.f32.mrb[0].mxu0
    %v2102 = vadd.f32 %v2023, %v2101
    %v2103 = vpop.f32.mrb[0].mxu0
    %2104 = vdwg.mxu0
    %2107 = vrot.lane.b32.xlu0 %v2097, 96
    %v2108 = vpop.permute.xlu0 %2107
    %2109 = vrot.lane.b32.xlu0 %v2102, 96
    %v2110 = vpop.permute.xlu0 %2109
    %v2111 = vsel %vm157, %v2097, 0
    %v2113 = vsel %vm157, %v2102, 0
    %v2115 = vsel %vm157, %v2108, 0
    %v2117 = vsel %vm157, %v2110, 0
    %2119 = vmatprep.subr.mxu0 0.0
    %2120 = vmatpush1.xpose.msra.mxu0 %v2115
    %2121 = vmatprep.subr.mxu0 0.0
    %2122 = vmatpush1.xpose.msra.mxu0 %v2117
    %2123 = vmatprep.subr.mxu0 0.0
    %2124 = vmatpush1.xpose.msra.mxu0 0.0
    %2125 = vmatprep.subr.mxu0 0.0
    %2126 = vmatpush1.xpose.msra.mxu0 0.0
    %2127 = vmatprep.subr.mxu0 0.0
    %2128 = vmatpush1.xpose.msra.mxu0 0.0
    %2129 = vmatprep.subr.mxu0 0.0
    %2130 = vmatpush1.xpose.msra.mxu0 0.0
    %2131 = vmatprep.subr.mxu0 0.0
    %2132 = vmatpush1.xpose.msra.mxu0 0.0
    %2133 = vmatprep.subr.mxu0 0.0
    %2134 = vmatpush1.xpose.msra.mxu0 0.0
    %2135 = vmatprep.subr.mxu0 0.0
    %2136 = vmatpush1.xpose.msra.mxu0 0.0
    %2137 = vmatprep.subr.mxu0 0.0
    %2138 = vmatpush1.xpose.msra.mxu0 0.0
    %2139 = vmatprep.subr.mxu0 0.0
    %2140 = vmatpush1.xpose.msra.mxu0 0.0
    %2141 = vmatprep.subr.mxu0 0.0
    %2142 = vmatpush1.xpose.msra.mxu0 0.0
    %2143 = vmatprep.subr.mxu0 0.0
    %2144 = vmatpush1.xpose.msra.mxu0 0.0
    %2145 = vmatprep.subr.mxu0 0.0
    %2146 = vmatpush1.xpose.msra.mxu0 0.0
    %2147 = vmatprep.subr.mxu0 0.0
    %2148 = vmatpush1.xpose.msra.mxu0 0.0
    %2149 = vmatprep.subr.mxu0 0.0
    %2150 = vmatpush1.xpose.msra.mxu0 0.0
    %2151 = vmatprep.subr.mxu0 0.0
    %2152 = vmatpush1.xpose.msra.mxu0 0.0
    %2153 = vmatprep.subr.mxu0 0.0
    %2154 = vmatpush1.xpose.msra.mxu0 0.0
    %2155 = vmatprep.subr.mxu0 0.0
    %2156 = vmatpush1.xpose.msra.mxu0 0.0
    %2157 = vmatprep.subr.mxu0 0.0
    %2158 = vmatpush1.xpose.msra.mxu0 0.0
    %2159 = vmatprep.subr.mxu0 0.0
    %2160 = vmatpush1.xpose.msra.mxu0 0.0
    %2161 = vmatprep.subr.mxu0 0.0
    %2162 = vmatpush1.xpose.msra.mxu0 0.0
    %2163 = vmatprep.subr.mxu0 0.0
    %2164 = vmatpush1.xpose.msra.mxu0 0.0
    %2165 = vmatprep.subr.mxu0 0.0
    %2166 = vmatpush1.xpose.msra.mxu0 0.0
    %2167 = vmatprep.subr.mxu0 0.0
    %2168 = vmatpush1.xpose.msra.mxu0 0.0
    %2169 = vmatprep.subr.mxu0 0.0
    %2170 = vmatpush1.xpose.msra.mxu0 0.0
    %2171 = vmatprep.subr.mxu0 0.0
    %2172 = vmatpush1.xpose.msra.mxu0 0.0
    %2173 = vmatprep.subr.mxu0 0.0
    %2174 = vmatpush1.xpose.msra.mxu0 0.0
    %2175 = vmatprep.subr.mxu0 0.0
    %2176 = vmatpush1.xpose.msra.mxu0 0.0
    %2177 = vmatprep.subr.mxu0 0.0
    %2178 = vmatpush1.xpose.msra.mxu0 0.0
    %2179 = vmatprep.subr.mxu0 0.0
    %2180 = vmatpush1.xpose.msra.mxu0 0.0
    %2181 = vmatprep.subr.mxu0 0.0
    %2182 = vmatpush1.xpose.msra.mxu0 0.0
    %2183 = vmatprep.mubr.f32.mxu0 0.0
    %2184 = vmatmul.mubr.f32.gmra.mrb[0].mxu0 %v2111
    %v2185 = vpop.f32.mrb[0].mxu0
    %v2186 = vadd.f32 %v2018, %v2185
    %v2187 = vpop.f32.mrb[0].mxu0
    %2188 = vmatprep.mubr.f32.mxu0 0.0
    %2189 = vmatmul.mubr.f32.gmra.mrb[0].mxu0 %v2113
    %v2190 = vpop.f32.mrb[0].mxu0
    %v2191 = vadd.f32 %v2019, %v2190
    %v2192 = vpop.f32.mrb[0].mxu0
    %2193 = vdwg.mxu0
    %vm2194 = vcmask 80896
    %v2195 = vsel %vm2194, %v2186, -inf
    %2196 = vmax.xlane.f32.xlu0 %v2195
    %v2197 = vpop.xlane.xlu0 %2196
    %vm2198 = vcmask 74752
    %v2199 = vsel %vm2198, %v2191, -inf
    %2200 = vmax.xlane.f32.xlu0 %v2199
    %v2201 = vpop.xlane.xlu0 %2200
    %v2202 = vsub.f32 %v2186, %v2197
    %v2203 = vsub.f32 %v2191, %v2201
    %v2204 = vmul.f32 %v2202, 1.442695
    %v2205 = vpow.pop %v2204
    %v2206 = vmul.f32 %v2203, 1.442695
    %v2207 = vpow.pop %v2206
    %v2208 = vsel %vm2194, %v2205, 0.0
    %2209 = vadd.xlane.f32.xlu0 %v2208
    %v2210 = vpop.xlane.xlu0 %2209
    %v2211 = vsel %vm2198, %v2207, 0.0
    %2212 = vadd.xlane.f32.xlu0 %v2211
    %v2213 = vpop.xlane.xlu0 %2212
    %v2214 = vrcp.pop %v2210
    %v2215 = vrcp.pop %v2213
    %v2216 = vmul.f32 %v2205, %v2214
    %v2217 = vmul.f32 %v2207, %v2215
    %2218 = vrot.lane.b32.xlu0 %v2097, 64
    %v2219 = vpop.permute.xlu0 %2218
    %2220 = vrot.lane.b32.xlu0 %v2102, 64
    %v2221 = vpop.permute.xlu0 %2220
    %v2224 = vsel %vm2194, %v2216, 0
    %v2227 = vsel %vm2194, %v2217, 0
    %vm2229 = vcmask 1041408
    %v2230 = vsel %vm2229, %v2221, 0
    %2232 = vmatprep.subr.mxu0 0.0
    %2233 = vmatpush1.msra.mxu0 %v2219
    %2234 = vmatprep.subr.mxu0 0.0
    %2235 = vmatpush1.msra.mxu0 %v2230
    %2236 = vmatprep.subr.mxu0 0.0
    %2237 = vmatpush1.msra.mxu0 0.0
    %2238 = vmatprep.subr.mxu0 0.0
    %2239 = vmatpush1.msra.mxu0 0.0
    %2240 = vmatprep.subr.mxu0 0.0
    %2241 = vmatpush1.msra.mxu0 0.0
    %2242 = vmatprep.subr.mxu0 0.0
    %2243 = vmatpush1.msra.mxu0 0.0
    %2244 = vmatprep.subr.mxu0 0.0
    %2245 = vmatpush1.msra.mxu0 0.0
    %2246 = vmatprep.subr.mxu0 0.0
    %2247 = vmatpush1.msra.mxu0 0.0
    %2248 = vmatprep.subr.mxu0 0.0
    %2249 = vmatpush1.msra.mxu0 0.0
    %2250 = vmatprep.subr.mxu0 0.0
    %2251 = vmatpush1.msra.mxu0 0.0
    %2252 = vmatprep.subr.mxu0 0.0
    %2253 = vmatpush1.msra.mxu0 0.0
    %2254 = vmatprep.subr.mxu0 0.0
    %2255 = vmatpush1.msra.mxu0 0.0
    %2256 = vmatprep.subr.mxu0 0.0
    %2257 = vmatpush1.msra.mxu0 0.0
    %2258 = vmatprep.subr.mxu0 0.0
    %2259 = vmatpush1.msra.mxu0 0.0
    %2260 = vmatprep.subr.mxu0 0.0
    %2261 = vmatpush1.msra.mxu0 0.0
    %2262 = vmatprep.subr.mxu0 0.0
    %2263 = vmatpush1.msra.mxu0 0.0
    %2264 = vmatprep.subr.mxu0 0.0
    %2265 = vmatpush1.msra.mxu0 0.0
    %2266 = vmatprep.subr.mxu0 0.0
    %2267 = vmatpush1.msra.mxu0 0.0
    %2268 = vmatprep.subr.mxu0 0.0
    %2269 = vmatpush1.msra.mxu0 0.0
    %2270 = vmatprep.subr.mxu0 0.0
    %2271 = vmatpush1.msra.mxu0 0.0
    %2272 = vmatprep.subr.mxu0 0.0
    %2273 = vmatpush1.msra.mxu0 0.0
    %2274 = vmatprep.subr.mxu0 0.0
    %2275 = vmatpush1.msra.mxu0 0.0
    %2276 = vmatprep.subr.mxu0 0.0
    %2277 = vmatpush1.msra.mxu0 0.0
    %2278 = vmatprep.subr.mxu0 0.0
    %2279 = vmatpush1.msra.mxu0 0.0
    %2280 = vmatprep.subr.mxu0 0.0
    %2281 = vmatpush1.msra.mxu0 0.0
    %2282 = vmatprep.subr.mxu0 0.0
    %2283 = vmatpush1.msra.mxu0 0.0
    %2284 = vmatprep.subr.mxu0 0.0
    %2285 = vmatpush1.msra.mxu0 0.0
    %2286 = vmatprep.subr.mxu0 0.0
    %2287 = vmatpush1.msra.mxu0 0.0
    %2288 = vmatprep.subr.mxu0 0.0
    %2289 = vmatpush1.msra.mxu0 0.0
    %2290 = vmatprep.subr.mxu0 0.0
    %2291 = vmatpush1.msra.mxu0 0.0
    %2292 = vmatprep.subr.mxu0 0.0
    %2293 = vmatpush1.msra.mxu0 0.0
    %2294 = vmatprep.subr.mxu0 0.0
    %2295 = vmatpush1.msra.mxu0 0.0
    %2296 = vmatprep.mubr.f32.mxu0 0.0
    %2297 = vmatmul.mubr.f32.gmra.mrb[0].mxu0 %v2224
    %v2298 = vpop.f32.mrb[0].mxu0
    %v2299 = vadd.f32 0.0, %v2298
    %v2300 = vpop.f32.mrb[0].mxu0
    %2301 = vmatprep.mubr.f32.mxu0 0.0
    %2302 = vmatmul.mubr.f32.gmra.mrb[0].mxu0 %v2227
    %v2303 = vpop.f32.mrb[0].mxu0
    %v2304 = vadd.f32 0.0, %v2303
    %v2305 = vpop.f32.mrb[0].mxu0
    %2306 = vdwg.mxu0
    %2307 = vrot.lane.b32.xlu0 %v2097, 120
    %v2308 = vpop.permute.xlu0 %2307
    %2309 = vrot.lane.b32.xlu0 %v2102, 120
    %v2310 = vpop.permute.xlu0 %2309
    %2311 = vrot.lane.b32.xlu0 %v2097, 88
    %v2312 = vpop.permute.xlu0 %2311
    %2313 = vrot.lane.b32.xlu0 %v2102, 88
    %v2314 = vpop.permute.xlu0 %2313
    %v2315 = vsel %vm157, %v2308, 0
    %v2317 = vsel %vm157, %v2310, 0
    %v2319 = vsel %vm157, %v2312, 0
    %v2321 = vsel %vm157, %v2314, 0
    %2323 = vmatprep.subr.mxu0 0.0
    %2324 = vmatpush1.xpose.msra.mxu0 %v2319
    %2325 = vmatprep.subr.mxu0 0.0
    %2326 = vmatpush1.xpose.msra.mxu0 %v2321
    %2327 = vmatprep.subr.mxu0 0.0
    %2328 = vmatpush1.xpose.msra.mxu0 0.0
    %2329 = vmatprep.subr.mxu0 0.0
    %2330 = vmatpush1.xpose.msra.mxu0 0.0
    %2331 = vmatprep.subr.mxu0 0.0
    %2332 = vmatpush1.xpose.msra.mxu0 0.0
    %2333 = vmatprep.subr.mxu0 0.0
    %2334 = vmatpush1.xpose.msra.mxu0 0.0
    %2335 = vmatprep.subr.mxu0 0.0
    %2336 = vmatpush1.xpose.msra.mxu0 0.0
    %2337 = vmatprep.subr.mxu0 0.0
    %2338 = vmatpush1.xpose.msra.mxu0 0.0
    %2339 = vmatprep.subr.mxu0 0.0
    %2340 = vmatpush1.xpose.msra.mxu0 0.0
    %2341 = vmatprep.subr.mxu0 0.0
    %2342 = vmatpush1.xpose.msra.mxu0 0.0
    %2343 = vmatprep.subr.mxu0 0.0
    %2344 = vmatpush1.xpose.msra.mxu0 0.0
    %2345 = vmatprep.subr.mxu0 0.0
    %2346 = vmatpush1.xpose.msra.mxu0 0.0
    %2347 = vmatprep.subr.mxu0 0.0
    %2348 = vmatpush1.xpose.msra.mxu0 0.0
    %2349 = vmatprep.subr.mxu0 0.0
    %2350 = vmatpush1.xpose.msra.mxu0 0.0
    %2351 = vmatprep.subr.mxu0 0.0
    %2352 = vmatpush1.xpose.msra.mxu0 0.0
    %2353 = vmatprep.subr.mxu0 0.0
    %2354 = vmatpush1.xpose.msra.mxu0 0.0
    %2355 = vmatprep.subr.mxu0 0.0
    %2356 = vmatpush1.xpose.msra.mxu0 0.0
    %2357 = vmatprep.subr.mxu0 0.0
    %2358 = vmatpush1.xpose.msra.mxu0 0.0
    %2359 = vmatprep.subr.mxu0 0.0
    %2360 = vmatpush1.xpose.msra.mxu0 0.0
    %2361 = vmatprep.subr.mxu0 0.0
    %2362 = vmatpush1.xpose.msra.mxu0 0.0
    %2363 = vmatprep.subr.mxu0 0.0
    %2364 = vmatpush1.xpose.msra.mxu0 0.0
    %2365 = vmatprep.subr.mxu0 0.0
    %2366 = vmatpush1.xpose.msra.mxu0 0.0
    %2367 = vmatprep.subr.mxu0 0.0
    %2368 = vmatpush1.xpose.msra.mxu0 0.0
    %2369 = vmatprep.subr.mxu0 0.0
    %2370 = vmatpush1.xpose.msra.mxu0 0.0
    %2371 = vmatprep.subr.mxu0 0.0
    %2372 = vmatpush1.xpose.msra.mxu0 0.0
    %2373 = vmatprep.subr.mxu0 0.0
    %2374 = vmatpush1.xpose.msra.mxu0 0.0
    %2375 = vmatprep.subr.mxu0 0.0
    %2376 = vmatpush1.xpose.msra.mxu0 0.0
    %2377 = vmatprep.subr.mxu0 0.0
    %2378 = vmatpush1.xpose.msra.mxu0 0.0
    %2379 = vmatprep.subr.mxu0 0.0
    %2380 = vmatpush1.xpose.msra.mxu0 0.0
    %2381 = vmatprep.subr.mxu0 0.0
    %2382 = vmatpush1.xpose.msra.mxu0 0.0
    %2383 = vmatprep.subr.mxu0 0.0
    %2384 = vmatpush1.xpose.msra.mxu0 0.0
    %2385 = vmatprep.subr.mxu0 0.0
    %2386 = vmatpush1.xpose.msra.mxu0 0.0
    %2387 = vmatprep.mubr.f32.mxu0 0.0
    %2388 = vmatmul.mubr.f32.gmra.mrb[0].mxu0 %v2315
    %v2389 = vpop.f32.mrb[0].mxu0
    %v2390 = vadd.f32 %v2018, %v2389
    %v2391 = vpop.f32.mrb[0].mxu0
    %2392 = vmatprep.mubr.f32.mxu0 0.0
    %2393 = vmatmul.mubr.f32.gmra.mrb[0].mxu0 %v2317
    %v2394 = vpop.f32.mrb[0].mxu0
    %v2395 = vadd.f32 %v2019, %v2394
    %v2396 = vpop.f32.mrb[0].mxu0
    %2397 = vdwg.mxu0
    %v2398 = vsel %vm2194, %v2390, -inf
    %2399 = vmax.xlane.f32.xlu0 %v2398
    %v2400 = vpop.xlane.xlu0 %2399
    %v2401 = vsel %vm2198, %v2395, -inf
    %2402 = vmax.xlane.f32.xlu0 %v2401
    %v2403 = vpop.xlane.xlu0 %2402
    %v2404 = vsub.f32 %v2390, %v2400
    %v2405 = vsub.f32 %v2395, %v2403
    %v2406 = vmul.f32 %v2404, 1.442695
    %v2407 = vpow.pop %v2406
    %v2408 = vmul.f32 %v2405, 1.442695
    %v2409 = vpow.pop %v2408
    %v2410 = vsel %vm2194, %v2407, 0.0
    %2411 = vadd.xlane.f32.xlu0 %v2410
    %v2412 = vpop.xlane.xlu0 %2411
    %v2413 = vsel %vm2198, %v2409, 0.0
    %2414 = vadd.xlane.f32.xlu0 %v2413
    %v2415 = vpop.xlane.xlu0 %2414
    %v2416 = vrcp.pop %v2412
    %v2417 = vrcp.pop %v2415
    %v2418 = vmul.f32 %v2407, %v2416
    %v2419 = vmul.f32 %v2409, %v2417
    %2420 = vrot.lane.b32.xlu0 %v2097, 56
    %v2421 = vpop.permute.xlu0 %2420
    %2422 = vrot.lane.b32.xlu0 %v2102, 56
    %v2423 = vpop.permute.xlu0 %2422
    %v2426 = vsel %vm2194, %v2418, 0
    %v2429 = vsel %vm2194, %v2419, 0
    %v2431 = vsel %vm2229, %v2423, 0
    %2433 = vmatprep.subr.mxu0 0.0
    %2434 = vmatpush1.msra.mxu0 %v2421
    %2435 = vmatprep.subr.mxu0 0.0
    %2436 = vmatpush1.msra.mxu0 %v2431
    %2437 = vmatprep.subr.mxu0 0.0
    %2438 = vmatpush1.msra.mxu0 0.0
    %2439 = vmatprep.subr.mxu0 0.0
    %2440 = vmatpush1.msra.mxu0 0.0
    %2441 = vmatprep.subr.mxu0 0.0
    %2442 = vmatpush1.msra.mxu0 0.0
    %2443 = vmatprep.subr.mxu0 0.0
    %2444 = vmatpush1.msra.mxu0 0.0
    %2445 = vmatprep.subr.mxu0 0.0
    %2446 = vmatpush1.msra.mxu0 0.0
    %2447 = vmatprep.subr.mxu0 0.0
    %2448 = vmatpush1.msra.mxu0 0.0
    %2449 = vmatprep.subr.mxu0 0.0
    %2450 = vmatpush1.msra.mxu0 0.0
    %2451 = vmatprep.subr.mxu0 0.0
    %2452 = vmatpush1.msra.mxu0 0.0
    %2453 = vmatprep.subr.mxu0 0.0
    %2454 = vmatpush1.msra.mxu0 0.0
    %2455 = vmatprep.subr.mxu0 0.0
    %2456 = vmatpush1.msra.mxu0 0.0
    %2457 = vmatprep.subr.mxu0 0.0
    %2458 = vmatpush1.msra.mxu0 0.0
    %2459 = vmatprep.subr.mxu0 0.0
    %2460 = vmatpush1.msra.mxu0 0.0
    %2461 = vmatprep.subr.mxu0 0.0
    %2462 = vmatpush1.msra.mxu0 0.0
    %2463 = vmatprep.subr.mxu0 0.0
    %2464 = vmatpush1.msra.mxu0 0.0
    %2465 = vmatprep.subr.mxu0 0.0
    %2466 = vmatpush1.msra.mxu0 0.0
    %2467 = vmatprep.subr.mxu0 0.0
    %2468 = vmatpush1.msra.mxu0 0.0
    %2469 = vmatprep.subr.mxu0 0.0
    %2470 = vmatpush1.msra.mxu0 0.0
    %2471 = vmatprep.subr.mxu0 0.0
    %2472 = vmatpush1.msra.mxu0 0.0
    %2473 = vmatprep.subr.mxu0 0.0
    %2474 = vmatpush1.msra.mxu0 0.0
    %2475 = vmatprep.subr.mxu0 0.0
    %2476 = vmatpush1.msra.mxu0 0.0
    %2477 = vmatprep.subr.mxu0 0.0
    %2478 = vmatpush1.msra.mxu0 0.0
    %2479 = vmatprep.subr.mxu0 0.0
    %2480 = vmatpush1.msra.mxu0 0.0
    %2481 = vmatprep.subr.mxu0 0.0
    %2482 = vmatpush1.msra.mxu0 0.0
    %2483 = vmatprep.subr.mxu0 0.0
    %2484 = vmatpush1.msra.mxu0 0.0
    %2485 = vmatprep.subr.mxu0 0.0
    %2486 = vmatpush1.msra.mxu0 0.0
    %2487 = vmatprep.subr.mxu0 0.0
    %2488 = vmatpush1.msra.mxu0 0.0
    %2489 = vmatprep.subr.mxu0 0.0
    %2490 = vmatpush1.msra.mxu0 0.0
    %2491 = vmatprep.subr.mxu0 0.0
    %2492 = vmatpush1.msra.mxu0 0.0
    %2493 = vmatprep.subr.mxu0 0.0
    %2494 = vmatpush1.msra.mxu0 0.0
    %2495 = vmatprep.subr.mxu0 0.0
    %2496 = vmatpush1.msra.mxu0 0.0
    %2497 = vmatprep.mubr.f32.mxu0 0.0
    %2498 = vmatmul.mubr.f32.gmra.mrb[0].mxu0 %v2426
    %v2499 = vpop.f32.mrb[0].mxu0
    %v2500 = vadd.f32 0.0, %v2499
    %v2501 = vpop.f32.mrb[0].mxu0
    %2502 = vmatprep.mubr.f32.mxu0 0.0
    %2503 = vmatmul.mubr.f32.gmra.mrb[0].mxu0 %v2429
    %v2504 = vpop.f32.mrb[0].mxu0
    %v2505 = vadd.f32 0.0, %v2504
    %v2506 = vpop.f32.mrb[0].mxu0
    %2507 = vdwg.mxu0
    %2508 = vrot.lane.b32.xlu0 %v2097, 112
    %v2509 = vpop.permute.xlu0 %2508
    %2510 = vrot.lane.b32.xlu0 %v2102, 112
    %v2511 = vpop.permute.xlu0 %2510
    %2512 = vrot.lane.b32.xlu0 %v2097, 80
    %v2513 = vpop.permute.xlu0 %2512
    %2514 = vrot.lane.b32.xlu0 %v2102, 80
    %v2515 = vpop.permute.xlu0 %2514
    %v2516 = vsel %vm157, %v2509, 0
    %v2518 = vsel %vm157, %v2511, 0
    %v2520 = vsel %vm157, %v2513, 0
    %v2522 = vsel %vm157, %v2515, 0
    %2524 = vmatprep.subr.mxu0 0.0
    %2525 = vmatpush1.xpose.msra.mxu0 %v2520
    %2526 = vmatprep.subr.mxu0 0.0
    %2527 = vmatpush1.xpose.msra.mxu0 %v2522
    %2528 = vmatprep.subr.mxu0 0.0
    %2529 = vmatpush1.xpose.msra.mxu0 0.0
    %2530 = vmatprep.subr.mxu0 0.0
    %2531 = vmatpush1.xpose.msra.mxu0 0.0
    %2532 = vmatprep.subr.mxu0 0.0
    %2533 = vmatpush1.xpose.msra.mxu0 0.0
    %2534 = vmatprep.subr.mxu0 0.0
    %2535 = vmatpush1.xpose.msra.mxu0 0.0
    %2536 = vmatprep.subr.mxu0 0.0
    %2537 = vmatpush1.xpose.msra.mxu0 0.0
    %2538 = vmatprep.subr.mxu0 0.0
    %2539 = vmatpush1.xpose.msra.mxu0 0.0
    %2540 = vmatprep.subr.mxu0 0.0
    %2541 = vmatpush1.xpose.msra.mxu0 0.0
    %2542 = vmatprep.subr.mxu0 0.0
    %2543 = vmatpush1.xpose.msra.mxu0 0.0
    %2544 = vmatprep.subr.mxu0 0.0
    %2545 = vmatpush1.xpose.msra.mxu0 0.0
    %2546 = vmatprep.subr.mxu0 0.0
    %2547 = vmatpush1.xpose.msra.mxu0 0.0
    %2548 = vmatprep.subr.mxu0 0.0
    %2549 = vmatpush1.xpose.msra.mxu0 0.0
    %2550 = vmatprep.subr.mxu0 0.0
    %2551 = vmatpush1.xpose.msra.mxu0 0.0
    %2552 = vmatprep.subr.mxu0 0.0
    %2553 = vmatpush1.xpose.msra.mxu0 0.0
    %2554 = vmatprep.subr.mxu0 0.0
    %2555 = vmatpush1.xpose.msra.mxu0 0.0
    %2556 = vmatprep.subr.mxu0 0.0
    %2557 = vmatpush1.xpose.msra.mxu0 0.0
    %2558 = vmatprep.subr.mxu0 0.0
    %2559 = vmatpush1.xpose.msra.mxu0 0.0
    %2560 = vmatprep.subr.mxu0 0.0
    %2561 = vmatpush1.xpose.msra.mxu0 0.0
    %2562 = vmatprep.subr.mxu0 0.0
    %2563 = vmatpush1.xpose.msra.mxu0 0.0
    %2564 = vmatprep.subr.mxu0 0.0
    %2565 = vmatpush1.xpose.msra.mxu0 0.0
    %2566 = vmatprep.subr.mxu0 0.0
    %2567 = vmatpush1.xpose.msra.mxu0 0.0
    %2568 = vmatprep.subr.mxu0 0.0
    %2569 = vmatpush1.xpose.msra.mxu0 0.0
    %2570 = vmatprep.subr.mxu0 0.0
    %2571 = vmatpush1.xpose.msra.mxu0 0.0
    %2572 = vmatprep.subr.mxu0 0.0
    %2573 = vmatpush1.xpose.msra.mxu0 0.0
    %2574 = vmatprep.subr.mxu0 0.0
    %2575 = vmatpush1.xpose.msra.mxu0 0.0
    %2576 = vmatprep.subr.mxu0 0.0
    %2577 = vmatpush1.xpose.msra.mxu0 0.0
    %2578 = vmatprep.subr.mxu0 0.0
    %2579 = vmatpush1.xpose.msra.mxu0 0.0
    %2580 = vmatprep.subr.mxu0 0.0
    %2581 = vmatpush1.xpose.msra.mxu0 0.0
    %2582 = vmatprep.subr.mxu0 0.0
    %2583 = vmatpush1.xpose.msra.mxu0 0.0
    %2584 = vmatprep.subr.mxu0 0.0
    %2585 = vmatpush1.xpose.msra.mxu0 0.0
    %2586 = vmatprep.subr.mxu0 0.0
    %2587 = vmatpush1.xpose.msra.mxu0 0.0
    %2588 = vmatprep.mubr.f32.mxu0 0.0
    %2589 = vmatmul.mubr.f32.gmra.mrb[0].mxu0 %v2516
    %v2590 = vpop.f32.mrb[0].mxu0
    %v2591 = vadd.f32 %v2018, %v2590
    %v2592 = vpop.f32.mrb[0].mxu0
    %2593 = vmatprep.mubr.f32.mxu0 0.0
    %2594 = vmatmul.mubr.f32.gmra.mrb[0].mxu0 %v2518
    %v2595 = vpop.f32.mrb[0].mxu0
    %v2596 = vadd.f32 %v2019, %v2595
    %v2597 = vpop.f32.mrb[0].mxu0
    %2598 = vdwg.mxu0
    %v2599 = vsel %vm2194, %v2591, -inf
    %2600 = vmax.xlane.f32.xlu0 %v2599
    %v2601 = vpop.xlane.xlu0 %2600
    %v2602 = vsel %vm2198, %v2596, -inf
    %2603 = vmax.xlane.f32.xlu0 %v2602
    %v2604 = vpop.xlane.xlu0 %2603
    %v2605 = vsub.f32 %v2591, %v2601
    %v2606 = vsub.f32 %v2596, %v2604
    %v2607 = vmul.f32 %v2605, 1.442695
    %v2608 = vpow.pop %v2607
    %v2609 = vmul.f32 %v2606, 1.442695
    %v2610 = vpow.pop %v2609
    %v2611 = vsel %vm2194, %v2608, 0.0
    %2612 = vadd.xlane.f32.xlu0 %v2611
    %v2613 = vpop.xlane.xlu0 %2612
    %v2614 = vsel %vm2198, %v2610, 0.0
    %2615 = vadd.xlane.f32.xlu0 %v2614
    %v2616 = vpop.xlane.xlu0 %2615
    %v2617 = vrcp.pop %v2613
    %v2618 = vrcp.pop %v2616
    %v2619 = vmul.f32 %v2608, %v2617
    %v2620 = vmul.f32 %v2610, %v2618
    %2621 = vrot.lane.b32.xlu0 %v2097, 48
    %v2622 = vpop.permute.xlu0 %2621
    %2623 = vrot.lane.b32.xlu0 %v2102, 48
    %v2624 = vpop.permute.xlu0 %2623
    %v2627 = vsel %vm2194, %v2619, 0
    %v2630 = vsel %vm2194, %v2620, 0
    %v2632 = vsel %vm2229, %v2624, 0
    %2634 = vmatprep.subr.mxu0 0.0
    %2635 = vmatpush1.msra.mxu0 %v2622
    %2636 = vmatprep.subr.mxu0 0.0
    %2637 = vmatpush1.msra.mxu0 %v2632
    %2638 = vmatprep.subr.mxu0 0.0
    %2639 = vmatpush1.msra.mxu0 0.0
    %2640 = vmatprep.subr.mxu0 0.0
    %2641 = vmatpush1.msra.mxu0 0.0
    %2642 = vmatprep.subr.mxu0 0.0
    %2643 = vmatpush1.msra.mxu0 0.0
    %2644 = vmatprep.subr.mxu0 0.0
    %2645 = vmatpush1.msra.mxu0 0.0
    %2646 = vmatprep.subr.mxu0 0.0
    %2647 = vmatpush1.msra.mxu0 0.0
    %2648 = vmatprep.subr.mxu0 0.0
    %2649 = vmatpush1.msra.mxu0 0.0
    %2650 = vmatprep.subr.mxu0 0.0
    %2651 = vmatpush1.msra.mxu0 0.0
    %2652 = vmatprep.subr.mxu0 0.0
    %2653 = vmatpush1.msra.mxu0 0.0
    %2654 = vmatprep.subr.mxu0 0.0
    %2655 = vmatpush1.msra.mxu0 0.0
    %2656 = vmatprep.subr.mxu0 0.0
    %2657 = vmatpush1.msra.mxu0 0.0
    %2658 = vmatprep.subr.mxu0 0.0
    %2659 = vmatpush1.msra.mxu0 0.0
    %2660 = vmatprep.subr.mxu0 0.0
    %2661 = vmatpush1.msra.mxu0 0.0
    %2662 = vmatprep.subr.mxu0 0.0
    %2663 = vmatpush1.msra.mxu0 0.0
    %2664 = vmatprep.subr.mxu0 0.0
    %2665 = vmatpush1.msra.mxu0 0.0
    %2666 = vmatprep.subr.mxu0 0.0
    %2667 = vmatpush1.msra.mxu0 0.0
    %2668 = vmatprep.subr.mxu0 0.0
    %2669 = vmatpush1.msra.mxu0 0.0
    %2670 = vmatprep.subr.mxu0 0.0
    %2671 = vmatpush1.msra.mxu0 0.0
    %2672 = vmatprep.subr.mxu0 0.0
    %2673 = vmatpush1.msra.mxu0 0.0
    %2674 = vmatprep.subr.mxu0 0.0
    %2675 = vmatpush1.msra.mxu0 0.0
    %2676 = vmatprep.subr.mxu0 0.0
    %2677 = vmatpush1.msra.mxu0 0.0
    %2678 = vmatprep.subr.mxu0 0.0
    %2679 = vmatpush1.msra.mxu0 0.0
    %2680 = vmatprep.subr.mxu0 0.0
    %2681 = vmatpush1.msra.mxu0 0.0
    %2682 = vmatprep.subr.mxu0 0.0
    %2683 = vmatpush1.msra.mxu0 0.0
    %2684 = vmatprep.subr.mxu0 0.0
    %2685 = vmatpush1.msra.mxu0 0.0
    %2686 = vmatprep.subr.mxu0 0.0
    %2687 = vmatpush1.msra.mxu0 0.0
    %2688 = vmatprep.subr.mxu0 0.0
    %2689 = vmatpush1.msra.mxu0 0.0
    %2690 = vmatprep.subr.mxu0 0.0
    %2691 = vmatpush1.msra.mxu0 0.0
    %2692 = vmatprep.subr.mxu0 0.0
    %2693 = vmatpush1.msra.mxu0 0.0
    %2694 = vmatprep.subr.mxu0 0.0
    %2695 = vmatpush1.msra.mxu0 0.0
    %2696 = vmatprep.subr.mxu0 0.0
    %2697 = vmatpush1.msra.mxu0 0.0
    %2698 = vmatprep.mubr.f32.mxu0 0.0
    %2699 = vmatmul.mubr.f32.gmra.mrb[0].mxu0 %v2627
    %v2700 = vpop.f32.mrb[0].mxu0
    %v2701 = vadd.f32 0.0, %v2700
    %v2702 = vpop.f32.mrb[0].mxu0
    %2703 = vmatprep.mubr.f32.mxu0 0.0
    %2704 = vmatmul.mubr.f32.gmra.mrb[0].mxu0 %v2630
    %v2705 = vpop.f32.mrb[0].mxu0
    %v2706 = vadd.f32 0.0, %v2705
    %v2707 = vpop.f32.mrb[0].mxu0
    %2708 = vdwg.mxu0
    %2709 = vrot.lane.b32.xlu0 %v2097, 104
    %v2710 = vpop.permute.xlu0 %2709
    %2711 = vrot.lane.b32.xlu0 %v2102, 104
    %v2712 = vpop.permute.xlu0 %2711
    %2713 = vrot.lane.b32.xlu0 %v2097, 72
    %v2714 = vpop.permute.xlu0 %2713
    %2715 = vrot.lane.b32.xlu0 %v2102, 72
    %v2716 = vpop.permute.xlu0 %2715
    %v2717 = vsel %vm157, %v2710, 0
    %v2719 = vsel %vm157, %v2712, 0
    %v2721 = vsel %vm157, %v2714, 0
    %v2723 = vsel %vm157, %v2716, 0
    %2725 = vmatprep.subr.mxu0 0.0
    %2726 = vmatpush1.xpose.msra.mxu0 %v2721
    %2727 = vmatprep.subr.mxu0 0.0
    %2728 = vmatpush1.xpose.msra.mxu0 %v2723
    %2729 = vmatprep.subr.mxu0 0.0
    %2730 = vmatpush1.xpose.msra.mxu0 0.0
    %2731 = vmatprep.subr.mxu0 0.0
    %2732 = vmatpush1.xpose.msra.mxu0 0.0
    %2733 = vmatprep.subr.mxu0 0.0
    %2734 = vmatpush1.xpose.msra.mxu0 0.0
    %2735 = vmatprep.subr.mxu0 0.0
    %2736 = vmatpush1.xpose.msra.mxu0 0.0
    %2737 = vmatprep.subr.mxu0 0.0
    %2738 = vmatpush1.xpose.msra.mxu0 0.0
    %2739 = vmatprep.subr.mxu0 0.0
    %2740 = vmatpush1.xpose.msra.mxu0 0.0
    %2741 = vmatprep.subr.mxu0 0.0
    %2742 = vmatpush1.xpose.msra.mxu0 0.0
    %2743 = vmatprep.subr.mxu0 0.0
    %2744 = vmatpush1.xpose.msra.mxu0 0.0
    %2745 = vmatprep.subr.mxu0 0.0
    %2746 = vmatpush1.xpose.msra.mxu0 0.0
    %2747 = vmatprep.subr.mxu0 0.0
    %2748 = vmatpush1.xpose.msra.mxu0 0.0
    %2749 = vmatprep.subr.mxu0 0.0
    %2750 = vmatpush1.xpose.msra.mxu0 0.0
    %2751 = vmatprep.subr.mxu0 0.0
    %2752 = vmatpush1.xpose.msra.mxu0 0.0
    %2753 = vmatprep.subr.mxu0 0.0
    %2754 = vmatpush1.xpose.msra.mxu0 0.0
    %2755 = vmatprep.subr.mxu0 0.0
    %2756 = vmatpush1.xpose.msra.mxu0 0.0
    %2757 = vmatprep.subr.mxu0 0.0
    %2758 = vmatpush1.xpose.msra.mxu0 0.0
    %2759 = vmatprep.subr.mxu0 0.0
    %2760 = vmatpush1.xpose.msra.mxu0 0.0
    %2761 = vmatprep.subr.mxu0 0.0
    %2762 = vmatpush1.xpose.msra.mxu0 0.0
    %2763 = vmatprep.subr.mxu0 0.0
    %2764 = vmatpush1.xpose.msra.mxu0 0.0
    %2765 = vmatprep.subr.mxu0 0.0
    %2766 = vmatpush1.xpose.msra.mxu0 0.0
    %2767 = vmatprep.subr.mxu0 0.0
    %2768 = vmatpush1.xpose.msra.mxu0 0.0
    %2769 = vmatprep.subr.mxu0 0.0
    %2770 = vmatpush1.xpose.msra.mxu0 0.0
    %2771 = vmatprep.subr.mxu0 0.0
    %2772 = vmatpush1.xpose.msra.mxu0 0.0
    %2773 = vmatprep.subr.mxu0 0.0
    %2774 = vmatpush1.xpose.msra.mxu0 0.0
    %2775 = vmatprep.subr.mxu0 0.0
    %2776 = vmatpush1.xpose.msra.mxu0 0.0
    %2777 = vmatprep.subr.mxu0 0.0
    %2778 = vmatpush1.xpose.msra.mxu0 0.0
    %2779 = vmatprep.subr.mxu0 0.0
    %2780 = vmatpush1.xpose.msra.mxu0 0.0
    %2781 = vmatprep.subr.mxu0 0.0
    %2782 = vmatpush1.xpose.msra.mxu0 0.0
    %2783 = vmatprep.subr.mxu0 0.0
    %2784 = vmatpush1.xpose.msra.mxu0 0.0
    %2785 = vmatprep.subr.mxu0 0.0
    %2786 = vmatpush1.xpose.msra.mxu0 0.0
    %2787 = vmatprep.subr.mxu0 0.0
    %2788 = vmatpush1.xpose.msra.mxu0 0.0
    %2789 = vmatprep.mubr.f32.mxu0 0.0
    %2790 = vmatmul.mubr.f32.gmra.mrb[0].mxu0 %v2717
    %v2791 = vpop.f32.mrb[0].mxu0
    %v2792 = vadd.f32 %v2018, %v2791
    %v2793 = vpop.f32.mrb[0].mxu0
    %2794 = vmatprep.mubr.f32.mxu0 0.0
    %2795 = vmatmul.mubr.f32.gmra.mrb[0].mxu0 %v2719
    %v2796 = vpop.f32.mrb[0].mxu0
    %v2797 = vadd.f32 %v2019, %v2796
    %v2798 = vpop.f32.mrb[0].mxu0
    %2799 = vdwg.mxu0
    %v2800 = vsel %vm2194, %v2792, -inf
    %2801 = vmax.xlane.f32.xlu0 %v2800
    %v2802 = vpop.xlane.xlu0 %2801
    %v2803 = vsel %vm2198, %v2797, -inf
    %2804 = vmax.xlane.f32.xlu0 %v2803
    %v2805 = vpop.xlane.xlu0 %2804
    %v2806 = vsub.f32 %v2792, %v2802
    %v2807 = vsub.f32 %v2797, %v2805
    %v2808 = vmul.f32 %v2806, 1.442695
    %v2809 = vpow.pop %v2808
    %v2810 = vmul.f32 %v2807, 1.442695
    %v2811 = vpow.pop %v2810
    %v2812 = vsel %vm2194, %v2809, 0.0
    %2813 = vadd.xlane.f32.xlu0 %v2812
    %v2814 = vpop.xlane.xlu0 %2813
    %v2815 = vsel %vm2198, %v2811, 0.0
    %2816 = vadd.xlane.f32.xlu0 %v2815
    %v2817 = vpop.xlane.xlu0 %2816
    %v2818 = vrcp.pop %v2814
    %v2819 = vrcp.pop %v2817
    %v2820 = vmul.f32 %v2809, %v2818
    %v2821 = vmul.f32 %v2811, %v2819
    %2822 = vrot.lane.b32.xlu0 %v2097, 40
    %v2823 = vpop.permute.xlu0 %2822
    %2824 = vrot.lane.b32.xlu0 %v2102, 40
    %v2825 = vpop.permute.xlu0 %2824
    %v2828 = vsel %vm2194, %v2820, 0
    %v2831 = vsel %vm2194, %v2821, 0
    %v2833 = vsel %vm2229, %v2825, 0
    %2835 = vmatprep.subr.mxu0 0.0
    %2836 = vmatpush1.msra.mxu0 %v2823
    %2837 = vmatprep.subr.mxu0 0.0
    %2838 = vmatpush1.msra.mxu0 %v2833
    %2839 = vmatprep.subr.mxu0 0.0
    %2840 = vmatpush1.msra.mxu0 0.0
    %2841 = vmatprep.subr.mxu0 0.0
    %2842 = vmatpush1.msra.mxu0 0.0
    %2843 = vmatprep.subr.mxu0 0.0
    %2844 = vmatpush1.msra.mxu0 0.0
    %2845 = vmatprep.subr.mxu0 0.0
    %2846 = vmatpush1.msra.mxu0 0.0
    %2847 = vmatprep.subr.mxu0 0.0
    %2848 = vmatpush1.msra.mxu0 0.0
    %2849 = vmatprep.subr.mxu0 0.0
    %2850 = vmatpush1.msra.mxu0 0.0
    %2851 = vmatprep.subr.mxu0 0.0
    %2852 = vmatpush1.msra.mxu0 0.0
    %2853 = vmatprep.subr.mxu0 0.0
    %2854 = vmatpush1.msra.mxu0 0.0
    %2855 = vmatprep.subr.mxu0 0.0
    %2856 = vmatpush1.msra.mxu0 0.0
    %2857 = vmatprep.subr.mxu0 0.0
    %2858 = vmatpush1.msra.mxu0 0.0
    %2859 = vmatprep.subr.mxu0 0.0
    %2860 = vmatpush1.msra.mxu0 0.0
    %2861 = vmatprep.subr.mxu0 0.0
    %2862 = vmatpush1.msra.mxu0 0.0
    %2863 = vmatprep.subr.mxu0 0.0
    %2864 = vmatpush1.msra.mxu0 0.0
    %2865 = vmatprep.subr.mxu0 0.0
    %2866 = vmatpush1.msra.mxu0 0.0
    %2867 = vmatprep.subr.mxu0 0.0
    %2868 = vmatpush1.msra.mxu0 0.0
    %2869 = vmatprep.subr.mxu0 0.0
    %2870 = vmatpush1.msra.mxu0 0.0
    %2871 = vmatprep.subr.mxu0 0.0
    %2872 = vmatpush1.msra.mxu0 0.0
    %2873 = vmatprep.subr.mxu0 0.0
    %2874 = vmatpush1.msra.mxu0 0.0
    %2875 = vmatprep.subr.mxu0 0.0
    %2876 = vmatpush1.msra.mxu0 0.0
    %2877 = vmatprep.subr.mxu0 0.0
    %2878 = vmatpush1.msra.mxu0 0.0
    %2879 = vmatprep.subr.mxu0 0.0
    %2880 = vmatpush1.msra.mxu0 0.0
    %2881 = vmatprep.subr.mxu0 0.0
    %2882 = vmatpush1.msra.mxu0 0.0
    %2883 = vmatprep.subr.mxu0 0.0
    %2884 = vmatpush1.msra.mxu0 0.0
    %2885 = vmatprep.subr.mxu0 0.0
    %2886 = vmatpush1.msra.mxu0 0.0
    %2887 = vmatprep.subr.mxu0 0.0
    %2888 = vmatpush1.msra.mxu0 0.0
    %2889 = vmatprep.subr.mxu0 0.0
    %2890 = vmatpush1.msra.mxu0 0.0
    %2891 = vmatprep.subr.mxu0 0.0
    %2892 = vmatpush1.msra.mxu0 0.0
    %2893 = vmatprep.subr.mxu0 0.0
    %2894 = vmatpush1.msra.mxu0 0.0
    %2895 = vmatprep.subr.mxu0 0.0
    %2896 = vmatpush1.msra.mxu0 0.0
    %2897 = vmatprep.subr.mxu0 0.0
    %2898 = vmatpush1.msra.mxu0 0.0
    %2899 = vmatprep.mubr.f32.mxu0 0.0
    %2900 = vmatmul.mubr.f32.gmra.mrb[0].mxu0 %v2828
    %v2901 = vpop.f32.mrb[0].mxu0
    %v2902 = vadd.f32 0.0, %v2901
    %v2903 = vpop.f32.mrb[0].mxu0
    %2904 = vmatprep.mubr.f32.mxu0 0.0
    %2905 = vmatmul.mubr.f32.gmra.mrb[0].mxu0 %v2831
    %v2906 = vpop.f32.mrb[0].mxu0
    %v2907 = vadd.f32 0.0, %v2906
    %v2908 = vpop.f32.mrb[0].mxu0
    %2909 = vdwg.mxu0
    %2912 = vrot.lane.b32.xlu0 %v2500, 8
    %v2913 = vpop.permute.xlu0 %2912
    %2914 = vrot.lane.b32.xlu0 %v2505, 8
    %v2915 = vpop.permute.xlu0 %2914
    %2920 = vrot.lane.b32.xlu0 %v2701, 16
    %v2921 = vpop.permute.xlu0 %2920
    %2922 = vrot.lane.b32.xlu0 %v2706, 16
    %v2923 = vpop.permute.xlu0 %2922
    %2928 = vrot.lane.b32.xlu0 %v2902, 24
    %v2929 = vpop.permute.xlu0 %2928
    %2930 = vrot.lane.b32.xlu0 %v2907, 24
    %v2931 = vpop.permute.xlu0 %2930
    %v2934 = vsel %vm157, %v2299, %v2913
    %v2935 = vsel %vm157, %v2304, %v2915
    %v2936 = vsel %vm241, %v2934, %v2921
    %v2937 = vsel %vm241, %v2935, %v2923
    %v2938 = vsel %vm979, %v2936, %v2929
    %v2939 = vsel %vm979, %v2937, %v2931
    %v2940 = vlaneseq
    %v2941 = vshrl.u32 %v2940, 7
    %v2942 = vsub.s32 1, %v2941
    %v2943 = vrot.slane %v2017, %v2942
    %v2945 = vsel %vm69, %v2938, 0
    %v2948 = vsel %vm69, %v2939, 0
    %2950 = vmatprep.subr.mxu0 0.0
    %2951 = vmatpush1.msra.mxu0 %v2001
    %2952 = vmatprep.subr.mxu0 0.0
    %2953 = vmatpush1.msra.mxu0 %v2002
    %2954 = vmatprep.subr.mxu0 0.0
    %2955 = vmatpush1.msra.mxu0 %v2003
    %2956 = vmatprep.subr.mxu0 0.0
    %2957 = vmatpush1.msra.mxu0 %v2004
    %2958 = vmatprep.subr.mxu0 0.0
    %2959 = vmatpush1.msra.mxu0 0.0
    %2960 = vmatprep.subr.mxu0 0.0
    %2961 = vmatpush1.msra.mxu0 0.0
    %2962 = vmatprep.subr.mxu0 0.0
    %2963 = vmatpush1.msra.mxu0 0.0
    %2964 = vmatprep.subr.mxu0 0.0
    %2965 = vmatpush1.msra.mxu0 0.0
    %2966 = vmatprep.subr.mxu0 0.0
    %2967 = vmatpush1.msra.mxu0 0.0
    %2968 = vmatprep.subr.mxu0 0.0
    %2969 = vmatpush1.msra.mxu0 0.0
    %2970 = vmatprep.subr.mxu0 0.0
    %2971 = vmatpush1.msra.mxu0 0.0
    %2972 = vmatprep.subr.mxu0 0.0
    %2973 = vmatpush1.msra.mxu0 0.0
    %2974 = vmatprep.subr.mxu0 0.0
    %2975 = vmatpush1.msra.mxu0 0.0
    %2976 = vmatprep.subr.mxu0 0.0
    %2977 = vmatpush1.msra.mxu0 0.0
    %2978 = vmatprep.subr.mxu0 0.0
    %2979 = vmatpush1.msra.mxu0 0.0
    %2980 = vmatprep.subr.mxu0 0.0
    %2981 = vmatpush1.msra.mxu0 0.0
    %2982 = vmatprep.subr.mxu0 0.0
    %2983 = vmatpush1.msra.mxu0 0.0
    %2984 = vmatprep.subr.mxu0 0.0
    %2985 = vmatpush1.msra.mxu0 0.0
    %2986 = vmatprep.subr.mxu0 0.0
    %2987 = vmatpush1.msra.mxu0 0.0
    %2988 = vmatprep.subr.mxu0 0.0
    %2989 = vmatpush1.msra.mxu0 0.0
    %2990 = vmatprep.subr.mxu0 0.0
    %2991 = vmatpush1.msra.mxu0 0.0
    %2992 = vmatprep.subr.mxu0 0.0
    %2993 = vmatpush1.msra.mxu0 0.0
    %2994 = vmatprep.subr.mxu0 0.0
    %2995 = vmatpush1.msra.mxu0 0.0
    %2996 = vmatprep.subr.mxu0 0.0
    %2997 = vmatpush1.msra.mxu0 0.0
    %2998 = vmatprep.subr.mxu0 0.0
    %2999 = vmatpush1.msra.mxu0 0.0
    %3000 = vmatprep.subr.mxu0 0.0
    %3001 = vmatpush1.msra.mxu0 0.0
    %3002 = vmatprep.subr.mxu0 0.0
    %3003 = vmatpush1.msra.mxu0 0.0
    %3004 = vmatprep.subr.mxu0 0.0
    %3005 = vmatpush1.msra.mxu0 0.0
    %3006 = vmatprep.subr.mxu0 0.0
    %3007 = vmatpush1.msra.mxu0 0.0
    %3008 = vmatprep.subr.mxu0 0.0
    %3009 = vmatpush1.msra.mxu0 0.0
    %3010 = vmatprep.subr.mxu0 0.0
    %3011 = vmatpush1.msra.mxu0 0.0
    %3012 = vmatprep.subr.mxu0 0.0
    %3013 = vmatpush1.msra.mxu0 0.0
    %3014 = vmatprep.mubr.f32.mxu0 0.0
    %3015 = vmatmul.mubr.f32.gmra.mrb[0].mxu0 %v2945
    %v3016 = vpop.f32.mrb[0].mxu0
    %v3017 = vadd.f32 %v2943, %v3016
    %v3018 = vpop.f32.mrb[0].mxu0
    %3019 = vmatprep.mubr.f32.mxu0 0.0
    %3020 = vmatmul.mubr.f32.gmra.mrb[0].mxu0 %v2948
    %v3021 = vpop.f32.mrb[0].mxu0
    %v3022 = vadd.f32 %v2943, %v3021
    %v3023 = vpop.f32.mrb[0].mxu0
    %3024 = vdwg.mxu0
    %v3025 = vadd.f32 %v1995, %v3017
    %v3026 = vadd.f32 %v1996, %v3022
    %v3027 = vsel %vm69, %v3025, 0.0
    %3028 = vadd.xlane.f32.xlu0 %v3027
    %v3029 = vpop.xlane.xlu0 %3028
    %vm3030 = vcmask 254976
    %v3031 = vsel %vm3030, %v3026, 0.0
    %3032 = vadd.xlane.f32.xlu0 %v3031
    %v3033 = vpop.xlane.xlu0 %3032
    %v3034 = vmul.f32 %v3029, %v1075
    %v3035 = vmul.f32 %v3033, %v1075
    %v3036 = vsub.f32 %v3025, %v3034
    %v3037 = vsub.f32 %v3026, %v3035
    %v3038 = vmul.f32 %v3036, %v3036
    %v3039 = vmul.f32 %v3037, %v3037
    %v3040 = vsel %vm69, %v3038, 0.0
    %3041 = vadd.xlane.f32.xlu0 %v3040
    %v3042 = vpop.xlane.xlu0 %3041
    %v3043 = vsel %vm3030, %v3039, 0.0
    %3044 = vadd.xlane.f32.xlu0 %v3043
    %v3045 = vpop.xlane.xlu0 %3044
    %v3046 = vmul.f32 %v3042, %v1075
    %v3047 = vmul.f32 %v3045, %v1075
    %v3048 = vadd.f32 %v3046, 1e-05
    %v3049 = vadd.f32 %v3047, 1e-05
    %v3050 = vrsqrt.pop %v3048
    %v3051 = vrsqrt.pop %v3049
    %v3052 = vmul.f32 %v3036, %v3050
    %v3053 = vmul.f32 %v3037, %v3051
    %v3054 = vlaneseq
    %v3055 = vshrl.u32 %v3054, 7
    %v3056 = vsub.s32 2, %v3055
    %v3057 = vrot.slane %v2017, %v3056
    %v3058 = vmul.f32 %v3052, %v3057
    %v3059 = vmul.f32 %v3053, %v3057
    %v3060 = vlaneseq
    %v3061 = vshrl.u32 %v3060, 7
    %v3062 = vsub.s32 3, %v3061
    %v3063 = vrot.slane %v2017, %v3062
    %v3064 = vadd.f32 %v3058, %v3063
    %v3065 = vadd.f32 %v3059, %v3063
    %v3066 = vlaneseq
    %v3067 = vshrl.u32 %v3066, 7
    %v3068 = vsub.s32 4, %v3067
    %v3069 = vrot.slane %v2017, %v3068
    %v3071 = vsel %vm69, %v3064, 0
    %v3074 = vsel %vm69, %v3065, 0
    %3076 = vmatprep.subr.mxu0 0.0
    %3077 = vmatpush1.msra.mxu0 %v2005
    %3078 = vmatprep.subr.mxu0 0.0
    %3079 = vmatpush1.msra.mxu0 %v2006
    %3080 = vmatprep.subr.mxu0 0.0
    %3081 = vmatpush1.msra.mxu0 %v2007
    %3082 = vmatprep.subr.mxu0 0.0
    %3083 = vmatpush1.msra.mxu0 %v2008
    %3084 = vmatprep.subr.mxu0 0.0
    %3085 = vmatpush1.msra.mxu0 0.0
    %3086 = vmatprep.subr.mxu0 0.0
    %3087 = vmatpush1.msra.mxu0 0.0
    %3088 = vmatprep.subr.mxu0 0.0
    %3089 = vmatpush1.msra.mxu0 0.0
    %3090 = vmatprep.subr.mxu0 0.0
    %3091 = vmatpush1.msra.mxu0 0.0
    %3092 = vmatprep.subr.mxu0 0.0
    %3093 = vmatpush1.msra.mxu0 0.0
    %3094 = vmatprep.subr.mxu0 0.0
    %3095 = vmatpush1.msra.mxu0 0.0
    %3096 = vmatprep.subr.mxu0 0.0
    %3097 = vmatpush1.msra.mxu0 0.0
    %3098 = vmatprep.subr.mxu0 0.0
    %3099 = vmatpush1.msra.mxu0 0.0
    %3100 = vmatprep.subr.mxu0 0.0
    %3101 = vmatpush1.msra.mxu0 0.0
    %3102 = vmatprep.subr.mxu0 0.0
    %3103 = vmatpush1.msra.mxu0 0.0
    %3104 = vmatprep.subr.mxu0 0.0
    %3105 = vmatpush1.msra.mxu0 0.0
    %3106 = vmatprep.subr.mxu0 0.0
    %3107 = vmatpush1.msra.mxu0 0.0
    %3108 = vmatprep.subr.mxu0 0.0
    %3109 = vmatpush1.msra.mxu0 0.0
    %3110 = vmatprep.subr.mxu0 0.0
    %3111 = vmatpush1.msra.mxu0 0.0
    %3112 = vmatprep.subr.mxu0 0.0
    %3113 = vmatpush1.msra.mxu0 0.0
    %3114 = vmatprep.subr.mxu0 0.0
    %3115 = vmatpush1.msra.mxu0 0.0
    %3116 = vmatprep.subr.mxu0 0.0
    %3117 = vmatpush1.msra.mxu0 0.0
    %3118 = vmatprep.subr.mxu0 0.0
    %3119 = vmatpush1.msra.mxu0 0.0
    %3120 = vmatprep.subr.mxu0 0.0
    %3121 = vmatpush1.msra.mxu0 0.0
    %3122 = vmatprep.subr.mxu0 0.0
    %3123 = vmatpush1.msra.mxu0 0.0
    %3124 = vmatprep.subr.mxu0 0.0
    %3125 = vmatpush1.msra.mxu0 0.0
    %3126 = vmatprep.subr.mxu0 0.0
    %3127 = vmatpush1.msra.mxu0 0.0
    %3128 = vmatprep.subr.mxu0 0.0
    %3129 = vmatpush1.msra.mxu0 0.0
    %3130 = vmatprep.subr.mxu0 0.0
    %3131 = vmatpush1.msra.mxu0 0.0
    %3132 = vmatprep.subr.mxu0 0.0
    %3133 = vmatpush1.msra.mxu0 0.0
    %3134 = vmatprep.subr.mxu0 0.0
    %3135 = vmatpush1.msra.mxu0 0.0
    %3136 = vmatprep.subr.mxu0 0.0
    %3137 = vmatpush1.msra.mxu0 0.0
    %3138 = vmatprep.subr.mxu0 0.0
    %3139 = vmatpush1.msra.mxu0 0.0
    %3140 = vmatprep.mubr.f32.mxu0 0.0
    %3141 = vmatmul.mubr.f32.gmra.mrb[0].mxu0 %v3071
    %v3142 = vpop.f32.mrb[0].mxu0
    %v3143 = vadd.f32 %v3069, %v3142
    %v3144 = vpop.f32.mrb[0].mxu0
    %3145 = vmatprep.mubr.f32.mxu0 0.0
    %3146 = vmatmul.mubr.f32.gmra.mrb[0].mxu0 %v3074
    %v3147 = vpop.f32.mrb[0].mxu0
    %v3148 = vadd.f32 %v3069, %v3147
    %v3149 = vpop.f32.mrb[0].mxu0
    %3150 = vdwg.mxu0
    %v3151 = vmax.f32 %v3143, 0.0
    %v3152 = vmax.f32 %v3148, 0.0
    %v3153 = vlaneseq
    %v3154 = vshrl.u32 %v3153, 7
    %v3155 = vsub.s32 5, %v3154
    %v3156 = vrot.slane %v2017, %v3155
    %v3158 = vsel %vm1199, %v3151, 0
    %v3161 = vsel %vm1199, %v3152, 0
    %3163 = vmatprep.subr.mxu0 0.0
    %3164 = vmatpush1.msra.mxu0 %v2009
    %3165 = vmatprep.subr.mxu0 0.0
    %3166 = vmatpush1.msra.mxu0 %v2010
    %3167 = vmatprep.subr.mxu0 0.0
    %3168 = vmatpush1.msra.mxu0 %v2011
    %3169 = vmatprep.subr.mxu0 0.0
    %3170 = vmatpush1.msra.mxu0 %v2012
    %3171 = vmatprep.subr.mxu0 0.0
    %3172 = vmatpush1.msra.mxu0 %v2013
    %3173 = vmatprep.subr.mxu0 0.0
    %3174 = vmatpush1.msra.mxu0 %v2014
    %3175 = vmatprep.subr.mxu0 0.0
    %3176 = vmatpush1.msra.mxu0 %v2015
    %3177 = vmatprep.subr.mxu0 0.0
    %3178 = vmatpush1.msra.mxu0 %v2016
    %3179 = vmatprep.subr.mxu0 0.0
    %3180 = vmatpush1.msra.mxu0 0.0
    %3181 = vmatprep.subr.mxu0 0.0
    %3182 = vmatpush1.msra.mxu0 0.0
    %3183 = vmatprep.subr.mxu0 0.0
    %3184 = vmatpush1.msra.mxu0 0.0
    %3185 = vmatprep.subr.mxu0 0.0
    %3186 = vmatpush1.msra.mxu0 0.0
    %3187 = vmatprep.subr.mxu0 0.0
    %3188 = vmatpush1.msra.mxu0 0.0
    %3189 = vmatprep.subr.mxu0 0.0
    %3190 = vmatpush1.msra.mxu0 0.0
    %3191 = vmatprep.subr.mxu0 0.0
    %3192 = vmatpush1.msra.mxu0 0.0
    %3193 = vmatprep.subr.mxu0 0.0
    %3194 = vmatpush1.msra.mxu0 0.0
    %3195 = vmatprep.subr.mxu0 0.0
    %3196 = vmatpush1.msra.mxu0 0.0
    %3197 = vmatprep.subr.mxu0 0.0
    %3198 = vmatpush1.msra.mxu0 0.0
    %3199 = vmatprep.subr.mxu0 0.0
    %3200 = vmatpush1.msra.mxu0 0.0
    %3201 = vmatprep.subr.mxu0 0.0
    %3202 = vmatpush1.msra.mxu0 0.0
    %3203 = vmatprep.subr.mxu0 0.0
    %3204 = vmatpush1.msra.mxu0 0.0
    %3205 = vmatprep.subr.mxu0 0.0
    %3206 = vmatpush1.msra.mxu0 0.0
    %3207 = vmatprep.subr.mxu0 0.0
    %3208 = vmatpush1.msra.mxu0 0.0
    %3209 = vmatprep.subr.mxu0 0.0
    %3210 = vmatpush1.msra.mxu0 0.0
    %3211 = vmatprep.subr.mxu0 0.0
    %3212 = vmatpush1.msra.mxu0 0.0
    %3213 = vmatprep.subr.mxu0 0.0
    %3214 = vmatpush1.msra.mxu0 0.0
    %3215 = vmatprep.subr.mxu0 0.0
    %3216 = vmatpush1.msra.mxu0 0.0
    %3217 = vmatprep.subr.mxu0 0.0
    %3218 = vmatpush1.msra.mxu0 0.0
    %3219 = vmatprep.subr.mxu0 0.0
    %3220 = vmatpush1.msra.mxu0 0.0
    %3221 = vmatprep.subr.mxu0 0.0
    %3222 = vmatpush1.msra.mxu0 0.0
    %3223 = vmatprep.subr.mxu0 0.0
    %3224 = vmatpush1.msra.mxu0 0.0
    %3225 = vmatprep.subr.mxu0 0.0
    %3226 = vmatpush1.msra.mxu0 0.0
    %3227 = vmatprep.mubr.f32.mxu0 0.0
    %3228 = vmatmul.mubr.f32.gmra.mrb[0].mxu0 %v3158
    %v3229 = vpop.f32.mrb[0].mxu0
    %v3230 = vadd.f32 %v3156, %v3229
    %v3231 = vpop.f32.mrb[0].mxu0
    %3232 = vmatprep.mubr.f32.mxu0 0.0
    %3233 = vmatmul.mubr.f32.gmra.mrb[0].mxu0 %v3161
    %v3234 = vpop.f32.mrb[0].mxu0
    %v3235 = vadd.f32 %v3156, %v3234
    %v3236 = vpop.f32.mrb[0].mxu0
    %3237 = vdwg.mxu0
    %v3238 = vadd.f32 %v3064, %v3230
    %v3239 = vadd.f32 %v3065, %v3235
    %v3240 = vsel %vm69, %v3238, 0.0
    %3241 = vadd.xlane.f32.xlu0 %v3240
    %v3242 = vpop.xlane.xlu0 %3241
    %v3243 = vsel %vm3030, %v3239, 0.0
    %3244 = vadd.xlane.f32.xlu0 %v3243
    %v3245 = vpop.xlane.xlu0 %3244
    %v3246 = vmul.f32 %v3242, %v1075
    %v3247 = vmul.f32 %v3245, %v1075
    %v3248 = vsub.f32 %v3238, %v3246
    %v3249 = vsub.f32 %v3239, %v3247
    %v3250 = vmul.f32 %v3248, %v3248
    %v3251 = vmul.f32 %v3249, %v3249
    %v3252 = vsel %vm69, %v3250, 0.0
    %3253 = vadd.xlane.f32.xlu0 %v3252
    %v3254 = vpop.xlane.xlu0 %3253
    %v3255 = vsel %vm3030, %v3251, 0.0
    %3256 = vadd.xlane.f32.xlu0 %v3255
    %v3257 = vpop.xlane.xlu0 %3256
    %v3258 = vmul.f32 %v3254, %v1075
    %v3259 = vmul.f32 %v3257, %v1075
    %v3260 = vadd.f32 %v3258, 1e-05
    %v3261 = vadd.f32 %v3259, 1e-05
    %v3262 = vrsqrt.pop %v3260
    %v3263 = vrsqrt.pop %v3261
    %v3264 = vmul.f32 %v3248, %v3262
    %v3265 = vmul.f32 %v3249, %v3263
    %v3266 = vlaneseq
    %v3267 = vshrl.u32 %v3266, 7
    %v3268 = vsub.s32 6, %v3267
    %v3269 = vrot.slane %v2017, %v3268
    %v3270 = vmul.f32 %v3264, %v3269
    %v3271 = vmul.f32 %v3265, %v3269
    %v3272 = vlaneseq
    %v3273 = vshrl.u32 %v3272, 7
    %v3274 = vsub.s32 7, %v3273
    %v3275 = vrot.slane %v2017, %v3274
    %v3276 = vadd.f32 %v3270, %v3275
    %v3277 = vadd.f32 %v3271, %v3275
    %v3278 = vld [vmem:[#allocation5 + $0x210] sm:$0xff]
    %v3279 = vld [vmem:[#allocation5 + $0x218] sm:$0x3]
    %v3280 = vld [vmem:[#allocation5 + $0x220] sm:$0xff]
    %v3281 = vld [vmem:[#allocation5 + $0x228] sm:$0xff]
    %v3282 = vld [vmem:[#allocation5 + $0x230] sm:$0xff]
    %v3283 = vld [vmem:[#allocation5 + $0x238] sm:$0xff]
    %v3284 = vsel %vm69, %v3276, 0.0
    %3285 = vadd.xlane.f32.xlu0 %v3284
    %v3286 = vpop.xlane.xlu0 %3285
    %v3287 = vsel %vm3030, %v3277, 0.0
    %3288 = vadd.xlane.f32.xlu0 %v3287
    %v3289 = vpop.xlane.xlu0 %3288
    %v3290 = vmul.f32 %v3286, %v1075
    %v3291 = vmul.f32 %v3289, %v1075
    %v3292 = vsub.f32 %v3276, %v3290
    %v3293 = vsub.f32 %v3277, %v3291
    %v3294 = vmul.f32 %v3292, %v3292
    %v3295 = vmul.f32 %v3293, %v3293
    %v3296 = vsel %vm69, %v3294, 0.0
    %3297 = vadd.xlane.f32.xlu0 %v3296
    %v3298 = vpop.xlane.xlu0 %3297
    %v3299 = vsel %vm3030, %v3295, 0.0
    %3300 = vadd.xlane.f32.xlu0 %v3299
    %v3301 = vpop.xlane.xlu0 %3300
    %v3302 = vmul.f32 %v3298, %v1075
    %v3303 = vmul.f32 %v3301, %v1075
    %v3304 = vadd.f32 %v3302, 1e-05
    %v3305 = vadd.f32 %v3303, 1e-05
    %v3306 = vrsqrt.pop %v3304
    %v3307 = vrsqrt.pop %v3305
    %v3308 = vmul.f32 %v3292, %v3306
    %v3309 = vmul.f32 %v3293, %v3307
    %v3310 = vlaneseq
    %v3311 = vshrl.u32 %v3310, 7
    %v3312 = vsub.s32 0, %v3311
    %v3313 = vrot.slane %v3278, %v3312
    %v3314 = vmul.f32 %v3308, %v3313
    %v3315 = vmul.f32 %v3309, %v3313
    %v3316 = vlaneseq
    %v3317 = vshrl.u32 %v3316, 7
    %v3318 = vsub.s32 1, %v3317
    %v3319 = vrot.slane %v3278, %v3318
    %v3320 = vadd.f32 %v3314, %v3319
    %v3321 = vadd.f32 %v3315, %v3319
    %v3323 = vsel %vm2194, %v3279, 0
    %v3326 = vsel %vm2229, %v3321, 0
    %3328 = vmatprep.subr.mxu0 0.0
    %3329 = vmatpush1.msra.mxu0 %v3320
    %3330 = vmatprep.subr.mxu0 0.0
    %3331 = vmatpush1.msra.mxu0 %v3326
    %3332 = vmatprep.subr.mxu0 0.0
    %3333 = vmatpush1.msra.mxu0 0.0
    %3334 = vmatprep.subr.mxu0 0.0
    %3335 = vmatpush1.msra.mxu0 0.0
    %3336 = vmatprep.subr.mxu0 0.0
    %3337 = vmatpush1.msra.mxu0 0.0
    %3338 = vmatprep.subr.mxu0 0.0
    %3339 = vmatpush1.msra.mxu0 0.0
    %3340 = vmatprep.subr.mxu0 0.0
    %3341 = vmatpush1.msra.mxu0 0.0
    %3342 = vmatprep.subr.mxu0 0.0
    %3343 = vmatpush1.msra.mxu0 0.0
    %3344 = vmatprep.subr.mxu0 0.0
    %3345 = vmatpush1.msra.mxu0 0.0
    %3346 = vmatprep.subr.mxu0 0.0
    %3347 = vmatpush1.msra.mxu0 0.0
    %3348 = vmatprep.subr.mxu0 0.0
    %3349 = vmatpush1.msra.mxu0 0.0
    %3350 = vmatprep.subr.mxu0 0.0
    %3351 = vmatpush1.msra.mxu0 0.0
    %3352 = vmatprep.subr.mxu0 0.0
    %3353 = vmatpush1.msra.mxu0 0.0
    %3354 = vmatprep.subr.mxu0 0.0
    %3355 = vmatpush1.msra.mxu0 0.0
    %3356 = vmatprep.subr.mxu0 0.0
    %3357 = vmatpush1.msra.mxu0 0.0
    %3358 = vmatprep.subr.mxu0 0.0
    %3359 = vmatpush1.msra.mxu0 0.0
    %3360 = vmatprep.subr.mxu0 0.0
    %3361 = vmatpush1.msra.mxu0 0.0
    %3362 = vmatprep.subr.mxu0 0.0
    %3363 = vmatpush1.msra.mxu0 0.0
    %3364 = vmatprep.subr.mxu0 0.0
    %3365 = vmatpush1.msra.mxu0 0.0
    %3366 = vmatprep.subr.mxu0 0.0
    %3367 = vmatpush1.msra.mxu0 0.0
    %3368 = vmatprep.subr.mxu0 0.0
    %3369 = vmatpush1.msra.mxu0 0.0
    %3370 = vmatprep.subr.mxu0 0.0
    %3371 = vmatpush1.msra.mxu0 0.0
    %3372 = vmatprep.subr.mxu0 0.0
    %3373 = vmatpush1.msra.mxu0 0.0
    %3374 = vmatprep.subr.mxu0 0.0
    %3375 = vmatpush1.msra.mxu0 0.0
    %3376 = vmatprep.subr.mxu0 0.0
    %3377 = vmatpush1.msra.mxu0 0.0
    %3378 = vmatprep.subr.mxu0 0.0
    %3379 = vmatpush1.msra.mxu0 0.0
    %3380 = vmatprep.subr.mxu0 0.0
    %3381 = vmatpush1.msra.mxu0 0.0
    %3382 = vmatprep.subr.mxu0 0.0
    %3383 = vmatpush1.msra.mxu0 0.0
    %3384 = vmatprep.subr.mxu0 0.0
    %3385 = vmatpush1.msra.mxu0 0.0
    %3386 = vmatprep.subr.mxu0 0.0
    %3387 = vmatpush1.msra.mxu0 0.0
    %3388 = vmatprep.subr.mxu0 0.0
    %3389 = vmatpush1.msra.mxu0 0.0
    %3390 = vmatprep.subr.mxu0 0.0
    %3391 = vmatpush1.msra.mxu0 0.0
    %3392 = vmatprep.mubr.f32.mxu0 0.0
    %3393 = vmatmul.mubr.f32.gmra.mrb[0].mxu0 %v3323
    %v3394 = vpop.f32.mrb[0].mxu0
    %v3395 = vadd.f32 0.0, %v3394
    %v3396 = vpop.f32.mrb[0].mxu0
    %3397 = vdwg.mxu0
    %v3398 = vlaneseq
    %v3399 = vshrl.u32 %v3398, 7
    %v3400 = vsub.s32 2, %v3399
    %v3401 = vrot.slane %v3278, %v3400
    %v3403 = vsel %vm69, %v3395, 0
    %3405 = vmatprep.subr.mxu0 0.0
    %3406 = vmatpush1.msra.mxu0 %v3280
    %3407 = vmatprep.subr.mxu0 0.0
    %3408 = vmatpush1.msra.mxu0 %v3281
    %3409 = vmatprep.subr.mxu0 0.0
    %3410 = vmatpush1.msra.mxu0 %v3282
    %3411 = vmatprep.subr.mxu0 0.0
    %3412 = vmatpush1.msra.mxu0 %v3283
    %3413 = vmatprep.subr.mxu0 0.0
    %3414 = vmatpush1.msra.mxu0 0.0
    %3415 = vmatprep.subr.mxu0 0.0
    %3416 = vmatpush1.msra.mxu0 0.0
    %3417 = vmatprep.subr.mxu0 0.0
    %3418 = vmatpush1.msra.mxu0 0.0
    %3419 = vmatprep.subr.mxu0 0.0
    %3420 = vmatpush1.msra.mxu0 0.0
    %3421 = vmatprep.subr.mxu0 0.0
    %3422 = vmatpush1.msra.mxu0 0.0
    %3423 = vmatprep.subr.mxu0 0.0
    %3424 = vmatpush1.msra.mxu0 0.0
    %3425 = vmatprep.subr.mxu0 0.0
    %3426 = vmatpush1.msra.mxu0 0.0
    %3427 = vmatprep.subr.mxu0 0.0
    %3428 = vmatpush1.msra.mxu0 0.0
    %3429 = vmatprep.subr.mxu0 0.0
    %3430 = vmatpush1.msra.mxu0 0.0
    %3431 = vmatprep.subr.mxu0 0.0
    %3432 = vmatpush1.msra.mxu0 0.0
    %3433 = vmatprep.subr.mxu0 0.0
    %3434 = vmatpush1.msra.mxu0 0.0
    %3435 = vmatprep.subr.mxu0 0.0
    %3436 = vmatpush1.msra.mxu0 0.0
    %3437 = vmatprep.subr.mxu0 0.0
    %3438 = vmatpush1.msra.mxu0 0.0
    %3439 = vmatprep.subr.mxu0 0.0
    %3440 = vmatpush1.msra.mxu0 0.0
    %3441 = vmatprep.subr.mxu0 0.0
    %3442 = vmatpush1.msra.mxu0 0.0
    %3443 = vmatprep.subr.mxu0 0.0
    %3444 = vmatpush1.msra.mxu0 0.0
    %3445 = vmatprep.subr.mxu0 0.0
    %3446 = vmatpush1.msra.mxu0 0.0
    %3447 = vmatprep.subr.mxu0 0.0
    %3448 = vmatpush1.msra.mxu0 0.0
    %3449 = vmatprep.subr.mxu0 0.0
    %3450 = vmatpush1.msra.mxu0 0.0
    %3451 = vmatprep.subr.mxu0 0.0
    %3452 = vmatpush1.msra.mxu0 0.0
    %3453 = vmatprep.subr.mxu0 0.0
    %3454 = vmatpush1.msra.mxu0 0.0
    %3455 = vmatprep.subr.mxu0 0.0
    %3456 = vmatpush1.msra.mxu0 0.0
    %3457 = vmatprep.subr.mxu0 0.0
    %3458 = vmatpush1.msra.mxu0 0.0
    %3459 = vmatprep.subr.mxu0 0.0
    %3460 = vmatpush1.msra.mxu0 0.0
    %3461 = vmatprep.subr.mxu0 0.0
    %3462 = vmatpush1.msra.mxu0 0.0
    %3463 = vmatprep.subr.mxu0 0.0
    %3464 = vmatpush1.msra.mxu0 0.0
    %3465 = vmatprep.subr.mxu0 0.0
    %3466 = vmatpush1.msra.mxu0 0.0
    %3467 = vmatprep.subr.mxu0 0.0
    %3468 = vmatpush1.msra.mxu0 0.0
    %3469 = vmatprep.mubr.f32.mxu0 0.0
    %3470 = vmatmul.mubr.f32.gmra.mrb[0].mxu0 %v3403
    %v3471 = vpop.f32.mrb[0].mxu0
    %v3472 = vadd.f32 %v3401, %v3471
    %v3473 = vpop.f32.mrb[0].mxu0
    %3474 = vdwg.mxu0
    %vm3475 = vcmask 33792
    %3476 = vst.msk [vmem:[#allocation7] sm:$0x3] %vm3475, %v3472
    // Predicated region
    $region18: #{fwd.1} parent=1 // pred_check
      _
    $region19: #{fwd.1} parent=1 // pred_check_branch
      %3478 = sbr.rel (0) target = $region21
    $region20: #{fwd.1} parent=1 // pred_region
      %s3480 = ssub.s32 32, 32
      %3481 = vsyncadd [#allocation4], %s3480
      %s3483 = sshll.u32 [#allocation7], 4
      %s3484 = int_to_ptr.vmem [resolvable:$true] %s3483
      %3486 = dma.vmem_to_hbm [thread:$0]  %s3484, 32, %s2, [#allocation4]
    $region21: #{fwd.1} parent=1 // pred_fallthru
      _
    // Predicated region
    $region22: #{fwd.1} parent=1 // pred_check
      _
    $region23: #{fwd.1} parent=1 // pred_check_branch
      %3488 = sbr.rel (0) target = $region25
    $region24: #{fwd.1} parent=1 // pred_region
      %3489 = dma.done [#allocation4], 32
    $region25: #{fwd.1} parent=1 // pred_fallthru
      _
    %3490 = vsyncpa [#allocation3], 1
    %3491 = vsyncpa [#allocation6], 1
    %3492 = vsyncpa [#allocation4], 1

</llo_original>
